<compile_context>
chip_gen: v7x
topology: tpu7x:2x2x1
jax: 0.10.0
libtpu: 0.0.40
codegen_flags: <defaults>
</compile_context>

<pallas_src>
import functools

import jax
import jax.numpy as jnp
from jax.experimental import pallas as pl
from jax.experimental.pallas import tpu as pltpu

EPS = 1e-5          # nn.BatchNorm2d default eps
_PAD = 128          # lane margin for depthwise shifts (multiple of 128 -> aligned writes)


def _spec(shape):
    nd = len(shape)
    return pl.BlockSpec(shape, lambda i, nd=nd: (0,) * nd)


def _bn_nc(a, g, b):
    """BatchNorm with batch statistics over (N, H*W) per channel.
    a: (N, C, HW); g, b: (1, C, 1).  One-pass E[x^2]-E[x]^2, f32 accumulation."""
    n = a.shape[0] * a.shape[2]
    s1 = jnp.sum(jnp.sum(a, axis=2, keepdims=True), axis=0, keepdims=True)
    s2 = jnp.sum(jnp.sum(a * a, axis=2, keepdims=True), axis=0, keepdims=True)
    mean = s1 * (1.0 / n)
    var = s2 * (1.0 / n) - mean * mean
    return (a - mean) * (jax.lax.rsqrt(var + EPS) * g) + b


def _mbconv_kernel(x_ref, wpw_ref, gpw_ref, bpw_ref,
                   wdw_ref, gdw_ref, bdw_ref,
                   sw1_ref, sb1_ref, sw2_ref, sb2_ref,
                   wpw1_ref, gpw1_ref, bpw1_ref,
                   o_ref, pad_ref, *, H, W, expand, use_res):
    HW = H * W
    N = x_ref.shape[0]
    Cm = wdw_ref.shape[0]
    Cout = wpw1_ref.shape[0]

    x = x_ref[...].astype(jnp.float32)                     # (N, Cin, HW)

    # ---- point_wise: 1x1 conv (VPU broadcast-MAC) + BN(batch stats) + ReLU6
    if expand:
        wpw = wpw_ref[...]                                 # (Cm, Cin)
        acc = jnp.zeros((N, Cm, HW), jnp.float32)
        for c in range(x.shape[1]):
            acc = acc + x[:, c:c + 1, :] * wpw[:, c:c + 1][None, :, :]
        y = jnp.clip(_bn_nc(acc, gpw_ref[...], bpw_ref[...]), 0.0, 6.0)
    else:
        y = x

    # ---- depthwise 3x3 (stride 1, pad 1) on the flattened H*W lane axis.
    # Stage y into a VMEM scratch with zeroed 128-lane margins; each tap is a
    # static lane-shifted slice read.  Row (H) boundaries land in the zero
    # margin; column (W) boundaries are masked once per kw-group.
    zmargin = jnp.zeros((N, Cm, _PAD), jnp.float32)
    pad_ref[:, :, :_PAD] = zmargin                  # aligned 128-lane stores
    pad_ref[:, :, _PAD + HW:] = zmargin
    pad_ref[:, :, _PAD:_PAD + HW] = y

    wdw = wdw_ref[...]                                     # (Cm, 9)

    def tap(kh, kw):
        s = (kh - 1) * W + (kw - 1)
        t = kh * 3 + kw
        return pad_ref[:, :, _PAD + s:_PAD + s + HW] * wdw[:, t:t + 1][None, :, :]

    acc_l = tap(0, 0) + tap(1, 0) + tap(2, 0)       # taps reading column w-1
    acc_c = tap(0, 1) + tap(1, 1) + tap(2, 1)       # taps reading column w
    acc_r = tap(0, 2) + tap(1, 2) + tap(2, 2)       # taps reading column w+1

    ww = jax.lax.broadcasted_iota(jnp.int32, (1, 1, HW), 2) % W
    acc = (jnp.where(ww >= 1, acc_l, 0.0)
           + acc_c
           + jnp.where(ww <= W - 2, acc_r, 0.0))
    y = jnp.clip(_bn_nc(acc, gdw_ref[...], bdw_ref[...]), 0.0, 6.0)

    # ---- SE: global avg pool -> FC(+bias) -> ReLU -> FC(+bias) -> sigmoid -> rescale.
    # Fully vectorized: channels stay on the sublane axis, mid sits on lanes.
    pooled = jnp.sum(y, axis=2, keepdims=True) * (1.0 / HW)              # (N, Cm, 1)
    h = jnp.sum(pooled * sw1_ref[...][None, :, :], axis=1, keepdims=True)  # (N, 1, mid)
    h = jnp.maximum(h + sb1_ref[...], 0.0)                               # (N, 1, mid)
    logit = (jnp.sum(h * sw2_ref[...][None, :, :], axis=2, keepdims=True)
             + sb2_ref[...])                                             # (N, Cm, 1)
    y = y * jax.nn.sigmoid(logit)

    # ---- point_wise_1: 1x1 conv + BN (no activation) + residual
    wpw1 = wpw1_ref[...]                                   # (Cout, Cm)
    acc = jnp.zeros((N, Cout, HW), jnp.float32)
    for c in range(Cm):
        acc = acc + y[:, c:c + 1, :] * wpw1[:, c:c + 1][None, :, :]
    out = _bn_nc(acc, gpw1_ref[...], bpw1_ref[...])
    if use_res:
        out = out + x
    o_ref[...] = out                                       # (N, Cout, 256): lane-dense store


@jax.jit
def mbconv_forward(x_nchw, params):
    N, Cin, H, W = x_nchw.shape
    HW = H * W
    Cm = params["dw_w"].shape[0]
    Cout = params["pw1_w"].shape[0]
    mid = params["se_w1"].shape[0]

    x = x_nchw.reshape(N, Cin, HW).astype(jnp.float32)   # free reshape: NCHW -> (N,C,HW)

    f32 = lambda a: a.astype(jnp.float32)
    args = [
        x,
        f32(params["pw_w"]),                              # (Cm, Cin)
        f32(params["pw_g"]).reshape(1, Cm, 1),
        f32(params["pw_b"]).reshape(1, Cm, 1),
        f32(params["dw_w"]).reshape(Cm, 9),               # (Cm, 3, 3) -> (Cm, 9)
        f32(params["dw_g"]).reshape(1, Cm, 1),
        f32(params["dw_b"]).reshape(1, Cm, 1),
        f32(params["se_w1"]).T,                           # (mid, Cm) -> (Cm, mid)
        f32(params["se_b1"]).reshape(1, 1, mid),          # mid on the lane axis
        f32(params["se_w2"]),                             # (Cm, mid)
        f32(params["se_b2"]).reshape(1, Cm, 1),
        f32(params["pw1_w"]),                             # (Cout, Cm)
        f32(params["pw1_g"]).reshape(1, Cout, 1),
        f32(params["pw1_b"]).reshape(1, Cout, 1),
    ]
    kernel = functools.partial(
        _mbconv_kernel, H=H, W=W,
        expand=(Cin != Cm),
        use_res=(Cin == Cout))   # stride == 1 in this configuration

    out = pl.pallas_call(
        kernel,
        grid=(1,),
        in_specs=[_spec(a.shape) for a in args],
        out_specs=_spec((N, Cout, HW)),
        out_shape=jax.ShapeDtypeStruct((N, Cout, HW), jnp.float32),
        scratch_shapes=[pltpu.VMEM((N, Cm, HW + 2 * _PAD), jnp.float32)],
        compiler_params=pltpu.CompilerParams(
            dimension_semantics=("arbitrary",)),
    )(*args)
    # TODO(synk): a production-size MBConv would tile the grid over N / spatial
    # rows (two-pass BN) and mark those axes "parallel" for v7x's two cores;
    # at this toy size one fused call is strictly faster.
    return out.reshape(N, Cout, H, W)   # free reshape back to NCHW


# ---------------------------------------------------------------------------
# Pure-JAX reference (same math, no Pallas) for correctness check
# ---------------------------------------------------------------------------
def mbconv_ref(x_nchw, p):
    x = x_nchw.astype(jnp.float32)
    N, Cin, H, W = x.shape

    def bn(y, g, b):
        m = jnp.mean(y, axis=(0, 2, 3), keepdims=True)
        v = jnp.mean((y - m) ** 2, axis=(0, 2, 3), keepdims=True)
        return (y - m) * jax.lax.rsqrt(v + EPS) * g.reshape(1, -1, 1, 1) + b.reshape(1, -1, 1, 1)

    # point_wise
    y = jnp.einsum("oc,nchw->nohw", p["pw_w"], x)
    y = jnp.clip(bn(y, p["pw_g"], p["pw_b"]), 0.0, 6.0)
    # depthwise 3x3, stride 1, pad 1
    yp = jnp.pad(y, ((0, 0), (0, 0), (1, 1), (1, 1)))
    acc = sum(p["dw_w"][:, kh, kw].reshape(1, -1, 1, 1) * yp[:, :, kh:kh + H, kw:kw + W]
              for kh in range(3) for kw in range(3))
    y = jnp.clip(bn(acc, p["dw_g"], p["dw_b"]), 0.0, 6.0)
    # SE
    pooled = jnp.mean(y, axis=(2, 3))                             # (N, Cm)
    h1 = jnp.maximum(pooled @ p["se_w1"].T + p["se_b1"], 0.0)     # (N, mid)
    s = jax.nn.sigmoid(h1 @ p["se_w2"].T + p["se_b2"])            # (N, Cm)
    y = y * s[:, :, None, None]
    # point_wise_1 + residual
    z = bn(jnp.einsum("oc,nchw->nohw", p["pw1_w"], y), p["pw1_g"], p["pw1_b"])
    return z + x


if __name__ == "__main__":
    # MBConv(input_depth=4, output_depth=4, expansion=6, kernel=3, stride=1,
    #        activation='relu', se=True)
    N, Cin, H, W = 2, 4, 16, 16
    expansion, Cout = 6, 4
    Cm = Cin * expansion                       # 24
    mid = max(Cm // 4, 8)                      # 8  (SEModule reduction)

    key = jax.random.PRNGKey(0)
    ks = jax.random.split(key, 14)
    params = {
        # point_wise conv (Cin -> Cm), weight (Cm, Cin)  [torch: (Cm, Cin, 1, 1)]
        "pw_w": jax.random.normal(ks[0], (Cm, Cin), jnp.float32) * 0.2,
        "pw_g": 1.0 + 0.1 * jax.random.normal(ks[1], (Cm,), jnp.float32),
        "pw_b": 0.1 * jax.random.normal(ks[2], (Cm,), jnp.float32),
        # depthwise 3x3 conv, weight (Cm, 3, 3)  [torch: (Cm, 1, 3, 3)]
        "dw_w": jax.random.normal(ks[3], (Cm, 3, 3), jnp.float32) * 0.2,
        "dw_g": 1.0 + 0.1 * jax.random.normal(ks[4], (Cm,), jnp.float32),
        "dw_b": 0.1 * jax.random.normal(ks[5], (Cm,), jnp.float32),
        # SE: conv1 (Cm -> mid) with bias, conv2 (mid -> Cm) with bias
        "se_w1": jax.random.normal(ks[6], (mid, Cm), jnp.float32) * 0.2,
        "se_b1": 0.1 * jax.random.normal(ks[7], (mid,), jnp.float32),
        "se_w2": jax.random.normal(ks[8], (Cm, mid), jnp.float32) * 0.2,
        "se_b2": 0.1 * jax.random.normal(ks[9], (Cm,), jnp.float32),
        # point_wise_1 conv (Cm -> Cout), weight (Cout, Cm)
        "pw1_w": jax.random.normal(ks[10], (Cout, Cm), jnp.float32) * 0.2,
        "pw1_g": 1.0 + 0.1 * jax.random.normal(ks[11], (Cout,), jnp.float32),
        "pw1_b": 0.1 * jax.random.normal(ks[12], (Cout,), jnp.float32),
    }

    x = jax.random.normal(ks[13], (N, Cin, H, W), jnp.float32)  # NCHW like PyTorch

    out = jax.block_until_ready(mbconv_forward(x, params))
    ref = jax.block_until_ready(mbconv_ref(x, params))

    assert out.shape == (N, Cout, H, W), out.shape
    max_err = float(jnp.max(jnp.abs(out - ref)))
    assert jnp.allclose(out, ref, atol=3e-3, rtol=3e-3), max_err

    print("KERNEL_OK")
</pallas_src>

<mosaic_0001>
module attributes {stable_mosaic.version = 11 : i64} {
  func.func @_mbconv_kernel(%arg0: i32, %arg1: memref<2x4x256xf32, #tpu.memory_space<vmem>>, %arg2: memref<24x4xf32, #tpu.memory_space<vmem>>, %arg3: memref<1x24x1xf32, #tpu.memory_space<vmem>>, %arg4: memref<1x24x1xf32, #tpu.memory_space<vmem>>, %arg5: memref<24x9xf32, #tpu.memory_space<vmem>>, %arg6: memref<1x24x1xf32, #tpu.memory_space<vmem>>, %arg7: memref<1x24x1xf32, #tpu.memory_space<vmem>>, %arg8: memref<24x8xf32, #tpu.memory_space<vmem>>, %arg9: memref<1x1x8xf32, #tpu.memory_space<vmem>>, %arg10: memref<24x8xf32, #tpu.memory_space<vmem>>, %arg11: memref<1x24x1xf32, #tpu.memory_space<vmem>>, %arg12: memref<4x24xf32, #tpu.memory_space<vmem>>, %arg13: memref<1x4x1xf32, #tpu.memory_space<vmem>>, %arg14: memref<1x4x1xf32, #tpu.memory_space<vmem>>, %arg15: memref<2x4x256xf32, #tpu.memory_space<vmem>>, %arg16: memref<2x24x512xf32, #tpu.memory_space<vmem>>) attributes {dimension_semantics = [#tpu.dimension_semantics<arbitrary>], iteration_bounds = array<i64: 1>, scalar_prefetch = 0 : i64, scratch_operands = 1 : i64, tpu.core_type = #tpu.core_type<tc>, window_params = [{pipeline_mode = #tpu.pipeline_mode<synchronous>, transform_indices = @transform_0, window_bounds = array<i64: 2, 4, 256>}, {pipeline_mode = #tpu.pipeline_mode<synchronous>, transform_indices = @transform_1, window_bounds = array<i64: 24, 4>}, {pipeline_mode = #tpu.pipeline_mode<synchronous>, transform_indices = @transform_2, window_bounds = array<i64: 1, 24, 1>}, {pipeline_mode = #tpu.pipeline_mode<synchronous>, transform_indices = @transform_3, window_bounds = array<i64: 1, 24, 1>}, {pipeline_mode = #tpu.pipeline_mode<synchronous>, transform_indices = @transform_4, window_bounds = array<i64: 24, 9>}, {pipeline_mode = #tpu.pipeline_mode<synchronous>, transform_indices = @transform_5, window_bounds = array<i64: 1, 24, 1>}, {pipeline_mode = #tpu.pipeline_mode<synchronous>, transform_indices = @transform_6, window_bounds = array<i64: 1, 24, 1>}, {pipeline_mode = #tpu.pipeline_mode<synchronous>, transform_indices = @transform_7, window_bounds = array<i64: 24, 8>}, {pipeline_mode = #tpu.pipeline_mode<synchronous>, transform_indices = @transform_8, window_bounds = array<i64: 1, 1, 8>}, {pipeline_mode = #tpu.pipeline_mode<synchronous>, transform_indices = @transform_9, window_bounds = array<i64: 24, 8>}, {pipeline_mode = #tpu.pipeline_mode<synchronous>, transform_indices = @transform_10, window_bounds = array<i64: 1, 24, 1>}, {pipeline_mode = #tpu.pipeline_mode<synchronous>, transform_indices = @transform_11, window_bounds = array<i64: 4, 24>}, {pipeline_mode = #tpu.pipeline_mode<synchronous>, transform_indices = @transform_12, window_bounds = array<i64: 1, 4, 1>}, {pipeline_mode = #tpu.pipeline_mode<synchronous>, transform_indices = @transform_13, window_bounds = array<i64: 1, 4, 1>}, {pipeline_mode = #tpu.pipeline_mode<synchronous>, transform_indices = @transform_14, window_bounds = array<i64: 2, 4, 256>}]} {
    %c0 = arith.constant 0 : index
    %c0_0 = arith.constant 0 : index
    %c0_1 = arith.constant 0 : index
    %0 = vector.load %arg1[%c0, %c0_0, %c0_1] : memref<2x4x256xf32, #tpu.memory_space<vmem>>, vector<2x4x256xf32>
    %c0_2 = arith.constant 0 : index
    %c0_3 = arith.constant 0 : index
    %1 = vector.load %arg2[%c0_2, %c0_3] : memref<24x4xf32, #tpu.memory_space<vmem>>, vector<24x4xf32>
    %cst = arith.constant 0.000000e+00 : f32
    %2 = vector.broadcast %cst : f32 to vector<2x24x256xf32>
    %3 = vector.extract_strided_slice %0 {offsets = [0, 0, 0], sizes = [2, 1, 256], strides = [1, 1, 1]} : vector<2x4x256xf32> to vector<2x1x256xf32>
    %4 = vector.extract_strided_slice %1 {offsets = [0, 0], sizes = [24, 1], strides = [1, 1]} : vector<24x4xf32> to vector<24x1xf32>
    %5 = vector.shape_cast %4 : vector<24x1xf32> to vector<1x24x1xf32>
    %6 = vector.broadcast %3 : vector<2x1x256xf32> to vector<2x24x256xf32>
    %7 = vector.broadcast %5 : vector<1x24x1xf32> to vector<2x24x256xf32>
    %8 = arith.mulf %6, %7 : vector<2x24x256xf32>
    %9 = arith.addf %2, %8 : vector<2x24x256xf32>
    %10 = vector.extract_strided_slice %0 {offsets = [0, 1, 0], sizes = [2, 1, 256], strides = [1, 1, 1]} : vector<2x4x256xf32> to vector<2x1x256xf32>
    %11 = vector.extract_strided_slice %1 {offsets = [0, 1], sizes = [24, 1], strides = [1, 1]} : vector<24x4xf32> to vector<24x1xf32>
    %12 = vector.shape_cast %11 : vector<24x1xf32> to vector<1x24x1xf32>
    %13 = vector.broadcast %10 : vector<2x1x256xf32> to vector<2x24x256xf32>
    %14 = vector.broadcast %12 : vector<1x24x1xf32> to vector<2x24x256xf32>
    %15 = arith.mulf %13, %14 : vector<2x24x256xf32>
    %16 = arith.addf %9, %15 : vector<2x24x256xf32>
    %17 = vector.extract_strided_slice %0 {offsets = [0, 2, 0], sizes = [2, 1, 256], strides = [1, 1, 1]} : vector<2x4x256xf32> to vector<2x1x256xf32>
    %18 = vector.extract_strided_slice %1 {offsets = [0, 2], sizes = [24, 1], strides = [1, 1]} : vector<24x4xf32> to vector<24x1xf32>
    %19 = vector.shape_cast %18 : vector<24x1xf32> to vector<1x24x1xf32>
    %20 = vector.broadcast %17 : vector<2x1x256xf32> to vector<2x24x256xf32>
    %21 = vector.broadcast %19 : vector<1x24x1xf32> to vector<2x24x256xf32>
    %22 = arith.mulf %20, %21 : vector<2x24x256xf32>
    %23 = arith.addf %16, %22 : vector<2x24x256xf32>
    %24 = vector.extract_strided_slice %0 {offsets = [0, 3, 0], sizes = [2, 1, 256], strides = [1, 1, 1]} : vector<2x4x256xf32> to vector<2x1x256xf32>
    %25 = vector.extract_strided_slice %1 {offsets = [0, 3], sizes = [24, 1], strides = [1, 1]} : vector<24x4xf32> to vector<24x1xf32>
    %26 = vector.shape_cast %25 : vector<24x1xf32> to vector<1x24x1xf32>
    %27 = vector.broadcast %24 : vector<2x1x256xf32> to vector<2x24x256xf32>
    %28 = vector.broadcast %26 : vector<1x24x1xf32> to vector<2x24x256xf32>
    %29 = arith.mulf %27, %28 : vector<2x24x256xf32>
    %30 = arith.addf %23, %29 : vector<2x24x256xf32>
    %c0_4 = arith.constant 0 : index
    %c0_5 = arith.constant 0 : index
    %c0_6 = arith.constant 0 : index
    %31 = vector.load %arg3[%c0_4, %c0_5, %c0_6] : memref<1x24x1xf32, #tpu.memory_space<vmem>>, vector<1x24x1xf32>
    %c0_7 = arith.constant 0 : index
    %c0_8 = arith.constant 0 : index
    %c0_9 = arith.constant 0 : index
    %32 = vector.load %arg4[%c0_7, %c0_8, %c0_9] : memref<1x24x1xf32, #tpu.memory_space<vmem>>, vector<1x24x1xf32>
    %cst_10 = arith.constant dense<0.000000e+00> : vector<2x24xf32>
    %33 = vector.multi_reduction <add>, %30, %cst_10 [2] : vector<2x24x256xf32> to vector<2x24xf32>
    %34 = vector.shape_cast %33 : vector<2x24xf32> to vector<2x24x1xf32>
    %cst_11 = arith.constant dense<0.000000e+00> : vector<24x1xf32>
    %35 = vector.multi_reduction <add>, %34, %cst_11 [0] : vector<2x24x1xf32> to vector<24x1xf32>
    %36 = vector.shape_cast %35 : vector<24x1xf32> to vector<1x24x1xf32>
    %37 = arith.mulf %30, %30 : vector<2x24x256xf32>
    %cst_12 = arith.constant dense<0.000000e+00> : vector<2x24xf32>
    %38 = vector.multi_reduction <add>, %37, %cst_12 [2] : vector<2x24x256xf32> to vector<2x24xf32>
    %39 = vector.shape_cast %38 : vector<2x24xf32> to vector<2x24x1xf32>
    %cst_13 = arith.constant dense<0.000000e+00> : vector<24x1xf32>
    %40 = vector.multi_reduction <add>, %39, %cst_13 [0] : vector<2x24x1xf32> to vector<24x1xf32>
    %41 = vector.shape_cast %40 : vector<24x1xf32> to vector<1x24x1xf32>
    %cst_14 = arith.constant 0.001953125 : f32
    %42 = vector.broadcast %cst_14 : f32 to vector<1x24x1xf32>
    %43 = arith.mulf %36, %42 : vector<1x24x1xf32>
    %cst_15 = arith.constant 0.001953125 : f32
    %44 = vector.broadcast %cst_15 : f32 to vector<1x24x1xf32>
    %45 = arith.mulf %41, %44 : vector<1x24x1xf32>
    %46 = arith.mulf %43, %43 : vector<1x24x1xf32>
    %47 = arith.subf %45, %46 : vector<1x24x1xf32>
    %48 = vector.broadcast %43 : vector<1x24x1xf32> to vector<2x24x256xf32>
    %49 = arith.subf %30, %48 : vector<2x24x256xf32>
    %cst_16 = arith.constant 9.99999974E-6 : f32
    %50 = vector.broadcast %cst_16 : f32 to vector<1x24x1xf32>
    %51 = arith.addf %47, %50 : vector<1x24x1xf32>
    %52 = math.rsqrt %51 : vector<1x24x1xf32>
    %53 = arith.mulf %52, %31 : vector<1x24x1xf32>
    %54 = vector.broadcast %53 : vector<1x24x1xf32> to vector<2x24x256xf32>
    %55 = arith.mulf %49, %54 : vector<2x24x256xf32>
    %56 = vector.broadcast %32 : vector<1x24x1xf32> to vector<2x24x256xf32>
    %57 = arith.addf %55, %56 : vector<2x24x256xf32>
    %cst_17 = arith.constant 0.000000e+00 : f32
    %cst_18 = arith.constant 6.000000e+00 : f32
    %58 = vector.broadcast %cst_17 : f32 to vector<2x24x256xf32>
    %59 = arith.maximumf %58, %57 : vector<2x24x256xf32>
    %60 = vector.broadcast %cst_18 : f32 to vector<2x24x256xf32>
    %61 = arith.minimumf %60, %59 : vector<2x24x256xf32>
    %cst_19 = arith.constant 0.000000e+00 : f32
    %62 = vector.broadcast %cst_19 : f32 to vector<2x24x128xf32>
    %c0_20 = arith.constant 0 : index
    %c0_21 = arith.constant 0 : index
    %c0_22 = arith.constant 0 : index
    %63 = vector.load %arg16[%c0_20, %c0_21, %c0_22] : memref<2x24x512xf32, #tpu.memory_space<vmem>>, vector<2x24x128xf32>
    tpu.vector_store %arg16[%c0_20, %c0_21, %c0_22], %62 {strides = array<i32>} : memref<2x24x512xf32, #tpu.memory_space<vmem>>, vector<2x24x128xf32>,
    %c0_23 = arith.constant 0 : index
    %c0_24 = arith.constant 0 : index
    %c384 = arith.constant 384 : index
    %64 = vector.load %arg16[%c0_23, %c0_24, %c384] : memref<2x24x512xf32, #tpu.memory_space<vmem>>, vector<2x24x128xf32>
    tpu.vector_store %arg16[%c0_23, %c0_24, %c384], %62 {strides = array<i32>} : memref<2x24x512xf32, #tpu.memory_space<vmem>>, vector<2x24x128xf32>,
    %c0_25 = arith.constant 0 : index
    %c0_26 = arith.constant 0 : index
    %c128 = arith.constant 128 : index
    %65 = vector.load %arg16[%c0_25, %c0_26, %c128] : memref<2x24x512xf32, #tpu.memory_space<vmem>>, vector<2x24x256xf32>
    tpu.vector_store %arg16[%c0_25, %c0_26, %c128], %61 {strides = array<i32>} : memref<2x24x512xf32, #tpu.memory_space<vmem>>, vector<2x24x256xf32>,
    %c0_27 = arith.constant 0 : index
    %c0_28 = arith.constant 0 : index
    %66 = vector.load %arg5[%c0_27, %c0_28] : memref<24x9xf32, #tpu.memory_space<vmem>>, vector<24x9xf32>
    %c0_29 = arith.constant 0 : index
    %c0_30 = arith.constant 0 : index
    %c111 = arith.constant 111 : index
    %67 = vector.load %arg16[%c0_29, %c0_30, %c111] : memref<2x24x512xf32, #tpu.memory_space<vmem>>, vector<2x24x256xf32>
    %68 = vector.extract_strided_slice %66 {offsets = [0, 0], sizes = [24, 1], strides = [1, 1]} : vector<24x9xf32> to vector<24x1xf32>
    %69 = vector.shape_cast %68 : vector<24x1xf32> to vector<1x24x1xf32>
    %70 = vector.broadcast %69 : vector<1x24x1xf32> to vector<2x24x256xf32>
    %71 = arith.mulf %67, %70 : vector<2x24x256xf32>
    %c0_31 = arith.constant 0 : index
    %c0_32 = arith.constant 0 : index
    %c127 = arith.constant 127 : index
    %72 = vector.load %arg16[%c0_31, %c0_32, %c127] : memref<2x24x512xf32, #tpu.memory_space<vmem>>, vector<2x24x256xf32>
    %73 = vector.extract_strided_slice %66 {offsets = [0, 3], sizes = [24, 1], strides = [1, 1]} : vector<24x9xf32> to vector<24x1xf32>
    %74 = vector.shape_cast %73 : vector<24x1xf32> to vector<1x24x1xf32>
    %75 = vector.broadcast %74 : vector<1x24x1xf32> to vector<2x24x256xf32>
    %76 = arith.mulf %72, %75 : vector<2x24x256xf32>
    %77 = arith.addf %71, %76 : vector<2x24x256xf32>
    %c0_33 = arith.constant 0 : index
    %c0_34 = arith.constant 0 : index
    %c143 = arith.constant 143 : index
    %78 = vector.load %arg16[%c0_33, %c0_34, %c143] : memref<2x24x512xf32, #tpu.memory_space<vmem>>, vector<2x24x256xf32>
    %79 = vector.extract_strided_slice %66 {offsets = [0, 6], sizes = [24, 1], strides = [1, 1]} : vector<24x9xf32> to vector<24x1xf32>
    %80 = vector.shape_cast %79 : vector<24x1xf32> to vector<1x24x1xf32>
    %81 = vector.broadcast %80 : vector<1x24x1xf32> to vector<2x24x256xf32>
    %82 = arith.mulf %78, %81 : vector<2x24x256xf32>
    %83 = arith.addf %77, %82 : vector<2x24x256xf32>
    %c0_35 = arith.constant 0 : index
    %c0_36 = arith.constant 0 : index
    %c112 = arith.constant 112 : index
    %84 = vector.load %arg16[%c0_35, %c0_36, %c112] : memref<2x24x512xf32, #tpu.memory_space<vmem>>, vector<2x24x256xf32>
    %85 = vector.extract_strided_slice %66 {offsets = [0, 1], sizes = [24, 1], strides = [1, 1]} : vector<24x9xf32> to vector<24x1xf32>
    %86 = vector.shape_cast %85 : vector<24x1xf32> to vector<1x24x1xf32>
    %87 = vector.broadcast %86 : vector<1x24x1xf32> to vector<2x24x256xf32>
    %88 = arith.mulf %84, %87 : vector<2x24x256xf32>
    %c0_37 = arith.constant 0 : index
    %c0_38 = arith.constant 0 : index
    %c128_39 = arith.constant 128 : index
    %89 = vector.load %arg16[%c0_37, %c0_38, %c128_39] : memref<2x24x512xf32, #tpu.memory_space<vmem>>, vector<2x24x256xf32>
    %90 = vector.extract_strided_slice %66 {offsets = [0, 4], sizes = [24, 1], strides = [1, 1]} : vector<24x9xf32> to vector<24x1xf32>
    %91 = vector.shape_cast %90 : vector<24x1xf32> to vector<1x24x1xf32>
    %92 = vector.broadcast %91 : vector<1x24x1xf32> to vector<2x24x256xf32>
    %93 = arith.mulf %89, %92 : vector<2x24x256xf32>
    %94 = arith.addf %88, %93 : vector<2x24x256xf32>
    %c0_40 = arith.constant 0 : index
    %c0_41 = arith.constant 0 : index
    %c144 = arith.constant 144 : index
    %95 = vector.load %arg16[%c0_40, %c0_41, %c144] : memref<2x24x512xf32, #tpu.memory_space<vmem>>, vector<2x24x256xf32>
    %96 = vector.extract_strided_slice %66 {offsets = [0, 7], sizes = [24, 1], strides = [1, 1]} : vector<24x9xf32> to vector<24x1xf32>
    %97 = vector.shape_cast %96 : vector<24x1xf32> to vector<1x24x1xf32>
    %98 = vector.broadcast %97 : vector<1x24x1xf32> to vector<2x24x256xf32>
    %99 = arith.mulf %95, %98 : vector<2x24x256xf32>
    %100 = arith.addf %94, %99 : vector<2x24x256xf32>
    %c0_42 = arith.constant 0 : index
    %c0_43 = arith.constant 0 : index
    %c113 = arith.constant 113 : index
    %101 = vector.load %arg16[%c0_42, %c0_43, %c113] : memref<2x24x512xf32, #tpu.memory_space<vmem>>, vector<2x24x256xf32>
    %102 = vector.extract_strided_slice %66 {offsets = [0, 2], sizes = [24, 1], strides = [1, 1]} : vector<24x9xf32> to vector<24x1xf32>
    %103 = vector.shape_cast %102 : vector<24x1xf32> to vector<1x24x1xf32>
    %104 = vector.broadcast %103 : vector<1x24x1xf32> to vector<2x24x256xf32>
    %105 = arith.mulf %101, %104 : vector<2x24x256xf32>
    %c0_44 = arith.constant 0 : index
    %c0_45 = arith.constant 0 : index
    %c129 = arith.constant 129 : index
    %106 = vector.load %arg16[%c0_44, %c0_45, %c129] : memref<2x24x512xf32, #tpu.memory_space<vmem>>, vector<2x24x256xf32>
    %107 = vector.extract_strided_slice %66 {offsets = [0, 5], sizes = [24, 1], strides = [1, 1]} : vector<24x9xf32> to vector<24x1xf32>
    %108 = vector.shape_cast %107 : vector<24x1xf32> to vector<1x24x1xf32>
    %109 = vector.broadcast %108 : vector<1x24x1xf32> to vector<2x24x256xf32>
    %110 = arith.mulf %106, %109 : vector<2x24x256xf32>
    %111 = arith.addf %105, %110 : vector<2x24x256xf32>
    %c0_46 = arith.constant 0 : index
    %c0_47 = arith.constant 0 : index
    %c145 = arith.constant 145 : index
    %112 = vector.load %arg16[%c0_46, %c0_47, %c145] : memref<2x24x512xf32, #tpu.memory_space<vmem>>, vector<2x24x256xf32>
    %113 = vector.extract_strided_slice %66 {offsets = [0, 8], sizes = [24, 1], strides = [1, 1]} : vector<24x9xf32> to vector<24x1xf32>
    %114 = vector.shape_cast %113 : vector<24x1xf32> to vector<1x24x1xf32>
    %115 = vector.broadcast %114 : vector<1x24x1xf32> to vector<2x24x256xf32>
    %116 = arith.mulf %112, %115 : vector<2x24x256xf32>
    %117 = arith.addf %111, %116 : vector<2x24x256xf32>
    %118 = tpu.iota {dimensions = array<i32: 2>} : vector<1x1x256xi32>
    %c16_i32 = arith.constant 16 : i32
    %c0_i32 = arith.constant 0 : i32
    %119 = arith.cmpi eq, %c16_i32, %c0_i32 : i32
    %c1_i32 = arith.constant 1 : i32
    %120 = arith.select %119, %c1_i32, %c16_i32 : i32
    %121 = vector.broadcast %120 : i32 to vector<1x1x256xi32>
    %122 = arith.remsi %118, %121 : vector<1x1x256xi32>
    %c0_i32_48 = arith.constant 0 : i32
    %123 = vector.broadcast %c0_i32_48 : i32 to vector<1x1x256xi32>
    %124 = arith.cmpi ne, %122, %123 : vector<1x1x256xi32>
    %c0_i32_49 = arith.constant 0 : i32
    %125 = vector.broadcast %c0_i32_49 : i32 to vector<1x1x256xi32>
    %126 = arith.cmpi slt, %122, %125 : vector<1x1x256xi32>
    %c0_i32_50 = arith.constant 0 : i32
    %127 = arith.cmpi slt, %120, %c0_i32_50 : i32
    %128 = vector.broadcast %127 : i1 to vector<1x1x256xi1>
    %129 = vector.broadcast %128 : vector<1x1x256xi1> to vector<1x1x256xi1>
    %130 = arith.xori %126, %129 : vector<1x1x256xi1>
    %131 = arith.andi %130, %124 : vector<1x1x256xi1>
    %132 = vector.broadcast %120 : i32 to vector<1x1x256xi32>
    %133 = arith.addi %122, %132 : vector<1x1x256xi32>
    %134 = arith.select %131, %133, %122 : vector<1x1x256xi1>, vector<1x1x256xi32>
    %c1_i32_51 = arith.constant 1 : i32
    %135 = vector.broadcast %c1_i32_51 : i32 to vector<1x1x256xi32>
    %136 = arith.cmpi sge, %134, %135 : vector<1x1x256xi32>
    %cst_52 = arith.constant 0.000000e+00 : f32
    %137 = vector.shape_cast %136 : vector<1x1x256xi1> to vector<1x1x256xi1>
    %138 = vector.broadcast %137 : vector<1x1x256xi1> to vector<2x24x256xi1>
    %139 = vector.broadcast %cst_52 : f32 to vector<2x24x256xf32>
    %140 = arith.select %138, %83, %139 : vector<2x24x256xi1>, vector<2x24x256xf32>
    %141 = arith.addf %140, %100 : vector<2x24x256xf32>
    %c14_i32 = arith.constant 14 : i32
    %142 = vector.broadcast %c14_i32 : i32 to vector<1x1x256xi32>
    %143 = arith.cmpi sle, %134, %142 : vector<1x1x256xi32>
    %cst_53 = arith.constant 0.000000e+00 : f32
    %144 = vector.shape_cast %143 : vector<1x1x256xi1> to vector<1x1x256xi1>
    %145 = vector.broadcast %144 : vector<1x1x256xi1> to vector<2x24x256xi1>
    %146 = vector.broadcast %cst_53 : f32 to vector<2x24x256xf32>
    %147 = arith.select %145, %117, %146 : vector<2x24x256xi1>, vector<2x24x256xf32>
    %148 = arith.addf %141, %147 : vector<2x24x256xf32>
    %c0_54 = arith.constant 0 : index
    %c0_55 = arith.constant 0 : index
    %c0_56 = arith.constant 0 : index
    %149 = vector.load %arg6[%c0_54, %c0_55, %c0_56] : memref<1x24x1xf32, #tpu.memory_space<vmem>>, vector<1x24x1xf32>
    %c0_57 = arith.constant 0 : index
    %c0_58 = arith.constant 0 : index
    %c0_59 = arith.constant 0 : index
    %150 = vector.load %arg7[%c0_57, %c0_58, %c0_59] : memref<1x24x1xf32, #tpu.memory_space<vmem>>, vector<1x24x1xf32>
    %cst_60 = arith.constant dense<0.000000e+00> : vector<2x24xf32>
    %151 = vector.multi_reduction <add>, %148, %cst_60 [2] : vector<2x24x256xf32> to vector<2x24xf32>
    %152 = vector.shape_cast %151 : vector<2x24xf32> to vector<2x24x1xf32>
    %cst_61 = arith.constant dense<0.000000e+00> : vector<24x1xf32>
    %153 = vector.multi_reduction <add>, %152, %cst_61 [0] : vector<2x24x1xf32> to vector<24x1xf32>
    %154 = vector.shape_cast %153 : vector<24x1xf32> to vector<1x24x1xf32>
    %155 = arith.mulf %148, %148 : vector<2x24x256xf32>
    %cst_62 = arith.constant dense<0.000000e+00> : vector<2x24xf32>
    %156 = vector.multi_reduction <add>, %155, %cst_62 [2] : vector<2x24x256xf32> to vector<2x24xf32>
    %157 = vector.shape_cast %156 : vector<2x24xf32> to vector<2x24x1xf32>
    %cst_63 = arith.constant dense<0.000000e+00> : vector<24x1xf32>
    %158 = vector.multi_reduction <add>, %157, %cst_63 [0] : vector<2x24x1xf32> to vector<24x1xf32>
    %159 = vector.shape_cast %158 : vector<24x1xf32> to vector<1x24x1xf32>
    %cst_64 = arith.constant 0.001953125 : f32
    %160 = vector.broadcast %cst_64 : f32 to vector<1x24x1xf32>
    %161 = arith.mulf %154, %160 : vector<1x24x1xf32>
    %cst_65 = arith.constant 0.001953125 : f32
    %162 = vector.broadcast %cst_65 : f32 to vector<1x24x1xf32>
    %163 = arith.mulf %159, %162 : vector<1x24x1xf32>
    %164 = arith.mulf %161, %161 : vector<1x24x1xf32>
    %165 = arith.subf %163, %164 : vector<1x24x1xf32>
    %166 = vector.broadcast %161 : vector<1x24x1xf32> to vector<2x24x256xf32>
    %167 = arith.subf %148, %166 : vector<2x24x256xf32>
    %cst_66 = arith.constant 9.99999974E-6 : f32
    %168 = vector.broadcast %cst_66 : f32 to vector<1x24x1xf32>
    %169 = arith.addf %165, %168 : vector<1x24x1xf32>
    %170 = math.rsqrt %169 : vector<1x24x1xf32>
    %171 = arith.mulf %170, %149 : vector<1x24x1xf32>
    %172 = vector.broadcast %171 : vector<1x24x1xf32> to vector<2x24x256xf32>
    %173 = arith.mulf %167, %172 : vector<2x24x256xf32>
    %174 = vector.broadcast %150 : vector<1x24x1xf32> to vector<2x24x256xf32>
    %175 = arith.addf %173, %174 : vector<2x24x256xf32>
    %cst_67 = arith.constant 0.000000e+00 : f32
    %cst_68 = arith.constant 6.000000e+00 : f32
    %176 = vector.broadcast %cst_67 : f32 to vector<2x24x256xf32>
    %177 = arith.maximumf %176, %175 : vector<2x24x256xf32>
    %178 = vector.broadcast %cst_68 : f32 to vector<2x24x256xf32>
    %179 = arith.minimumf %178, %177 : vector<2x24x256xf32>
    %cst_69 = arith.constant dense<0.000000e+00> : vector<2x24xf32>
    %180 = vector.multi_reduction <add>, %179, %cst_69 [2] : vector<2x24x256xf32> to vector<2x24xf32>
    %181 = vector.shape_cast %180 : vector<2x24xf32> to vector<2x24x1xf32>
    %cst_70 = arith.constant 3.906250e-03 : f32
    %182 = vector.broadcast %cst_70 : f32 to vector<2x24x1xf32>
    %183 = arith.mulf %181, %182 : vector<2x24x1xf32>
    %c0_71 = arith.constant 0 : index
    %c0_72 = arith.constant 0 : index
    %184 = vector.load %arg8[%c0_71, %c0_72] : memref<24x8xf32, #tpu.memory_space<vmem>>, vector<24x8xf32>
    %185 = vector.shape_cast %184 : vector<24x8xf32> to vector<1x24x8xf32>
    %186 = vector.broadcast %183 : vector<2x24x1xf32> to vector<2x24x8xf32>
    %187 = vector.broadcast %185 : vector<1x24x8xf32> to vector<2x24x8xf32>
    %188 = arith.mulf %186, %187 : vector<2x24x8xf32>
    %cst_73 = arith.constant dense<0.000000e+00> : vector<2x8xf32>
    %189 = vector.multi_reduction <add>, %188, %cst_73 [1] : vector<2x24x8xf32> to vector<2x8xf32>
    %190 = vector.shape_cast %189 : vector<2x8xf32> to vector<2x1x8xf32>
    %c0_74 = arith.constant 0 : index
    %c0_75 = arith.constant 0 : index
    %c0_76 = arith.constant 0 : index
    %191 = vector.load %arg9[%c0_74, %c0_75, %c0_76] : memref<1x1x8xf32, #tpu.memory_space<vmem>>, vector<1x1x8xf32>
    %192 = vector.broadcast %191 : vector<1x1x8xf32> to vector<2x1x8xf32>
    %193 = arith.addf %190, %192 : vector<2x1x8xf32>
    %cst_77 = arith.constant 0.000000e+00 : f32
    %194 = vector.broadcast %cst_77 : f32 to vector<2x1x8xf32>
    %195 = arith.maximumf %193, %194 : vector<2x1x8xf32>
    %c0_78 = arith.constant 0 : index
    %c0_79 = arith.constant 0 : index
    %196 = vector.load %arg10[%c0_78, %c0_79] : memref<24x8xf32, #tpu.memory_space<vmem>>, vector<24x8xf32>
    %197 = vector.shape_cast %196 : vector<24x8xf32> to vector<1x24x8xf32>
    %198 = vector.broadcast %195 : vector<2x1x8xf32> to vector<2x24x8xf32>
    %199 = vector.broadcast %197 : vector<1x24x8xf32> to vector<2x24x8xf32>
    %200 = arith.mulf %198, %199 : vector<2x24x8xf32>
    %cst_80 = arith.constant dense<0.000000e+00> : vector<2x24xf32>
    %201 = vector.multi_reduction <add>, %200, %cst_80 [2] : vector<2x24x8xf32> to vector<2x24xf32>
    %202 = vector.shape_cast %201 : vector<2x24xf32> to vector<2x24x1xf32>
    %c0_81 = arith.constant 0 : index
    %c0_82 = arith.constant 0 : index
    %c0_83 = arith.constant 0 : index
    %203 = vector.load %arg11[%c0_81, %c0_82, %c0_83] : memref<1x24x1xf32, #tpu.memory_space<vmem>>, vector<1x24x1xf32>
    %204 = vector.broadcast %203 : vector<1x24x1xf32> to vector<2x24x1xf32>
    %205 = arith.addf %202, %204 : vector<2x24x1xf32>
    %206 = arith.negf %205 : vector<2x24x1xf32>
    %207 = math.exp %206 : vector<2x24x1xf32>
    %cst_84 = arith.constant 1.000000e+00 : f32
    %208 = vector.broadcast %cst_84 : f32 to vector<2x24x1xf32>
    %209 = arith.addf %208, %207 : vector<2x24x1xf32>
    %210 = arith.divf %208, %209 : vector<2x24x1xf32>
    %211 = vector.broadcast %210 : vector<2x24x1xf32> to vector<2x24x256xf32>
    %212 = arith.mulf %179, %211 : vector<2x24x256xf32>
    %c0_85 = arith.constant 0 : index
    %c0_86 = arith.constant 0 : index
    %213 = vector.load %arg12[%c0_85, %c0_86] : memref<4x24xf32, #tpu.memory_space<vmem>>, vector<4x24xf32>
    %cst_87 = arith.constant 0.000000e+00 : f32
    %214 = vector.broadcast %cst_87 : f32 to vector<2x4x256xf32>
    %215 = vector.extract_strided_slice %212 {offsets = [0, 0, 0], sizes = [2, 1, 256], strides = [1, 1, 1]} : vector<2x24x256xf32> to vector<2x1x256xf32>
    %216 = vector.extract_strided_slice %213 {offsets = [0, 0], sizes = [4, 1], strides = [1, 1]} : vector<4x24xf32> to vector<4x1xf32>
    %217 = vector.shape_cast %216 : vector<4x1xf32> to vector<1x4x1xf32>
    %218 = vector.broadcast %215 : vector<2x1x256xf32> to vector<2x4x256xf32>
    %219 = vector.broadcast %217 : vector<1x4x1xf32> to vector<2x4x256xf32>
    %220 = arith.mulf %218, %219 : vector<2x4x256xf32>
    %221 = arith.addf %214, %220 : vector<2x4x256xf32>
    %222 = vector.extract_strided_slice %212 {offsets = [0, 1, 0], sizes = [2, 1, 256], strides = [1, 1, 1]} : vector<2x24x256xf32> to vector<2x1x256xf32>
    %223 = vector.extract_strided_slice %213 {offsets = [0, 1], sizes = [4, 1], strides = [1, 1]} : vector<4x24xf32> to vector<4x1xf32>
    %224 = vector.shape_cast %223 : vector<4x1xf32> to vector<1x4x1xf32>
    %225 = vector.broadcast %222 : vector<2x1x256xf32> to vector<2x4x256xf32>
    %226 = vector.broadcast %224 : vector<1x4x1xf32> to vector<2x4x256xf32>
    %227 = arith.mulf %225, %226 : vector<2x4x256xf32>
    %228 = arith.addf %221, %227 : vector<2x4x256xf32>
    %229 = vector.extract_strided_slice %212 {offsets = [0, 2, 0], sizes = [2, 1, 256], strides = [1, 1, 1]} : vector<2x24x256xf32> to vector<2x1x256xf32>
    %230 = vector.extract_strided_slice %213 {offsets = [0, 2], sizes = [4, 1], strides = [1, 1]} : vector<4x24xf32> to vector<4x1xf32>
    %231 = vector.shape_cast %230 : vector<4x1xf32> to vector<1x4x1xf32>
    %232 = vector.broadcast %229 : vector<2x1x256xf32> to vector<2x4x256xf32>
    %233 = vector.broadcast %231 : vector<1x4x1xf32> to vector<2x4x256xf32>
    %234 = arith.mulf %232, %233 : vector<2x4x256xf32>
    %235 = arith.addf %228, %234 : vector<2x4x256xf32>
    %236 = vector.extract_strided_slice %212 {offsets = [0, 3, 0], sizes = [2, 1, 256], strides = [1, 1, 1]} : vector<2x24x256xf32> to vector<2x1x256xf32>
    %237 = vector.extract_strided_slice %213 {offsets = [0, 3], sizes = [4, 1], strides = [1, 1]} : vector<4x24xf32> to vector<4x1xf32>
    %238 = vector.shape_cast %237 : vector<4x1xf32> to vector<1x4x1xf32>
    %239 = vector.broadcast %236 : vector<2x1x256xf32> to vector<2x4x256xf32>
    %240 = vector.broadcast %238 : vector<1x4x1xf32> to vector<2x4x256xf32>
    %241 = arith.mulf %239, %240 : vector<2x4x256xf32>
    %242 = arith.addf %235, %241 : vector<2x4x256xf32>
    %243 = vector.extract_strided_slice %212 {offsets = [0, 4, 0], sizes = [2, 1, 256], strides = [1, 1, 1]} : vector<2x24x256xf32> to vector<2x1x256xf32>
    %244 = vector.extract_strided_slice %213 {offsets = [0, 4], sizes = [4, 1], strides = [1, 1]} : vector<4x24xf32> to vector<4x1xf32>
    %245 = vector.shape_cast %244 : vector<4x1xf32> to vector<1x4x1xf32>
    %246 = vector.broadcast %243 : vector<2x1x256xf32> to vector<2x4x256xf32>
    %247 = vector.broadcast %245 : vector<1x4x1xf32> to vector<2x4x256xf32>
    %248 = arith.mulf %246, %247 : vector<2x4x256xf32>
    %249 = arith.addf %242, %248 : vector<2x4x256xf32>
    %250 = vector.extract_strided_slice %212 {offsets = [0, 5, 0], sizes = [2, 1, 256], strides = [1, 1, 1]} : vector<2x24x256xf32> to vector<2x1x256xf32>
    %251 = vector.extract_strided_slice %213 {offsets = [0, 5], sizes = [4, 1], strides = [1, 1]} : vector<4x24xf32> to vector<4x1xf32>
    %252 = vector.shape_cast %251 : vector<4x1xf32> to vector<1x4x1xf32>
    %253 = vector.broadcast %250 : vector<2x1x256xf32> to vector<2x4x256xf32>
    %254 = vector.broadcast %252 : vector<1x4x1xf32> to vector<2x4x256xf32>
    %255 = arith.mulf %253, %254 : vector<2x4x256xf32>
    %256 = arith.addf %249, %255 : vector<2x4x256xf32>
    %257 = vector.extract_strided_slice %212 {offsets = [0, 6, 0], sizes = [2, 1, 256], strides = [1, 1, 1]} : vector<2x24x256xf32> to vector<2x1x256xf32>
    %258 = vector.extract_strided_slice %213 {offsets = [0, 6], sizes = [4, 1], strides = [1, 1]} : vector<4x24xf32> to vector<4x1xf32>
    %259 = vector.shape_cast %258 : vector<4x1xf32> to vector<1x4x1xf32>
    %260 = vector.broadcast %257 : vector<2x1x256xf32> to vector<2x4x256xf32>
    %261 = vector.broadcast %259 : vector<1x4x1xf32> to vector<2x4x256xf32>
    %262 = arith.mulf %260, %261 : vector<2x4x256xf32>
    %263 = arith.addf %256, %262 : vector<2x4x256xf32>
    %264 = vector.extract_strided_slice %212 {offsets = [0, 7, 0], sizes = [2, 1, 256], strides = [1, 1, 1]} : vector<2x24x256xf32> to vector<2x1x256xf32>
    %265 = vector.extract_strided_slice %213 {offsets = [0, 7], sizes = [4, 1], strides = [1, 1]} : vector<4x24xf32> to vector<4x1xf32>
    %266 = vector.shape_cast %265 : vector<4x1xf32> to vector<1x4x1xf32>
    %267 = vector.broadcast %264 : vector<2x1x256xf32> to vector<2x4x256xf32>
    %268 = vector.broadcast %266 : vector<1x4x1xf32> to vector<2x4x256xf32>
    %269 = arith.mulf %267, %268 : vector<2x4x256xf32>
    %270 = arith.addf %263, %269 : vector<2x4x256xf32>
    %271 = vector.extract_strided_slice %212 {offsets = [0, 8, 0], sizes = [2, 1, 256], strides = [1, 1, 1]} : vector<2x24x256xf32> to vector<2x1x256xf32>
    %272 = vector.extract_strided_slice %213 {offsets = [0, 8], sizes = [4, 1], strides = [1, 1]} : vector<4x24xf32> to vector<4x1xf32>
    %273 = vector.shape_cast %272 : vector<4x1xf32> to vector<1x4x1xf32>
    %274 = vector.broadcast %271 : vector<2x1x256xf32> to vector<2x4x256xf32>
    %275 = vector.broadcast %273 : vector<1x4x1xf32> to vector<2x4x256xf32>
    %276 = arith.mulf %274, %275 : vector<2x4x256xf32>
    %277 = arith.addf %270, %276 : vector<2x4x256xf32>
    %278 = vector.extract_strided_slice %212 {offsets = [0, 9, 0], sizes = [2, 1, 256], strides = [1, 1, 1]} : vector<2x24x256xf32> to vector<2x1x256xf32>
    %279 = vector.extract_strided_slice %213 {offsets = [0, 9], sizes = [4, 1], strides = [1, 1]} : vector<4x24xf32> to vector<4x1xf32>
    %280 = vector.shape_cast %279 : vector<4x1xf32> to vector<1x4x1xf32>
    %281 = vector.broadcast %278 : vector<2x1x256xf32> to vector<2x4x256xf32>
    %282 = vector.broadcast %280 : vector<1x4x1xf32> to vector<2x4x256xf32>
    %283 = arith.mulf %281, %282 : vector<2x4x256xf32>
    %284 = arith.addf %277, %283 : vector<2x4x256xf32>
    %285 = vector.extract_strided_slice %212 {offsets = [0, 10, 0], sizes = [2, 1, 256], strides = [1, 1, 1]} : vector<2x24x256xf32> to vector<2x1x256xf32>
    %286 = vector.extract_strided_slice %213 {offsets = [0, 10], sizes = [4, 1], strides = [1, 1]} : vector<4x24xf32> to vector<4x1xf32>
    %287 = vector.shape_cast %286 : vector<4x1xf32> to vector<1x4x1xf32>
    %288 = vector.broadcast %285 : vector<2x1x256xf32> to vector<2x4x256xf32>
    %289 = vector.broadcast %287 : vector<1x4x1xf32> to vector<2x4x256xf32>
    %290 = arith.mulf %288, %289 : vector<2x4x256xf32>
    %291 = arith.addf %284, %290 : vector<2x4x256xf32>
    %292 = vector.extract_strided_slice %212 {offsets = [0, 11, 0], sizes = [2, 1, 256], strides = [1, 1, 1]} : vector<2x24x256xf32> to vector<2x1x256xf32>
    %293 = vector.extract_strided_slice %213 {offsets = [0, 11], sizes = [4, 1], strides = [1, 1]} : vector<4x24xf32> to vector<4x1xf32>
    %294 = vector.shape_cast %293 : vector<4x1xf32> to vector<1x4x1xf32>
    %295 = vector.broadcast %292 : vector<2x1x256xf32> to vector<2x4x256xf32>
    %296 = vector.broadcast %294 : vector<1x4x1xf32> to vector<2x4x256xf32>
    %297 = arith.mulf %295, %296 : vector<2x4x256xf32>
    %298 = arith.addf %291, %297 : vector<2x4x256xf32>
    %299 = vector.extract_strided_slice %212 {offsets = [0, 12, 0], sizes = [2, 1, 256], strides = [1, 1, 1]} : vector<2x24x256xf32> to vector<2x1x256xf32>
    %300 = vector.extract_strided_slice %213 {offsets = [0, 12], sizes = [4, 1], strides = [1, 1]} : vector<4x24xf32> to vector<4x1xf32>
    %301 = vector.shape_cast %300 : vector<4x1xf32> to vector<1x4x1xf32>
    %302 = vector.broadcast %299 : vector<2x1x256xf32> to vector<2x4x256xf32>
    %303 = vector.broadcast %301 : vector<1x4x1xf32> to vector<2x4x256xf32>
    %304 = arith.mulf %302, %303 : vector<2x4x256xf32>
    %305 = arith.addf %298, %304 : vector<2x4x256xf32>
    %306 = vector.extract_strided_slice %212 {offsets = [0, 13, 0], sizes = [2, 1, 256], strides = [1, 1, 1]} : vector<2x24x256xf32> to vector<2x1x256xf32>
    %307 = vector.extract_strided_slice %213 {offsets = [0, 13], sizes = [4, 1], strides = [1, 1]} : vector<4x24xf32> to vector<4x1xf32>
    %308 = vector.shape_cast %307 : vector<4x1xf32> to vector<1x4x1xf32>
    %309 = vector.broadcast %306 : vector<2x1x256xf32> to vector<2x4x256xf32>
    %310 = vector.broadcast %308 : vector<1x4x1xf32> to vector<2x4x256xf32>
    %311 = arith.mulf %309, %310 : vector<2x4x256xf32>
    %312 = arith.addf %305, %311 : vector<2x4x256xf32>
    %313 = vector.extract_strided_slice %212 {offsets = [0, 14, 0], sizes = [2, 1, 256], strides = [1, 1, 1]} : vector<2x24x256xf32> to vector<2x1x256xf32>
    %314 = vector.extract_strided_slice %213 {offsets = [0, 14], sizes = [4, 1], strides = [1, 1]} : vector<4x24xf32> to vector<4x1xf32>
    %315 = vector.shape_cast %314 : vector<4x1xf32> to vector<1x4x1xf32>
    %316 = vector.broadcast %313 : vector<2x1x256xf32> to vector<2x4x256xf32>
    %317 = vector.broadcast %315 : vector<1x4x1xf32> to vector<2x4x256xf32>
    %318 = arith.mulf %316, %317 : vector<2x4x256xf32>
    %319 = arith.addf %312, %318 : vector<2x4x256xf32>
    %320 = vector.extract_strided_slice %212 {offsets = [0, 15, 0], sizes = [2, 1, 256], strides = [1, 1, 1]} : vector<2x24x256xf32> to vector<2x1x256xf32>
    %321 = vector.extract_strided_slice %213 {offsets = [0, 15], sizes = [4, 1], strides = [1, 1]} : vector<4x24xf32> to vector<4x1xf32>
    %322 = vector.shape_cast %321 : vector<4x1xf32> to vector<1x4x1xf32>
    %323 = vector.broadcast %320 : vector<2x1x256xf32> to vector<2x4x256xf32>
    %324 = vector.broadcast %322 : vector<1x4x1xf32> to vector<2x4x256xf32>
    %325 = arith.mulf %323, %324 : vector<2x4x256xf32>
    %326 = arith.addf %319, %325 : vector<2x4x256xf32>
    %327 = vector.extract_strided_slice %212 {offsets = [0, 16, 0], sizes = [2, 1, 256], strides = [1, 1, 1]} : vector<2x24x256xf32> to vector<2x1x256xf32>
    %328 = vector.extract_strided_slice %213 {offsets = [0, 16], sizes = [4, 1], strides = [1, 1]} : vector<4x24xf32> to vector<4x1xf32>
    %329 = vector.shape_cast %328 : vector<4x1xf32> to vector<1x4x1xf32>
    %330 = vector.broadcast %327 : vector<2x1x256xf32> to vector<2x4x256xf32>
    %331 = vector.broadcast %329 : vector<1x4x1xf32> to vector<2x4x256xf32>
    %332 = arith.mulf %330, %331 : vector<2x4x256xf32>
    %333 = arith.addf %326, %332 : vector<2x4x256xf32>
    %334 = vector.extract_strided_slice %212 {offsets = [0, 17, 0], sizes = [2, 1, 256], strides = [1, 1, 1]} : vector<2x24x256xf32> to vector<2x1x256xf32>
    %335 = vector.extract_strided_slice %213 {offsets = [0, 17], sizes = [4, 1], strides = [1, 1]} : vector<4x24xf32> to vector<4x1xf32>
    %336 = vector.shape_cast %335 : vector<4x1xf32> to vector<1x4x1xf32>
    %337 = vector.broadcast %334 : vector<2x1x256xf32> to vector<2x4x256xf32>
    %338 = vector.broadcast %336 : vector<1x4x1xf32> to vector<2x4x256xf32>
    %339 = arith.mulf %337, %338 : vector<2x4x256xf32>
    %340 = arith.addf %333, %339 : vector<2x4x256xf32>
    %341 = vector.extract_strided_slice %212 {offsets = [0, 18, 0], sizes = [2, 1, 256], strides = [1, 1, 1]} : vector<2x24x256xf32> to vector<2x1x256xf32>
    %342 = vector.extract_strided_slice %213 {offsets = [0, 18], sizes = [4, 1], strides = [1, 1]} : vector<4x24xf32> to vector<4x1xf32>
    %343 = vector.shape_cast %342 : vector<4x1xf32> to vector<1x4x1xf32>
    %344 = vector.broadcast %341 : vector<2x1x256xf32> to vector<2x4x256xf32>
    %345 = vector.broadcast %343 : vector<1x4x1xf32> to vector<2x4x256xf32>
    %346 = arith.mulf %344, %345 : vector<2x4x256xf32>
    %347 = arith.addf %340, %346 : vector<2x4x256xf32>
    %348 = vector.extract_strided_slice %212 {offsets = [0, 19, 0], sizes = [2, 1, 256], strides = [1, 1, 1]} : vector<2x24x256xf32> to vector<2x1x256xf32>
    %349 = vector.extract_strided_slice %213 {offsets = [0, 19], sizes = [4, 1], strides = [1, 1]} : vector<4x24xf32> to vector<4x1xf32>
    %350 = vector.shape_cast %349 : vector<4x1xf32> to vector<1x4x1xf32>
    %351 = vector.broadcast %348 : vector<2x1x256xf32> to vector<2x4x256xf32>
    %352 = vector.broadcast %350 : vector<1x4x1xf32> to vector<2x4x256xf32>
    %353 = arith.mulf %351, %352 : vector<2x4x256xf32>
    %354 = arith.addf %347, %353 : vector<2x4x256xf32>
    %355 = vector.extract_strided_slice %212 {offsets = [0, 20, 0], sizes = [2, 1, 256], strides = [1, 1, 1]} : vector<2x24x256xf32> to vector<2x1x256xf32>
    %356 = vector.extract_strided_slice %213 {offsets = [0, 20], sizes = [4, 1], strides = [1, 1]} : vector<4x24xf32> to vector<4x1xf32>
    %357 = vector.shape_cast %356 : vector<4x1xf32> to vector<1x4x1xf32>
    %358 = vector.broadcast %355 : vector<2x1x256xf32> to vector<2x4x256xf32>
    %359 = vector.broadcast %357 : vector<1x4x1xf32> to vector<2x4x256xf32>
    %360 = arith.mulf %358, %359 : vector<2x4x256xf32>
    %361 = arith.addf %354, %360 : vector<2x4x256xf32>
    %362 = vector.extract_strided_slice %212 {offsets = [0, 21, 0], sizes = [2, 1, 256], strides = [1, 1, 1]} : vector<2x24x256xf32> to vector<2x1x256xf32>
    %363 = vector.extract_strided_slice %213 {offsets = [0, 21], sizes = [4, 1], strides = [1, 1]} : vector<4x24xf32> to vector<4x1xf32>
    %364 = vector.shape_cast %363 : vector<4x1xf32> to vector<1x4x1xf32>
    %365 = vector.broadcast %362 : vector<2x1x256xf32> to vector<2x4x256xf32>
    %366 = vector.broadcast %364 : vector<1x4x1xf32> to vector<2x4x256xf32>
    %367 = arith.mulf %365, %366 : vector<2x4x256xf32>
    %368 = arith.addf %361, %367 : vector<2x4x256xf32>
    %369 = vector.extract_strided_slice %212 {offsets = [0, 22, 0], sizes = [2, 1, 256], strides = [1, 1, 1]} : vector<2x24x256xf32> to vector<2x1x256xf32>
    %370 = vector.extract_strided_slice %213 {offsets = [0, 22], sizes = [4, 1], strides = [1, 1]} : vector<4x24xf32> to vector<4x1xf32>
    %371 = vector.shape_cast %370 : vector<4x1xf32> to vector<1x4x1xf32>
    %372 = vector.broadcast %369 : vector<2x1x256xf32> to vector<2x4x256xf32>
    %373 = vector.broadcast %371 : vector<1x4x1xf32> to vector<2x4x256xf32>
    %374 = arith.mulf %372, %373 : vector<2x4x256xf32>
    %375 = arith.addf %368, %374 : vector<2x4x256xf32>
    %376 = vector.extract_strided_slice %212 {offsets = [0, 23, 0], sizes = [2, 1, 256], strides = [1, 1, 1]} : vector<2x24x256xf32> to vector<2x1x256xf32>
    %377 = vector.extract_strided_slice %213 {offsets = [0, 23], sizes = [4, 1], strides = [1, 1]} : vector<4x24xf32> to vector<4x1xf32>
    %378 = vector.shape_cast %377 : vector<4x1xf32> to vector<1x4x1xf32>
    %379 = vector.broadcast %376 : vector<2x1x256xf32> to vector<2x4x256xf32>
    %380 = vector.broadcast %378 : vector<1x4x1xf32> to vector<2x4x256xf32>
    %381 = arith.mulf %379, %380 : vector<2x4x256xf32>
    %382 = arith.addf %375, %381 : vector<2x4x256xf32>
    %c0_88 = arith.constant 0 : index
    %c0_89 = arith.constant 0 : index
    %c0_90 = arith.constant 0 : index
    %383 = vector.load %arg13[%c0_88, %c0_89, %c0_90] : memref<1x4x1xf32, #tpu.memory_space<vmem>>, vector<1x4x1xf32>
    %c0_91 = arith.constant 0 : index
    %c0_92 = arith.constant 0 : index
    %c0_93 = arith.constant 0 : index
    %384 = vector.load %arg14[%c0_91, %c0_92, %c0_93] : memref<1x4x1xf32, #tpu.memory_space<vmem>>, vector<1x4x1xf32>
    %cst_94 = arith.constant dense<0.000000e+00> : vector<2x4xf32>
    %385 = vector.multi_reduction <add>, %382, %cst_94 [2] : vector<2x4x256xf32> to vector<2x4xf32>
    %386 = vector.shape_cast %385 : vector<2x4xf32> to vector<2x4x1xf32>
    %cst_95 = arith.constant dense<0.000000e+00> : vector<4x1xf32>
    %387 = vector.multi_reduction <add>, %386, %cst_95 [0] : vector<2x4x1xf32> to vector<4x1xf32>
    %388 = vector.shape_cast %387 : vector<4x1xf32> to vector<1x4x1xf32>
    %389 = arith.mulf %382, %382 : vector<2x4x256xf32>
    %cst_96 = arith.constant dense<0.000000e+00> : vector<2x4xf32>
    %390 = vector.multi_reduction <add>, %389, %cst_96 [2] : vector<2x4x256xf32> to vector<2x4xf32>
    %391 = vector.shape_cast %390 : vector<2x4xf32> to vector<2x4x1xf32>
    %cst_97 = arith.constant dense<0.000000e+00> : vector<4x1xf32>
    %392 = vector.multi_reduction <add>, %391, %cst_97 [0] : vector<2x4x1xf32> to vector<4x1xf32>
    %393 = vector.shape_cast %392 : vector<4x1xf32> to vector<1x4x1xf32>
    %cst_98 = arith.constant 0.001953125 : f32
    %394 = vector.broadcast %cst_98 : f32 to vector<1x4x1xf32>
    %395 = arith.mulf %388, %394 : vector<1x4x1xf32>
    %cst_99 = arith.constant 0.001953125 : f32
    %396 = vector.broadcast %cst_99 : f32 to vector<1x4x1xf32>
    %397 = arith.mulf %393, %396 : vector<1x4x1xf32>
    %398 = arith.mulf %395, %395 : vector<1x4x1xf32>
    %399 = arith.subf %397, %398 : vector<1x4x1xf32>
    %400 = vector.broadcast %395 : vector<1x4x1xf32> to vector<2x4x256xf32>
    %401 = arith.subf %382, %400 : vector<2x4x256xf32>
    %cst_100 = arith.constant 9.99999974E-6 : f32
    %402 = vector.broadcast %cst_100 : f32 to vector<1x4x1xf32>
    %403 = arith.addf %399, %402 : vector<1x4x1xf32>
    %404 = math.rsqrt %403 : vector<1x4x1xf32>
    %405 = arith.mulf %404, %383 : vector<1x4x1xf32>
    %406 = vector.broadcast %405 : vector<1x4x1xf32> to vector<2x4x256xf32>
    %407 = arith.mulf %401, %406 : vector<2x4x256xf32>
    %408 = vector.broadcast %384 : vector<1x4x1xf32> to vector<2x4x256xf32>
    %409 = arith.addf %407, %408 : vector<2x4x256xf32>
    %410 = arith.addf %409, %0 : vector<2x4x256xf32>
    %c0_101 = arith.constant 0 : index
    %c0_102 = arith.constant 0 : index
    %c0_103 = arith.constant 0 : index
    %411 = vector.load %arg15[%c0_101, %c0_102, %c0_103] : memref<2x4x256xf32, #tpu.memory_space<vmem>>, vector<2x4x256xf32>
    tpu.vector_store %arg15[%c0_101, %c0_102, %c0_103], %410 {strides = array<i32>} : memref<2x4x256xf32, #tpu.memory_space<vmem>>, vector<2x4x256xf32>,
    return
  }
  func.func @transform_0(%arg0: i32) -> (i32, i32, i32) {
    %c0_i32 = arith.constant 0 : i32
    %c0_i32_0 = arith.constant 0 : i32
    %c0_i32_1 = arith.constant 0 : i32
    %c0_i32_2 = arith.constant 0 : i32
    return %c0_i32, %c0_i32_0, %c0_i32_1 : i32, i32, i32
  }
  func.func @transform_1(%arg0: i32) -> (i32, i32) {
    %c0_i32 = arith.constant 0 : i32
    %c0_i32_0 = arith.constant 0 : i32
    %c0_i32_1 = arith.constant 0 : i32
    return %c0_i32, %c0_i32_0 : i32, i32
  }
  func.func @transform_2(%arg0: i32) -> (i32, i32, i32) {
    %c0_i32 = arith.constant 0 : i32
    %c0_i32_0 = arith.constant 0 : i32
    %c0_i32_1 = arith.constant 0 : i32
    %c0_i32_2 = arith.constant 0 : i32
    return %c0_i32, %c0_i32_0, %c0_i32_1 : i32, i32, i32
  }
  func.func @transform_3(%arg0: i32) -> (i32, i32, i32) {
    %c0_i32 = arith.constant 0 : i32
    %c0_i32_0 = arith.constant 0 : i32
    %c0_i32_1 = arith.constant 0 : i32
    %c0_i32_2 = arith.constant 0 : i32
    return %c0_i32, %c0_i32_0, %c0_i32_1 : i32, i32, i32
  }
  func.func @transform_4(%arg0: i32) -> (i32, i32) {
    %c0_i32 = arith.constant 0 : i32
    %c0_i32_0 = arith.constant 0 : i32
    %c0_i32_1 = arith.constant 0 : i32
    return %c0_i32, %c0_i32_0 : i32, i32
  }
  func.func @transform_5(%arg0: i32) -> (i32, i32, i32) {
    %c0_i32 = arith.constant 0 : i32
    %c0_i32_0 = arith.constant 0 : i32
    %c0_i32_1 = arith.constant 0 : i32
    %c0_i32_2 = arith.constant 0 : i32
    return %c0_i32, %c0_i32_0, %c0_i32_1 : i32, i32, i32
  }
  func.func @transform_6(%arg0: i32) -> (i32, i32, i32) {
    %c0_i32 = arith.constant 0 : i32
    %c0_i32_0 = arith.constant 0 : i32
    %c0_i32_1 = arith.constant 0 : i32
    %c0_i32_2 = arith.constant 0 : i32
    return %c0_i32, %c0_i32_0, %c0_i32_1 : i32, i32, i32
  }
  func.func @transform_7(%arg0: i32) -> (i32, i32) {
    %c0_i32 = arith.constant 0 : i32
    %c0_i32_0 = arith.constant 0 : i32
    %c0_i32_1 = arith.constant 0 : i32
    return %c0_i32, %c0_i32_0 : i32, i32
  }
  func.func @transform_8(%arg0: i32) -> (i32, i32, i32) {
    %c0_i32 = arith.constant 0 : i32
    %c0_i32_0 = arith.constant 0 : i32
    %c0_i32_1 = arith.constant 0 : i32
    %c0_i32_2 = arith.constant 0 : i32
    return %c0_i32, %c0_i32_0, %c0_i32_1 : i32, i32, i32
  }
  func.func @transform_9(%arg0: i32) -> (i32, i32) {
    %c0_i32 = arith.constant 0 : i32
    %c0_i32_0 = arith.constant 0 : i32
    %c0_i32_1 = arith.constant 0 : i32
    return %c0_i32, %c0_i32_0 : i32, i32
  }
  func.func @transform_10(%arg0: i32) -> (i32, i32, i32) {
    %c0_i32 = arith.constant 0 : i32
    %c0_i32_0 = arith.constant 0 : i32
    %c0_i32_1 = arith.constant 0 : i32
    %c0_i32_2 = arith.constant 0 : i32
    return %c0_i32, %c0_i32_0, %c0_i32_1 : i32, i32, i32
  }
  func.func @transform_11(%arg0: i32) -> (i32, i32) {
    %c0_i32 = arith.constant 0 : i32
    %c0_i32_0 = arith.constant 0 : i32
    %c0_i32_1 = arith.constant 0 : i32
    return %c0_i32, %c0_i32_0 : i32, i32
  }
  func.func @transform_12(%arg0: i32) -> (i32, i32, i32) {
    %c0_i32 = arith.constant 0 : i32
    %c0_i32_0 = arith.constant 0 : i32
    %c0_i32_1 = arith.constant 0 : i32
    %c0_i32_2 = arith.constant 0 : i32
    return %c0_i32, %c0_i32_0, %c0_i32_1 : i32, i32, i32
  }
  func.func @transform_13(%arg0: i32) -> (i32, i32, i32) {
    %c0_i32 = arith.constant 0 : i32
    %c0_i32_0 = arith.constant 0 : i32
    %c0_i32_1 = arith.constant 0 : i32
    %c0_i32_2 = arith.constant 0 : i32
    return %c0_i32, %c0_i32_0, %c0_i32_1 : i32, i32, i32
  }
  func.func @transform_14(%arg0: i32) -> (i32, i32, i32) {
    %c0_i32 = arith.constant 0 : i32
    %c0_i32_0 = arith.constant 0 : i32
    %c0_i32_1 = arith.constant 0 : i32
    %c0_i32_2 = arith.constant 0 : i32
    return %c0_i32, %c0_i32_0, %c0_i32_1 : i32, i32, i32
  }
}

</mosaic_0001>

<llo_original>
// kernel: mbconv_forward.1
$region0: #{mbconv_forward.1}
  #allocation0 [shape = 'u32[]', space=smem, size = 0x4, offset = 0x4, fixed_abs, tag = 'smem constant byte address 0x4 - core index']
  #allocation1 [shape = 'u32[144,128]{1,0:T(1,128)}', space=vmem, size = 0x12000, scoped, tag = 'internal scratch']
  #allocation2 [shape = 'f32[2,24,512]{2,1,0:T(8,128)}', space=vmem, size = 0x18000, scoped, tag = 'scratch operand']
  %s0 = inlined_call_operand.vmem [shape: f32[2,4,256], index: 0, kind: input, shape index: {}]
  %s1 = inlined_call_operand.vmem [shape: f32[24,4], index: 1, kind: input, shape index: {}]
  %s2 = inlined_call_operand.vmem [shape: f32[1,24,1], index: 2, kind: input, shape index: {}]
  %s3 = inlined_call_operand.vmem [shape: f32[1,24,1], index: 3, kind: input, shape index: {}]
  %s4 = inlined_call_operand.vmem [shape: f32[24,9], index: 4, kind: input, shape index: {}]
  %s5 = inlined_call_operand.vmem [shape: f32[1,24,1], index: 5, kind: input, shape index: {}]
  %s6 = inlined_call_operand.vmem [shape: f32[1,24,1], index: 6, kind: input, shape index: {}]
  %s7 = inlined_call_operand.vmem [shape: f32[24,8], index: 7, kind: input, shape index: {}]
  %s8 = inlined_call_operand.vmem [shape: f32[1,1,8], index: 8, kind: input, shape index: {}]
  %s9 = inlined_call_operand.vmem [shape: f32[24,8], index: 9, kind: input, shape index: {}]
  %s10 = inlined_call_operand.vmem [shape: f32[1,24,1], index: 10, kind: input, shape index: {}]
  %s11 = inlined_call_operand.vmem [shape: f32[4,24], index: 11, kind: input, shape index: {}]
  %s12 = inlined_call_operand.vmem [shape: f32[1,4,1], index: 12, kind: input, shape index: {}]
  %s13 = inlined_call_operand.vmem [shape: f32[1,4,1], index: 13, kind: input, shape index: {}]
  %s14 = inlined_call_operand.vmem [shape: f32[2,4,256], index: 14, kind: output, shape index: {}]
  %s15 = sld [smem:[#allocation0]]
  $region66: #{mbconv_forward.1} parent=0
    _
  %s17 = ssub.s32 1, %s15
  %s18 = scalar_select 0, %s17, %s15
  // Predicated region
  $region2: #{mbconv_forward.1} parent=0 // pred_check
    _
  $region3: #{mbconv_forward.1} parent=0 // pred_check_branch
    %20 = sbr.rel (0) target = $region5
  $region4: #{mbconv_forward.1} parent=0 // pred_region
    _
  $region5: #{mbconv_forward.1} parent=0 // pred_fallthru
    _
  // Predicated region
  $region6: #{mbconv_forward.1} parent=0 // pred_check
    _
  $region7: #{mbconv_forward.1} parent=0 // pred_check_branch
    %22 = sbr.rel (0) target = $region9
  $region8: #{mbconv_forward.1} parent=0 // pred_region
    _
  $region9: #{mbconv_forward.1} parent=0 // pred_fallthru
    _
  // Predicated region
  $region10: #{mbconv_forward.1} parent=0 // pred_check
    _
  $region11: #{mbconv_forward.1} parent=0 // pred_check_branch
    %24 = sbr.rel (0) target = $region13
  $region12: #{mbconv_forward.1} parent=0 // pred_region
    _
  $region13: #{mbconv_forward.1} parent=0 // pred_fallthru
    _
  // Predicated region
  $region14: #{mbconv_forward.1} parent=0 // pred_check
    _
  $region15: #{mbconv_forward.1} parent=0 // pred_check_branch
    %26 = sbr.rel (0) target = $region17
  $region16: #{mbconv_forward.1} parent=0 // pred_region
    _
  $region17: #{mbconv_forward.1} parent=0 // pred_fallthru
    _
  // Predicated region
  $region18: #{mbconv_forward.1} parent=0 // pred_check
    _
  $region19: #{mbconv_forward.1} parent=0 // pred_check_branch
    %28 = sbr.rel (0) target = $region21
  $region20: #{mbconv_forward.1} parent=0 // pred_region
    _
  $region21: #{mbconv_forward.1} parent=0 // pred_fallthru
    _
  // Predicated region
  $region22: #{mbconv_forward.1} parent=0 // pred_check
    _
  $region23: #{mbconv_forward.1} parent=0 // pred_check_branch
    %30 = sbr.rel (0) target = $region25
  $region24: #{mbconv_forward.1} parent=0 // pred_region
    _
  $region25: #{mbconv_forward.1} parent=0 // pred_fallthru
    _
  // Predicated region
  $region26: #{mbconv_forward.1} parent=0 // pred_check
    _
  $region27: #{mbconv_forward.1} parent=0 // pred_check_branch
    %32 = sbr.rel (0) target = $region29
  $region28: #{mbconv_forward.1} parent=0 // pred_region
    _
  $region29: #{mbconv_forward.1} parent=0 // pred_fallthru
    _
  // Predicated region
  $region30: #{mbconv_forward.1} parent=0 // pred_check
    _
  $region31: #{mbconv_forward.1} parent=0 // pred_check_branch
    %34 = sbr.rel (0) target = $region33
  $region32: #{mbconv_forward.1} parent=0 // pred_region
    _
  $region33: #{mbconv_forward.1} parent=0 // pred_fallthru
    _
  // Predicated region
  $region34: #{mbconv_forward.1} parent=0 // pred_check
    _
  $region35: #{mbconv_forward.1} parent=0 // pred_check_branch
    %36 = sbr.rel (0) target = $region37
  $region36: #{mbconv_forward.1} parent=0 // pred_region
    _
  $region37: #{mbconv_forward.1} parent=0 // pred_fallthru
    _
  // Predicated region
  $region38: #{mbconv_forward.1} parent=0 // pred_check
    _
  $region39: #{mbconv_forward.1} parent=0 // pred_check_branch
    %38 = sbr.rel (0) target = $region41
  $region40: #{mbconv_forward.1} parent=0 // pred_region
    _
  $region41: #{mbconv_forward.1} parent=0 // pred_fallthru
    _
  // Predicated region
  $region42: #{mbconv_forward.1} parent=0 // pred_check
    _
  $region43: #{mbconv_forward.1} parent=0 // pred_check_branch
    %40 = sbr.rel (0) target = $region45
  $region44: #{mbconv_forward.1} parent=0 // pred_region
    _
  $region45: #{mbconv_forward.1} parent=0 // pred_fallthru
    _
  // Predicated region
  $region46: #{mbconv_forward.1} parent=0 // pred_check
    _
  $region47: #{mbconv_forward.1} parent=0 // pred_check_branch
    %42 = sbr.rel (0) target = $region49
  $region48: #{mbconv_forward.1} parent=0 // pred_region
    _
  $region49: #{mbconv_forward.1} parent=0 // pred_fallthru
    _
  // Predicated region
  $region50: #{mbconv_forward.1} parent=0 // pred_check
    _
  $region51: #{mbconv_forward.1} parent=0 // pred_check_branch
    %44 = sbr.rel (0) target = $region53
  $region52: #{mbconv_forward.1} parent=0 // pred_region
    _
  $region53: #{mbconv_forward.1} parent=0 // pred_fallthru
    _
  // Predicated region
  $region54: #{mbconv_forward.1} parent=0 // pred_check
    _
  $region55: #{mbconv_forward.1} parent=0 // pred_check_branch
    %46 = sbr.rel (0) target = $region57
  $region56: #{mbconv_forward.1} parent=0 // pred_region
    _
  $region57: #{mbconv_forward.1} parent=0 // pred_fallthru
    _
  %v47 = vld [vmem:[%s0] sm:$0xff]
  %v48 = vld [vmem:[%s0 + $0x8] sm:$0xff]
  %v49 = vld [vmem:[%s1] sm:$0xff]
  %v50 = vld [vmem:[%s1 + $0x8] sm:$0xff]
  %v51 = vld [vmem:[%s1 + $0x10] sm:$0xff]
  %v54 = vlaneseq
  %v55 = vshrl.u32 %v54, 7
  %v56 = vsub.s32 0, %v55
  %v57 = vrot.slane %v47, %v56
  %v58 = vlaneseq
  %v59 = vshrl.u32 %v58, 7
  %v60 = vsub.s32 4, %v59
  %v61 = vrot.slane %v47, %v60
  %v62 = vlaneseq
  %v63 = vshrl.u32 %v62, 7
  %v64 = vsub.s32 0, %v63
  %v65 = vrot.slane %v48, %v64
  %v66 = vlaneseq
  %v67 = vshrl.u32 %v66, 7
  %v68 = vsub.s32 4, %v67
  %v69 = vrot.slane %v48, %v68
  %v74 = vlaneseq
  %v75 = vshrl.u32 %v74, 7
  %v76 = vsub.s32 0, %v75
  %v77 = vrot.slane %v57, %v76
  %v78 = vlaneseq
  %v79 = vshrl.u32 %v78, 7
  %v80 = vsub.s32 0, %v79
  %v81 = vrot.slane %v61, %v80
  %v82 = vlaneseq
  %v83 = vshrl.u32 %v82, 7
  %v84 = vsub.s32 0, %v83
  %v85 = vrot.slane %v65, %v84
  %v86 = vlaneseq
  %v87 = vshrl.u32 %v86, 7
  %v88 = vsub.s32 0, %v87
  %v89 = vrot.slane %v69, %v88
  %91 = vset.pattern.permute.xlu0 0
  %92 = vperm.xlu0 %91, %v49
  %v93 = vpop.permute.xlu0 %92
  %96 = vset.pattern.permute.xlu0 0
  %97 = vperm.xlu0 %96, %v50
  %v98 = vpop.permute.xlu0 %97
  %101 = vset.pattern.permute.xlu0 0
  %102 = vperm.xlu0 %101, %v51
  %v103 = vpop.permute.xlu0 %102
  %v105 = vmul.f32 %v77, %v93
  %v106 = vmul.f32 %v81, %v93
  %v107 = vmul.f32 %v77, %v98
  %v108 = vmul.f32 %v81, %v98
  %v109 = vmul.f32 %v77, %v103
  %v110 = vmul.f32 %v81, %v103
  %v111 = vmul.f32 %v85, %v93
  %v112 = vmul.f32 %v89, %v93
  %v113 = vmul.f32 %v85, %v98
  %v114 = vmul.f32 %v89, %v98
  %v115 = vmul.f32 %v85, %v103
  %v116 = vmul.f32 %v89, %v103
  %v117 = vadd.f32 %v105, 0.0
  %v118 = vadd.f32 %v106, 0.0
  %v119 = vadd.f32 %v107, 0.0
  %v120 = vadd.f32 %v108, 0.0
  %v121 = vadd.f32 %v109, 0.0
  %v122 = vadd.f32 %v110, 0.0
  %v123 = vadd.f32 %v111, 0.0
  %v124 = vadd.f32 %v112, 0.0
  %v125 = vadd.f32 %v113, 0.0
  %v126 = vadd.f32 %v114, 0.0
  %v127 = vadd.f32 %v115, 0.0
  %v128 = vadd.f32 %v116, 0.0
  %v129 = vlaneseq
  %v130 = vshrl.u32 %v129, 7
  %v131 = vsub.s32 1, %v130
  %v132 = vrot.slane %v47, %v131
  %v133 = vlaneseq
  %v134 = vshrl.u32 %v133, 7
  %v135 = vsub.s32 5, %v134
  %v136 = vrot.slane %v47, %v135
  %v137 = vlaneseq
  %v138 = vshrl.u32 %v137, 7
  %v139 = vsub.s32 1, %v138
  %v140 = vrot.slane %v48, %v139
  %v141 = vlaneseq
  %v142 = vshrl.u32 %v141, 7
  %v143 = vsub.s32 5, %v142
  %v144 = vrot.slane %v48, %v143
  %v149 = vlaneseq
  %v150 = vshrl.u32 %v149, 7
  %v151 = vsub.s32 1, %v150
  %v152 = vrot.slane %v132, %v151
  %v153 = vlaneseq
  %v154 = vshrl.u32 %v153, 7
  %v155 = vsub.s32 1, %v154
  %v156 = vrot.slane %v136, %v155
  %v157 = vlaneseq
  %v158 = vshrl.u32 %v157, 7
  %v159 = vsub.s32 1, %v158
  %v160 = vrot.slane %v140, %v159
  %v161 = vlaneseq
  %v162 = vshrl.u32 %v161, 7
  %v163 = vsub.s32 1, %v162
  %v164 = vrot.slane %v144, %v163
  %165 = vset.pattern.permute.xlu0 1
  %166 = vperm.xlu0 %165, %v49
  %v167 = vpop.permute.xlu0 %166
  %169 = vset.pattern.permute.xlu0 1
  %170 = vperm.xlu0 %169, %v50
  %v171 = vpop.permute.xlu0 %170
  %173 = vset.pattern.permute.xlu0 1
  %174 = vperm.xlu0 %173, %v51
  %v175 = vpop.permute.xlu0 %174
  %v177 = vmul.f32 %v152, %v167
  %v178 = vmul.f32 %v156, %v167
  %v179 = vmul.f32 %v152, %v171
  %v180 = vmul.f32 %v156, %v171
  %v181 = vmul.f32 %v152, %v175
  %v182 = vmul.f32 %v156, %v175
  %v183 = vmul.f32 %v160, %v167
  %v184 = vmul.f32 %v164, %v167
  %v185 = vmul.f32 %v160, %v171
  %v186 = vmul.f32 %v164, %v171
  %v187 = vmul.f32 %v160, %v175
  %v188 = vmul.f32 %v164, %v175
  %v189 = vadd.f32 %v117, %v177
  %v190 = vadd.f32 %v118, %v178
  %v191 = vadd.f32 %v119, %v179
  %v192 = vadd.f32 %v120, %v180
  %v193 = vadd.f32 %v121, %v181
  %v194 = vadd.f32 %v122, %v182
  %v195 = vadd.f32 %v123, %v183
  %v196 = vadd.f32 %v124, %v184
  %v197 = vadd.f32 %v125, %v185
  %v198 = vadd.f32 %v126, %v186
  %v199 = vadd.f32 %v127, %v187
  %v200 = vadd.f32 %v128, %v188
  %v201 = vlaneseq
  %v202 = vshrl.u32 %v201, 7
  %v203 = vsub.s32 2, %v202
  %v204 = vrot.slane %v47, %v203
  %v205 = vlaneseq
  %v206 = vshrl.u32 %v205, 7
  %v207 = vsub.s32 6, %v206
  %v208 = vrot.slane %v47, %v207
  %v209 = vlaneseq
  %v210 = vshrl.u32 %v209, 7
  %v211 = vsub.s32 2, %v210
  %v212 = vrot.slane %v48, %v211
  %v213 = vlaneseq
  %v214 = vshrl.u32 %v213, 7
  %v215 = vsub.s32 6, %v214
  %v216 = vrot.slane %v48, %v215
  %v221 = vlaneseq
  %v222 = vshrl.u32 %v221, 7
  %v223 = vsub.s32 2, %v222
  %v224 = vrot.slane %v204, %v223
  %v225 = vlaneseq
  %v226 = vshrl.u32 %v225, 7
  %v227 = vsub.s32 2, %v226
  %v228 = vrot.slane %v208, %v227
  %v229 = vlaneseq
  %v230 = vshrl.u32 %v229, 7
  %v231 = vsub.s32 2, %v230
  %v232 = vrot.slane %v212, %v231
  %v233 = vlaneseq
  %v234 = vshrl.u32 %v233, 7
  %v235 = vsub.s32 2, %v234
  %v236 = vrot.slane %v216, %v235
  %237 = vset.pattern.permute.xlu0 2
  %238 = vperm.xlu0 %237, %v49
  %v239 = vpop.permute.xlu0 %238
  %241 = vset.pattern.permute.xlu0 2
  %242 = vperm.xlu0 %241, %v50
  %v243 = vpop.permute.xlu0 %242
  %245 = vset.pattern.permute.xlu0 2
  %246 = vperm.xlu0 %245, %v51
  %v247 = vpop.permute.xlu0 %246
  %v249 = vmul.f32 %v224, %v239
  %v250 = vmul.f32 %v228, %v239
  %v251 = vmul.f32 %v224, %v243
  %v252 = vmul.f32 %v228, %v243
  %v253 = vmul.f32 %v224, %v247
  %v254 = vmul.f32 %v228, %v247
  %v255 = vmul.f32 %v232, %v239
  %v256 = vmul.f32 %v236, %v239
  %v257 = vmul.f32 %v232, %v243
  %v258 = vmul.f32 %v236, %v243
  %v259 = vmul.f32 %v232, %v247
  %v260 = vmul.f32 %v236, %v247
  %v261 = vadd.f32 %v189, %v249
  %v262 = vadd.f32 %v190, %v250
  %v263 = vadd.f32 %v191, %v251
  %v264 = vadd.f32 %v192, %v252
  %v265 = vadd.f32 %v193, %v253
  %v266 = vadd.f32 %v194, %v254
  %v267 = vadd.f32 %v195, %v255
  %v268 = vadd.f32 %v196, %v256
  %v269 = vadd.f32 %v197, %v257
  %v270 = vadd.f32 %v198, %v258
  %v271 = vadd.f32 %v199, %v259
  %v272 = vadd.f32 %v200, %v260
  %v273 = vlaneseq
  %v274 = vshrl.u32 %v273, 7
  %v275 = vsub.s32 3, %v274
  %v276 = vrot.slane %v47, %v275
  %v277 = vlaneseq
  %v278 = vshrl.u32 %v277, 7
  %v279 = vsub.s32 7, %v278
  %v280 = vrot.slane %v47, %v279
  %v281 = vlaneseq
  %v282 = vshrl.u32 %v281, 7
  %v283 = vsub.s32 3, %v282
  %v284 = vrot.slane %v48, %v283
  %v285 = vlaneseq
  %v286 = vshrl.u32 %v285, 7
  %v287 = vsub.s32 7, %v286
  %v288 = vrot.slane %v48, %v287
  %v293 = vlaneseq
  %v294 = vshrl.u32 %v293, 7
  %v295 = vsub.s32 3, %v294
  %v296 = vrot.slane %v276, %v295
  %v297 = vlaneseq
  %v298 = vshrl.u32 %v297, 7
  %v299 = vsub.s32 3, %v298
  %v300 = vrot.slane %v280, %v299
  %v301 = vlaneseq
  %v302 = vshrl.u32 %v301, 7
  %v303 = vsub.s32 3, %v302
  %v304 = vrot.slane %v284, %v303
  %v305 = vlaneseq
  %v306 = vshrl.u32 %v305, 7
  %v307 = vsub.s32 3, %v306
  %v308 = vrot.slane %v288, %v307
  %309 = vset.pattern.permute.xlu0 3
  %310 = vperm.xlu0 %309, %v49
  %v311 = vpop.permute.xlu0 %310
  %313 = vset.pattern.permute.xlu0 3
  %314 = vperm.xlu0 %313, %v50
  %v315 = vpop.permute.xlu0 %314
  %317 = vset.pattern.permute.xlu0 3
  %318 = vperm.xlu0 %317, %v51
  %v319 = vpop.permute.xlu0 %318
  %v321 = vmul.f32 %v296, %v311
  %v322 = vmul.f32 %v300, %v311
  %v323 = vmul.f32 %v296, %v315
  %v324 = vmul.f32 %v300, %v315
  %v325 = vmul.f32 %v296, %v319
  %v326 = vmul.f32 %v300, %v319
  %v327 = vmul.f32 %v304, %v311
  %v328 = vmul.f32 %v308, %v311
  %v329 = vmul.f32 %v304, %v315
  %v330 = vmul.f32 %v308, %v315
  %v331 = vmul.f32 %v304, %v319
  %v332 = vmul.f32 %v308, %v319
  %v333 = vadd.f32 %v261, %v321
  %v334 = vadd.f32 %v262, %v322
  %v335 = vadd.f32 %v263, %v323
  %v336 = vadd.f32 %v264, %v324
  %v337 = vadd.f32 %v265, %v325
  %v338 = vadd.f32 %v266, %v326
  %v339 = vadd.f32 %v267, %v327
  %v340 = vadd.f32 %v268, %v328
  %v341 = vadd.f32 %v269, %v329
  %v342 = vadd.f32 %v270, %v330
  %v343 = vadd.f32 %v271, %v331
  %v344 = vadd.f32 %v272, %v332
  %v345 = vld [vmem:[%s2] sm:$0xff]
  %v346 = vld [vmem:[%s2 + $0x8] sm:$0xff]
  %v347 = vld [vmem:[%s2 + $0x10] sm:$0xff]
  %v348 = vld [vmem:[%s3] sm:$0xff]
  %v349 = vld [vmem:[%s3 + $0x8] sm:$0xff]
  %v350 = vld [vmem:[%s3 + $0x10] sm:$0xff]
  %v351 = vadd.f32 %v333, %v334
  %352 = vadd.xlane.f32.xlu0 %v351
  %v353 = vpop.xlane.xlu0 %352
  %v354 = vadd.f32 %v335, %v336
  %355 = vadd.xlane.f32.xlu0 %v354
  %v356 = vpop.xlane.xlu0 %355
  %v357 = vadd.f32 %v337, %v338
  %358 = vadd.xlane.f32.xlu0 %v357
  %v359 = vpop.xlane.xlu0 %358
  %v360 = vadd.f32 %v339, %v340
  %361 = vadd.xlane.f32.xlu0 %v360
  %v362 = vpop.xlane.xlu0 %361
  %v363 = vadd.f32 %v341, %v342
  %364 = vadd.xlane.f32.xlu0 %v363
  %v365 = vpop.xlane.xlu0 %364
  %v366 = vadd.f32 %v343, %v344
  %367 = vadd.xlane.f32.xlu0 %v366
  %v368 = vpop.xlane.xlu0 %367
  %v369 = vadd.f32 %v353, %v362
  %v370 = vadd.f32 %v356, %v365
  %v371 = vadd.f32 %v359, %v368
  %v372 = vmul.f32 %v333, %v333
  %v373 = vmul.f32 %v334, %v334
  %v374 = vmul.f32 %v335, %v335
  %v375 = vmul.f32 %v336, %v336
  %v376 = vmul.f32 %v337, %v337
  %v377 = vmul.f32 %v338, %v338
  %v378 = vmul.f32 %v339, %v339
  %v379 = vmul.f32 %v340, %v340
  %v380 = vmul.f32 %v341, %v341
  %v381 = vmul.f32 %v342, %v342
  %v382 = vmul.f32 %v343, %v343
  %v383 = vmul.f32 %v344, %v344
  %v384 = vadd.f32 %v372, %v373
  %385 = vadd.xlane.f32.xlu0 %v384
  %v386 = vpop.xlane.xlu0 %385
  %v387 = vadd.f32 %v374, %v375
  %388 = vadd.xlane.f32.xlu0 %v387
  %v389 = vpop.xlane.xlu0 %388
  %v390 = vadd.f32 %v376, %v377
  %391 = vadd.xlane.f32.xlu0 %v390
  %v392 = vpop.xlane.xlu0 %391
  %v393 = vadd.f32 %v378, %v379
  %394 = vadd.xlane.f32.xlu0 %v393
  %v395 = vpop.xlane.xlu0 %394
  %v396 = vadd.f32 %v380, %v381
  %397 = vadd.xlane.f32.xlu0 %v396
  %v398 = vpop.xlane.xlu0 %397
  %v399 = vadd.f32 %v382, %v383
  %400 = vadd.xlane.f32.xlu0 %v399
  %v401 = vpop.xlane.xlu0 %400
  %v402 = vadd.f32 %v386, %v395
  %v403 = vadd.f32 %v389, %v398
  %v404 = vadd.f32 %v392, %v401
  %v405 = vmul.f32 %v369, 0.001953125
  %v406 = vmul.f32 %v370, 0.001953125
  %v407 = vmul.f32 %v371, 0.001953125
  %v408 = vmul.f32 %v402, 0.001953125
  %v409 = vmul.f32 %v403, 0.001953125
  %v410 = vmul.f32 %v404, 0.001953125
  %v411 = vmul.f32 %v405, %v405
  %v412 = vmul.f32 %v406, %v406
  %v413 = vmul.f32 %v407, %v407
  %v414 = vsub.f32 %v408, %v411
  %v415 = vsub.f32 %v409, %v412
  %v416 = vsub.f32 %v410, %v413
  %v417 = vsub.f32 %v333, %v405
  %v418 = vsub.f32 %v334, %v405
  %v419 = vsub.f32 %v335, %v406
  %v420 = vsub.f32 %v336, %v406
  %v421 = vsub.f32 %v337, %v407
  %v422 = vsub.f32 %v338, %v407
  %v423 = vsub.f32 %v339, %v405
  %v424 = vsub.f32 %v340, %v405
  %v425 = vsub.f32 %v341, %v406
  %v426 = vsub.f32 %v342, %v406
  %v427 = vsub.f32 %v343, %v407
  %v428 = vsub.f32 %v344, %v407
  %v429 = vadd.f32 %v414, 1e-05
  %v430 = vadd.f32 %v415, 1e-05
  %v431 = vadd.f32 %v416, 1e-05
  %v432 = vrsqrt.pop %v429
  %v433 = vrsqrt.pop %v430
  %v434 = vrsqrt.pop %v431
  %v435 = vmul.f32 %v432, %v345
  %v436 = vmul.f32 %v433, %v346
  %v437 = vmul.f32 %v434, %v347
  %439 = vset.pattern.permute.xlu0 0
  %440 = vperm.xlu0 %439, %v435
  %v441 = vpop.permute.xlu0 %440
  %444 = vset.pattern.permute.xlu0 0
  %445 = vperm.xlu0 %444, %v436
  %v446 = vpop.permute.xlu0 %445
  %449 = vset.pattern.permute.xlu0 0
  %450 = vperm.xlu0 %449, %v437
  %v451 = vpop.permute.xlu0 %450
  %v453 = vmul.f32 %v417, %v441
  %v454 = vmul.f32 %v418, %v441
  %v455 = vmul.f32 %v419, %v446
  %v456 = vmul.f32 %v420, %v446
  %v457 = vmul.f32 %v421, %v451
  %v458 = vmul.f32 %v422, %v451
  %v459 = vmul.f32 %v423, %v441
  %v460 = vmul.f32 %v424, %v441
  %v461 = vmul.f32 %v425, %v446
  %v462 = vmul.f32 %v426, %v446
  %v463 = vmul.f32 %v427, %v451
  %v464 = vmul.f32 %v428, %v451
  %466 = vset.pattern.permute.xlu0 0
  %467 = vperm.xlu0 %466, %v348
  %v468 = vpop.permute.xlu0 %467
  %471 = vset.pattern.permute.xlu0 0
  %472 = vperm.xlu0 %471, %v349
  %v473 = vpop.permute.xlu0 %472
  %476 = vset.pattern.permute.xlu0 0
  %477 = vperm.xlu0 %476, %v350
  %v478 = vpop.permute.xlu0 %477
  %v480 = vadd.f32 %v453, %v468
  %v481 = vadd.f32 %v454, %v468
  %v482 = vadd.f32 %v455, %v473
  %v483 = vadd.f32 %v456, %v473
  %v484 = vadd.f32 %v457, %v478
  %v485 = vadd.f32 %v458, %v478
  %v486 = vadd.f32 %v459, %v468
  %v487 = vadd.f32 %v460, %v468
  %v488 = vadd.f32 %v461, %v473
  %v489 = vadd.f32 %v462, %v473
  %v490 = vadd.f32 %v463, %v478
  %v491 = vadd.f32 %v464, %v478
  %v492 = vmax.f32 %v480, 0.0
  %v493 = vmax.f32 %v481, 0.0
  %v494 = vmax.f32 %v482, 0.0
  %v495 = vmax.f32 %v483, 0.0
  %v496 = vmax.f32 %v484, 0.0
  %v497 = vmax.f32 %v485, 0.0
  %v498 = vmax.f32 %v486, 0.0
  %v499 = vmax.f32 %v487, 0.0
  %v500 = vmax.f32 %v488, 0.0
  %v501 = vmax.f32 %v489, 0.0
  %v502 = vmax.f32 %v490, 0.0
  %v503 = vmax.f32 %v491, 0.0
  %v504 = vmin.f32 %v492, 6.0
  %v505 = vmin.f32 %v493, 6.0
  %v506 = vmin.f32 %v494, 6.0
  %v507 = vmin.f32 %v495, 6.0
  %v508 = vmin.f32 %v496, 6.0
  %v509 = vmin.f32 %v497, 6.0
  %v510 = vmin.f32 %v498, 6.0
  %v511 = vmin.f32 %v499, 6.0
  %v512 = vmin.f32 %v500, 6.0
  %v513 = vmin.f32 %v501, 6.0
  %v514 = vmin.f32 %v502, 6.0
  %v515 = vmin.f32 %v503, 6.0
  %516 = vst [vmem:[#allocation2] sm:$0xff] 0.0
  %517 = vst [vmem:[#allocation2 + $0x20] sm:$0xff] 0.0
  %518 = vst [vmem:[#allocation2 + $0x40] sm:$0xff] 0.0
  %519 = vst [vmem:[#allocation2 + $0x60] sm:$0xff] 0.0
  %520 = vst [vmem:[#allocation2 + $0x80] sm:$0xff] 0.0
  %521 = vst [vmem:[#allocation2 + $0xa0] sm:$0xff] 0.0
  %522 = vst [vmem:[#allocation2 + $0x18] sm:$0xff] 0.0
  %523 = vst [vmem:[#allocation2 + $0x38] sm:$0xff] 0.0
  %524 = vst [vmem:[#allocation2 + $0x58] sm:$0xff] 0.0
  %525 = vst [vmem:[#allocation2 + $0x78] sm:$0xff] 0.0
  %526 = vst [vmem:[#allocation2 + $0x98] sm:$0xff] 0.0
  %527 = vst [vmem:[#allocation2 + $0xb8] sm:$0xff] 0.0
  %528 = vst [vmem:[#allocation2 + $0x8] sm:$0xff] %v504
  %529 = vst [vmem:[#allocation2 + $0x10] sm:$0xff] %v505
  %530 = vst [vmem:[#allocation2 + $0x28] sm:$0xff] %v506
  %531 = vst [vmem:[#allocation2 + $0x30] sm:$0xff] %v507
  %532 = vst [vmem:[#allocation2 + $0x48] sm:$0xff] %v508
  %533 = vst [vmem:[#allocation2 + $0x50] sm:$0xff] %v509
  %534 = vst [vmem:[#allocation2 + $0x68] sm:$0xff] %v510
  %535 = vst [vmem:[#allocation2 + $0x70] sm:$0xff] %v511
  %536 = vst [vmem:[#allocation2 + $0x88] sm:$0xff] %v512
  %537 = vst [vmem:[#allocation2 + $0x90] sm:$0xff] %v513
  %538 = vst [vmem:[#allocation2 + $0xa8] sm:$0xff] %v514
  %539 = vst [vmem:[#allocation2 + $0xb0] sm:$0xff] %v515
  %v540 = vld [vmem:[%s4] sm:$0xff]
  %v541 = vld [vmem:[%s4 + $0x8] sm:$0xff]
  %v542 = vld [vmem:[%s4 + $0x10] sm:$0xff]
  %v543 = vld [vmem:[#allocation2] sm:$0xff]
  %v544 = vld [vmem:[#allocation2 + $0x8] sm:$0xff]
  %v545 = vld [vmem:[#allocation2 + $0x10] sm:$0xff]
  %v546 = vld [vmem:[#allocation2 + $0x20] sm:$0xff]
  %v547 = vld [vmem:[#allocation2 + $0x28] sm:$0xff]
  %v548 = vld [vmem:[#allocation2 + $0x30] sm:$0xff]
  %v549 = vld [vmem:[#allocation2 + $0x40] sm:$0xff]
  %v550 = vld [vmem:[#allocation2 + $0x48] sm:$0xff]
  %v551 = vld [vmem:[#allocation2 + $0x50] sm:$0xff]
  %v552 = vld [vmem:[#allocation2 + $0x60] sm:$0xff]
  %v553 = vld [vmem:[#allocation2 + $0x68] sm:$0xff]
  %v554 = vld [vmem:[#allocation2 + $0x70] sm:$0xff]
  %v555 = vld [vmem:[#allocation2 + $0x80] sm:$0xff]
  %v556 = vld [vmem:[#allocation2 + $0x88] sm:$0xff]
  %v557 = vld [vmem:[#allocation2 + $0x90] sm:$0xff]
  %v558 = vld [vmem:[#allocation2 + $0xa0] sm:$0xff]
  %v559 = vld [vmem:[#allocation2 + $0xa8] sm:$0xff]
  %v560 = vld [vmem:[#allocation2 + $0xb0] sm:$0xff]
  %562 = vset.pattern.permute.xlu0 0
  %563 = vperm.xlu0 %562, %v540
  %v564 = vpop.permute.xlu0 %563
  %567 = vset.pattern.permute.xlu0 0
  %568 = vperm.xlu0 %567, %v541
  %v569 = vpop.permute.xlu0 %568
  %572 = vset.pattern.permute.xlu0 0
  %573 = vperm.xlu0 %572, %v542
  %v574 = vpop.permute.xlu0 %573
  %v576 = vmul.f32 %v543, %v564
  %v577 = vmul.f32 %v544, %v564
  %v578 = vmul.f32 %v545, %v564
  %v579 = vmul.f32 %v546, %v569
  %v580 = vmul.f32 %v547, %v569
  %v581 = vmul.f32 %v548, %v569
  %v582 = vmul.f32 %v549, %v574
  %v583 = vmul.f32 %v550, %v574
  %v584 = vmul.f32 %v551, %v574
  %v585 = vmul.f32 %v552, %v564
  %v586 = vmul.f32 %v553, %v564
  %v587 = vmul.f32 %v554, %v564
  %v588 = vmul.f32 %v555, %v569
  %v589 = vmul.f32 %v556, %v569
  %v590 = vmul.f32 %v557, %v569
  %v591 = vmul.f32 %v558, %v574
  %v592 = vmul.f32 %v559, %v574
  %v593 = vmul.f32 %v560, %v574
  %594 = vset.pattern.permute.xlu0 3
  %595 = vperm.xlu0 %594, %v540
  %v596 = vpop.permute.xlu0 %595
  %598 = vset.pattern.permute.xlu0 3
  %599 = vperm.xlu0 %598, %v541
  %v600 = vpop.permute.xlu0 %599
  %602 = vset.pattern.permute.xlu0 3
  %603 = vperm.xlu0 %602, %v542
  %v604 = vpop.permute.xlu0 %603
  %v606 = vmul.f32 %v543, %v596
  %v607 = vmul.f32 %v544, %v596
  %v608 = vmul.f32 %v545, %v596
  %v609 = vmul.f32 %v546, %v600
  %v610 = vmul.f32 %v547, %v600
  %v611 = vmul.f32 %v548, %v600
  %v612 = vmul.f32 %v549, %v604
  %v613 = vmul.f32 %v550, %v604
  %v614 = vmul.f32 %v551, %v604
  %v615 = vmul.f32 %v552, %v596
  %v616 = vmul.f32 %v553, %v596
  %v617 = vmul.f32 %v554, %v596
  %v618 = vmul.f32 %v555, %v600
  %v619 = vmul.f32 %v556, %v600
  %v620 = vmul.f32 %v557, %v600
  %v621 = vmul.f32 %v558, %v604
  %v622 = vmul.f32 %v559, %v604
  %v623 = vmul.f32 %v560, %v604
  %642 = vrot.lane.b32.xlu0 %v606, 112
  %v643 = vpop.permute.xlu0 %642
  %644 = vrot.lane.b32.xlu0 %v607, 112
  %v645 = vpop.permute.xlu0 %644
  %646 = vrot.lane.b32.xlu0 %v608, 112
  %v647 = vpop.permute.xlu0 %646
  %648 = vrot.lane.b32.xlu0 %v609, 112
  %v649 = vpop.permute.xlu0 %648
  %650 = vrot.lane.b32.xlu0 %v610, 112
  %v651 = vpop.permute.xlu0 %650
  %652 = vrot.lane.b32.xlu0 %v611, 112
  %v653 = vpop.permute.xlu0 %652
  %654 = vrot.lane.b32.xlu0 %v612, 112
  %v655 = vpop.permute.xlu0 %654
  %656 = vrot.lane.b32.xlu0 %v613, 112
  %v657 = vpop.permute.xlu0 %656
  %658 = vrot.lane.b32.xlu0 %v614, 112
  %v659 = vpop.permute.xlu0 %658
  %660 = vrot.lane.b32.xlu0 %v615, 112
  %v661 = vpop.permute.xlu0 %660
  %662 = vrot.lane.b32.xlu0 %v616, 112
  %v663 = vpop.permute.xlu0 %662
  %664 = vrot.lane.b32.xlu0 %v617, 112
  %v665 = vpop.permute.xlu0 %664
  %666 = vrot.lane.b32.xlu0 %v618, 112
  %v667 = vpop.permute.xlu0 %666
  %668 = vrot.lane.b32.xlu0 %v619, 112
  %v669 = vpop.permute.xlu0 %668
  %670 = vrot.lane.b32.xlu0 %v620, 112
  %v671 = vpop.permute.xlu0 %670
  %672 = vrot.lane.b32.xlu0 %v621, 112
  %v673 = vpop.permute.xlu0 %672
  %674 = vrot.lane.b32.xlu0 %v622, 112
  %v675 = vpop.permute.xlu0 %674
  %676 = vrot.lane.b32.xlu0 %v623, 112
  %v677 = vpop.permute.xlu0 %676
  %vm678 = vcmask 916480
  %v679 = vsel %vm678, %v643, %v645
  %v680 = vsel %vm678, %v645, %v647
  %v681 = vsel %vm678, %v649, %v651
  %v682 = vsel %vm678, %v651, %v653
  %v683 = vsel %vm678, %v655, %v657
  %v684 = vsel %vm678, %v657, %v659
  %v685 = vsel %vm678, %v661, %v663
  %v686 = vsel %vm678, %v663, %v665
  %v687 = vsel %vm678, %v667, %v669
  %v688 = vsel %vm678, %v669, %v671
  %v689 = vsel %vm678, %v673, %v675
  %v690 = vsel %vm678, %v675, %v677
  %v709 = vadd.f32 %v576, %v679
  %v710 = vadd.f32 %v577, %v680
  %v711 = vadd.f32 %v578, %v647
  %v712 = vadd.f32 %v579, %v681
  %v713 = vadd.f32 %v580, %v682
  %v714 = vadd.f32 %v581, %v653
  %v715 = vadd.f32 %v582, %v683
  %v716 = vadd.f32 %v583, %v684
  %v717 = vadd.f32 %v584, %v659
  %v718 = vadd.f32 %v585, %v685
  %v719 = vadd.f32 %v586, %v686
  %v720 = vadd.f32 %v587, %v665
  %v721 = vadd.f32 %v588, %v687
  %v722 = vadd.f32 %v589, %v688
  %v723 = vadd.f32 %v590, %v671
  %v724 = vadd.f32 %v591, %v689
  %v725 = vadd.f32 %v592, %v690
  %v726 = vadd.f32 %v593, %v677
  %v727 = vld [vmem:[#allocation2 + $0x8] sm:$0xff]
  %v728 = vld [vmem:[#allocation2 + $0x10] sm:$0xff]
  %v729 = vld [vmem:[#allocation2 + $0x18] sm:$0xff]
  %v730 = vld [vmem:[#allocation2 + $0x28] sm:$0xff]
  %v731 = vld [vmem:[#allocation2 + $0x30] sm:$0xff]
  %v732 = vld [vmem:[#allocation2 + $0x38] sm:$0xff]
  %v733 = vld [vmem:[#allocation2 + $0x48] sm:$0xff]
  %v734 = vld [vmem:[#allocation2 + $0x50] sm:$0xff]
  %v735 = vld [vmem:[#allocation2 + $0x58] sm:$0xff]
  %v736 = vld [vmem:[#allocation2 + $0x68] sm:$0xff]
  %v737 = vld [vmem:[#allocation2 + $0x70] sm:$0xff]
  %v738 = vld [vmem:[#allocation2 + $0x78] sm:$0xff]
  %v739 = vld [vmem:[#allocation2 + $0x88] sm:$0xff]
  %v740 = vld [vmem:[#allocation2 + $0x90] sm:$0xff]
  %v741 = vld [vmem:[#allocation2 + $0x98] sm:$0xff]
  %v742 = vld [vmem:[#allocation2 + $0xa8] sm:$0xff]
  %v743 = vld [vmem:[#allocation2 + $0xb0] sm:$0xff]
  %v744 = vld [vmem:[#allocation2 + $0xb8] sm:$0xff]
  %745 = vset.pattern.permute.xlu0 6
  %746 = vperm.xlu0 %745, %v540
  %v747 = vpop.permute.xlu0 %746
  %749 = vset.pattern.permute.xlu0 6
  %750 = vperm.xlu0 %749, %v541
  %v751 = vpop.permute.xlu0 %750
  %753 = vset.pattern.permute.xlu0 6
  %754 = vperm.xlu0 %753, %v542
  %v755 = vpop.permute.xlu0 %754
  %v757 = vmul.f32 %v727, %v747
  %v758 = vmul.f32 %v728, %v747
  %v759 = vmul.f32 %v729, %v747
  %v760 = vmul.f32 %v730, %v751
  %v761 = vmul.f32 %v731, %v751
  %v762 = vmul.f32 %v732, %v751
  %v763 = vmul.f32 %v733, %v755
  %v764 = vmul.f32 %v734, %v755
  %v765 = vmul.f32 %v735, %v755
  %v766 = vmul.f32 %v736, %v747
  %v767 = vmul.f32 %v737, %v747
  %v768 = vmul.f32 %v738, %v747
  %v769 = vmul.f32 %v739, %v751
  %v770 = vmul.f32 %v740, %v751
  %v771 = vmul.f32 %v741, %v751
  %v772 = vmul.f32 %v742, %v755
  %v773 = vmul.f32 %v743, %v755
  %v774 = vmul.f32 %v744, %v755
  %793 = vrot.lane.b32.xlu0 %v757, 96
  %v794 = vpop.permute.xlu0 %793
  %795 = vrot.lane.b32.xlu0 %v758, 96
  %v796 = vpop.permute.xlu0 %795
  %797 = vrot.lane.b32.xlu0 %v759, 96
  %v798 = vpop.permute.xlu0 %797
  %799 = vrot.lane.b32.xlu0 %v760, 96
  %v800 = vpop.permute.xlu0 %799
  %801 = vrot.lane.b32.xlu0 %v761, 96
  %v802 = vpop.permute.xlu0 %801
  %803 = vrot.lane.b32.xlu0 %v762, 96
  %v804 = vpop.permute.xlu0 %803
  %805 = vrot.lane.b32.xlu0 %v763, 96
  %v806 = vpop.permute.xlu0 %805
  %807 = vrot.lane.b32.xlu0 %v764, 96
  %v808 = vpop.permute.xlu0 %807
  %809 = vrot.lane.b32.xlu0 %v765, 96
  %v810 = vpop.permute.xlu0 %809
  %811 = vrot.lane.b32.xlu0 %v766, 96
  %v812 = vpop.permute.xlu0 %811
  %813 = vrot.lane.b32.xlu0 %v767, 96
  %v814 = vpop.permute.xlu0 %813
  %815 = vrot.lane.b32.xlu0 %v768, 96
  %v816 = vpop.permute.xlu0 %815
  %817 = vrot.lane.b32.xlu0 %v769, 96
  %v818 = vpop.permute.xlu0 %817
  %819 = vrot.lane.b32.xlu0 %v770, 96
  %v820 = vpop.permute.xlu0 %819
  %821 = vrot.lane.b32.xlu0 %v771, 96
  %v822 = vpop.permute.xlu0 %821
  %823 = vrot.lane.b32.xlu0 %v772, 96
  %v824 = vpop.permute.xlu0 %823
  %825 = vrot.lane.b32.xlu0 %v773, 96
  %v826 = vpop.permute.xlu0 %825
  %827 = vrot.lane.b32.xlu0 %v774, 96
  %v828 = vpop.permute.xlu0 %827
  %vm829 = vcmask 785408
  %v830 = vsel %vm829, %v794, %v796
  %v831 = vsel %vm829, %v796, %v798
  %v832 = vsel %vm829, %v800, %v802
  %v833 = vsel %vm829, %v802, %v804
  %v834 = vsel %vm829, %v806, %v808
  %v835 = vsel %vm829, %v808, %v810
  %v836 = vsel %vm829, %v812, %v814
  %v837 = vsel %vm829, %v814, %v816
  %v838 = vsel %vm829, %v818, %v820
  %v839 = vsel %vm829, %v820, %v822
  %v840 = vsel %vm829, %v824, %v826
  %v841 = vsel %vm829, %v826, %v828
  %v860 = vadd.f32 %v709, %v794
  %v861 = vadd.f32 %v710, %v830
  %v862 = vadd.f32 %v711, %v831
  %v863 = vadd.f32 %v712, %v800
  %v864 = vadd.f32 %v713, %v832
  %v865 = vadd.f32 %v714, %v833
  %v866 = vadd.f32 %v715, %v806
  %v867 = vadd.f32 %v716, %v834
  %v868 = vadd.f32 %v717, %v835
  %v869 = vadd.f32 %v718, %v812
  %v870 = vadd.f32 %v719, %v836
  %v871 = vadd.f32 %v720, %v837
  %v872 = vadd.f32 %v721, %v818
  %v873 = vadd.f32 %v722, %v838
  %v874 = vadd.f32 %v723, %v839
  %v875 = vadd.f32 %v724, %v824
  %v876 = vadd.f32 %v725, %v840
  %v877 = vadd.f32 %v726, %v841
  %878 = vset.pattern.permute.xlu0 1
  %879 = vperm.xlu0 %878, %v540
  %v880 = vpop.permute.xlu0 %879
  %882 = vset.pattern.permute.xlu0 1
  %883 = vperm.xlu0 %882, %v541
  %v884 = vpop.permute.xlu0 %883
  %886 = vset.pattern.permute.xlu0 1
  %887 = vperm.xlu0 %886, %v542
  %v888 = vpop.permute.xlu0 %887
  %v890 = vmul.f32 %v543, %v880
  %v891 = vmul.f32 %v544, %v880
  %v892 = vmul.f32 %v545, %v880
  %v893 = vmul.f32 %v546, %v884
  %v894 = vmul.f32 %v547, %v884
  %v895 = vmul.f32 %v548, %v884
  %v896 = vmul.f32 %v549, %v888
  %v897 = vmul.f32 %v550, %v888
  %v898 = vmul.f32 %v551, %v888
  %v899 = vmul.f32 %v552, %v880
  %v900 = vmul.f32 %v553, %v880
  %v901 = vmul.f32 %v554, %v880
  %v902 = vmul.f32 %v555, %v884
  %v903 = vmul.f32 %v556, %v884
  %v904 = vmul.f32 %v557, %v884
  %v905 = vmul.f32 %v558, %v888
  %v906 = vmul.f32 %v559, %v888
  %v907 = vmul.f32 %v560, %v888
  %908 = vset.pattern.permute.xlu0 4
  %909 = vperm.xlu0 %908, %v540
  %v910 = vpop.permute.xlu0 %909
  %912 = vset.pattern.permute.xlu0 4
  %913 = vperm.xlu0 %912, %v541
  %v914 = vpop.permute.xlu0 %913
  %916 = vset.pattern.permute.xlu0 4
  %917 = vperm.xlu0 %916, %v542
  %v918 = vpop.permute.xlu0 %917
  %v920 = vmul.f32 %v544, %v910
  %v921 = vmul.f32 %v545, %v910
  %v922 = vmul.f32 %v547, %v914
  %v923 = vmul.f32 %v548, %v914
  %v924 = vmul.f32 %v550, %v918
  %v925 = vmul.f32 %v551, %v918
  %v926 = vmul.f32 %v553, %v910
  %v927 = vmul.f32 %v554, %v910
  %v928 = vmul.f32 %v556, %v914
  %v929 = vmul.f32 %v557, %v914
  %v930 = vmul.f32 %v559, %v918
  %v931 = vmul.f32 %v560, %v918
  %944 = vrot.lane.b32.xlu0 %v920, 112
  %v945 = vpop.permute.xlu0 %944
  %946 = vrot.lane.b32.xlu0 %v921, 112
  %v947 = vpop.permute.xlu0 %946
  %948 = vrot.lane.b32.xlu0 %v922, 112
  %v949 = vpop.permute.xlu0 %948
  %950 = vrot.lane.b32.xlu0 %v923, 112
  %v951 = vpop.permute.xlu0 %950
  %952 = vrot.lane.b32.xlu0 %v924, 112
  %v953 = vpop.permute.xlu0 %952
  %954 = vrot.lane.b32.xlu0 %v925, 112
  %v955 = vpop.permute.xlu0 %954
  %956 = vrot.lane.b32.xlu0 %v926, 112
  %v957 = vpop.permute.xlu0 %956
  %958 = vrot.lane.b32.xlu0 %v927, 112
  %v959 = vpop.permute.xlu0 %958
  %960 = vrot.lane.b32.xlu0 %v928, 112
  %v961 = vpop.permute.xlu0 %960
  %962 = vrot.lane.b32.xlu0 %v929, 112
  %v963 = vpop.permute.xlu0 %962
  %964 = vrot.lane.b32.xlu0 %v930, 112
  %v965 = vpop.permute.xlu0 %964
  %966 = vrot.lane.b32.xlu0 %v931, 112
  %v967 = vpop.permute.xlu0 %966
  %v968 = vsel %vm678, %v945, %v947
  %v969 = vsel %vm678, %v949, %v951
  %v970 = vsel %vm678, %v953, %v955
  %v971 = vsel %vm678, %v957, %v959
  %v972 = vsel %vm678, %v961, %v963
  %v973 = vsel %vm678, %v965, %v967
  %v992 = vadd.f32 %v890, %v945
  %v993 = vadd.f32 %v891, %v968
  %v994 = vadd.f32 %v892, %v947
  %v995 = vadd.f32 %v893, %v949
  %v996 = vadd.f32 %v894, %v969
  %v997 = vadd.f32 %v895, %v951
  %v998 = vadd.f32 %v896, %v953
  %v999 = vadd.f32 %v897, %v970
  %v1000 = vadd.f32 %v898, %v955
  %v1001 = vadd.f32 %v899, %v957
  %v1002 = vadd.f32 %v900, %v971
  %v1003 = vadd.f32 %v901, %v959
  %v1004 = vadd.f32 %v902, %v961
  %v1005 = vadd.f32 %v903, %v972
  %v1006 = vadd.f32 %v904, %v963
  %v1007 = vadd.f32 %v905, %v965
  %v1008 = vadd.f32 %v906, %v973
  %v1009 = vadd.f32 %v907, %v967
  %1010 = vset.pattern.permute.xlu0 7
  %1011 = vperm.xlu0 %1010, %v540
  %v1012 = vpop.permute.xlu0 %1011
  %1014 = vset.pattern.permute.xlu0 7
  %1015 = vperm.xlu0 %1014, %v541
  %v1016 = vpop.permute.xlu0 %1015
  %1018 = vset.pattern.permute.xlu0 7
  %1019 = vperm.xlu0 %1018, %v542
  %v1020 = vpop.permute.xlu0 %1019
  %v1022 = vmul.f32 %v727, %v1012
  %v1023 = vmul.f32 %v728, %v1012
  %v1024 = vmul.f32 %v729, %v1012
  %v1025 = vmul.f32 %v730, %v1016
  %v1026 = vmul.f32 %v731, %v1016
  %v1027 = vmul.f32 %v732, %v1016
  %v1028 = vmul.f32 %v733, %v1020
  %v1029 = vmul.f32 %v734, %v1020
  %v1030 = vmul.f32 %v735, %v1020
  %v1031 = vmul.f32 %v736, %v1012
  %v1032 = vmul.f32 %v737, %v1012
  %v1033 = vmul.f32 %v738, %v1012
  %v1034 = vmul.f32 %v739, %v1016
  %v1035 = vmul.f32 %v740, %v1016
  %v1036 = vmul.f32 %v741, %v1016
  %v1037 = vmul.f32 %v742, %v1020
  %v1038 = vmul.f32 %v743, %v1020
  %v1039 = vmul.f32 %v744, %v1020
  %1058 = vrot.lane.b32.xlu0 %v1022, 96
  %v1059 = vpop.permute.xlu0 %1058
  %1060 = vrot.lane.b32.xlu0 %v1023, 96
  %v1061 = vpop.permute.xlu0 %1060
  %1062 = vrot.lane.b32.xlu0 %v1024, 96
  %v1063 = vpop.permute.xlu0 %1062
  %1064 = vrot.lane.b32.xlu0 %v1025, 96
  %v1065 = vpop.permute.xlu0 %1064
  %1066 = vrot.lane.b32.xlu0 %v1026, 96
  %v1067 = vpop.permute.xlu0 %1066
  %1068 = vrot.lane.b32.xlu0 %v1027, 96
  %v1069 = vpop.permute.xlu0 %1068
  %1070 = vrot.lane.b32.xlu0 %v1028, 96
  %v1071 = vpop.permute.xlu0 %1070
  %1072 = vrot.lane.b32.xlu0 %v1029, 96
  %v1073 = vpop.permute.xlu0 %1072
  %1074 = vrot.lane.b32.xlu0 %v1030, 96
  %v1075 = vpop.permute.xlu0 %1074
  %1076 = vrot.lane.b32.xlu0 %v1031, 96
  %v1077 = vpop.permute.xlu0 %1076
  %1078 = vrot.lane.b32.xlu0 %v1032, 96
  %v1079 = vpop.permute.xlu0 %1078
  %1080 = vrot.lane.b32.xlu0 %v1033, 96
  %v1081 = vpop.permute.xlu0 %1080
  %1082 = vrot.lane.b32.xlu0 %v1034, 96
  %v1083 = vpop.permute.xlu0 %1082
  %1084 = vrot.lane.b32.xlu0 %v1035, 96
  %v1085 = vpop.permute.xlu0 %1084
  %1086 = vrot.lane.b32.xlu0 %v1036, 96
  %v1087 = vpop.permute.xlu0 %1086
  %1088 = vrot.lane.b32.xlu0 %v1037, 96
  %v1089 = vpop.permute.xlu0 %1088
  %1090 = vrot.lane.b32.xlu0 %v1038, 96
  %v1091 = vpop.permute.xlu0 %1090
  %1092 = vrot.lane.b32.xlu0 %v1039, 96
  %v1093 = vpop.permute.xlu0 %1092
  %v1094 = vsel %vm829, %v1059, %v1061
  %v1095 = vsel %vm829, %v1061, %v1063
  %v1096 = vsel %vm829, %v1065, %v1067
  %v1097 = vsel %vm829, %v1067, %v1069
  %v1098 = vsel %vm829, %v1071, %v1073
  %v1099 = vsel %vm829, %v1073, %v1075
  %v1100 = vsel %vm829, %v1077, %v1079
  %v1101 = vsel %vm829, %v1079, %v1081
  %v1102 = vsel %vm829, %v1083, %v1085
  %v1103 = vsel %vm829, %v1085, %v1087
  %v1104 = vsel %vm829, %v1089, %v1091
  %v1105 = vsel %vm829, %v1091, %v1093
  %v1124 = vadd.f32 %v992, %v1059
  %v1125 = vadd.f32 %v993, %v1094
  %v1126 = vadd.f32 %v994, %v1095
  %v1127 = vadd.f32 %v995, %v1065
  %v1128 = vadd.f32 %v996, %v1096
  %v1129 = vadd.f32 %v997, %v1097
  %v1130 = vadd.f32 %v998, %v1071
  %v1131 = vadd.f32 %v999, %v1098
  %v1132 = vadd.f32 %v1000, %v1099
  %v1133 = vadd.f32 %v1001, %v1077
  %v1134 = vadd.f32 %v1002, %v1100
  %v1135 = vadd.f32 %v1003, %v1101
  %v1136 = vadd.f32 %v1004, %v1083
  %v1137 = vadd.f32 %v1005, %v1102
  %v1138 = vadd.f32 %v1006, %v1103
  %v1139 = vadd.f32 %v1007, %v1089
  %v1140 = vadd.f32 %v1008, %v1104
  %v1141 = vadd.f32 %v1009, %v1105
  %1142 = vset.pattern.permute.xlu0 2
  %1143 = vperm.xlu0 %1142, %v540
  %v1144 = vpop.permute.xlu0 %1143
  %1146 = vset.pattern.permute.xlu0 2
  %1147 = vperm.xlu0 %1146, %v541
  %v1148 = vpop.permute.xlu0 %1147
  %1150 = vset.pattern.permute.xlu0 2
  %1151 = vperm.xlu0 %1150, %v542
  %v1152 = vpop.permute.xlu0 %1151
  %v1154 = vmul.f32 %v543, %v1144
  %v1155 = vmul.f32 %v544, %v1144
  %v1156 = vmul.f32 %v545, %v1144
  %v1157 = vmul.f32 %v546, %v1148
  %v1158 = vmul.f32 %v547, %v1148
  %v1159 = vmul.f32 %v548, %v1148
  %v1160 = vmul.f32 %v549, %v1152
  %v1161 = vmul.f32 %v550, %v1152
  %v1162 = vmul.f32 %v551, %v1152
  %v1163 = vmul.f32 %v552, %v1144
  %v1164 = vmul.f32 %v553, %v1144
  %v1165 = vmul.f32 %v554, %v1144
  %v1166 = vmul.f32 %v555, %v1148
  %v1167 = vmul.f32 %v556, %v1148
  %v1168 = vmul.f32 %v557, %v1148
  %v1169 = vmul.f32 %v558, %v1152
  %v1170 = vmul.f32 %v559, %v1152
  %v1171 = vmul.f32 %v560, %v1152
  %1172 = vset.pattern.permute.xlu0 5
  %1173 = vperm.xlu0 %1172, %v540
  %v1174 = vpop.permute.xlu0 %1173
  %1176 = vset.pattern.permute.xlu0 5
  %1177 = vperm.xlu0 %1176, %v541
  %v1178 = vpop.permute.xlu0 %1177
  %1180 = vset.pattern.permute.xlu0 5
  %1181 = vperm.xlu0 %1180, %v542
  %v1182 = vpop.permute.xlu0 %1181
  %v1184 = vmul.f32 %v727, %v1174
  %v1185 = vmul.f32 %v728, %v1174
  %v1186 = vmul.f32 %v729, %v1174
  %v1187 = vmul.f32 %v730, %v1178
  %v1188 = vmul.f32 %v731, %v1178
  %v1189 = vmul.f32 %v732, %v1178
  %v1190 = vmul.f32 %v733, %v1182
  %v1191 = vmul.f32 %v734, %v1182
  %v1192 = vmul.f32 %v735, %v1182
  %v1193 = vmul.f32 %v736, %v1174
  %v1194 = vmul.f32 %v737, %v1174
  %v1195 = vmul.f32 %v738, %v1174
  %v1196 = vmul.f32 %v739, %v1178
  %v1197 = vmul.f32 %v740, %v1178
  %v1198 = vmul.f32 %v741, %v1178
  %v1199 = vmul.f32 %v742, %v1182
  %v1200 = vmul.f32 %v743, %v1182
  %v1201 = vmul.f32 %v744, %v1182
  %1220 = vrot.lane.b32.xlu0 %v1184, 112
  %v1221 = vpop.permute.xlu0 %1220
  %1222 = vrot.lane.b32.xlu0 %v1185, 112
  %v1223 = vpop.permute.xlu0 %1222
  %1224 = vrot.lane.b32.xlu0 %v1186, 112
  %v1225 = vpop.permute.xlu0 %1224
  %1226 = vrot.lane.b32.xlu0 %v1187, 112
  %v1227 = vpop.permute.xlu0 %1226
  %1228 = vrot.lane.b32.xlu0 %v1188, 112
  %v1229 = vpop.permute.xlu0 %1228
  %1230 = vrot.lane.b32.xlu0 %v1189, 112
  %v1231 = vpop.permute.xlu0 %1230
  %1232 = vrot.lane.b32.xlu0 %v1190, 112
  %v1233 = vpop.permute.xlu0 %1232
  %1234 = vrot.lane.b32.xlu0 %v1191, 112
  %v1235 = vpop.permute.xlu0 %1234
  %1236 = vrot.lane.b32.xlu0 %v1192, 112
  %v1237 = vpop.permute.xlu0 %1236
  %1238 = vrot.lane.b32.xlu0 %v1193, 112
  %v1239 = vpop.permute.xlu0 %1238
  %1240 = vrot.lane.b32.xlu0 %v1194, 112
  %v1241 = vpop.permute.xlu0 %1240
  %1242 = vrot.lane.b32.xlu0 %v1195, 112
  %v1243 = vpop.permute.xlu0 %1242
  %1244 = vrot.lane.b32.xlu0 %v1196, 112
  %v1245 = vpop.permute.xlu0 %1244
  %1246 = vrot.lane.b32.xlu0 %v1197, 112
  %v1247 = vpop.permute.xlu0 %1246
  %1248 = vrot.lane.b32.xlu0 %v1198, 112
  %v1249 = vpop.permute.xlu0 %1248
  %1250 = vrot.lane.b32.xlu0 %v1199, 112
  %v1251 = vpop.permute.xlu0 %1250
  %1252 = vrot.lane.b32.xlu0 %v1200, 112
  %v1253 = vpop.permute.xlu0 %1252
  %1254 = vrot.lane.b32.xlu0 %v1201, 112
  %v1255 = vpop.permute.xlu0 %1254
  %v1256 = vsel %vm678, %v1221, %v1223
  %v1257 = vsel %vm678, %v1223, %v1225
  %v1258 = vsel %vm678, %v1227, %v1229
  %v1259 = vsel %vm678, %v1229, %v1231
  %v1260 = vsel %vm678, %v1233, %v1235
  %v1261 = vsel %vm678, %v1235, %v1237
  %v1262 = vsel %vm678, %v1239, %v1241
  %v1263 = vsel %vm678, %v1241, %v1243
  %v1264 = vsel %vm678, %v1245, %v1247
  %v1265 = vsel %vm678, %v1247, %v1249
  %v1266 = vsel %vm678, %v1251, %v1253
  %v1267 = vsel %vm678, %v1253, %v1255
  %v1286 = vadd.f32 %v1154, %v1221
  %v1287 = vadd.f32 %v1155, %v1256
  %v1288 = vadd.f32 %v1156, %v1257
  %v1289 = vadd.f32 %v1157, %v1227
  %v1290 = vadd.f32 %v1158, %v1258
  %v1291 = vadd.f32 %v1159, %v1259
  %v1292 = vadd.f32 %v1160, %v1233
  %v1293 = vadd.f32 %v1161, %v1260
  %v1294 = vadd.f32 %v1162, %v1261
  %v1295 = vadd.f32 %v1163, %v1239
  %v1296 = vadd.f32 %v1164, %v1262
  %v1297 = vadd.f32 %v1165, %v1263
  %v1298 = vadd.f32 %v1166, %v1245
  %v1299 = vadd.f32 %v1167, %v1264
  %v1300 = vadd.f32 %v1168, %v1265
  %v1301 = vadd.f32 %v1169, %v1251
  %v1302 = vadd.f32 %v1170, %v1266
  %v1303 = vadd.f32 %v1171, %v1267
  %1304 = vset.pattern.permute.xlu0 8
  %1305 = vperm.xlu0 %1304, %v540
  %v1306 = vpop.permute.xlu0 %1305
  %1308 = vset.pattern.permute.xlu0 8
  %1309 = vperm.xlu0 %1308, %v541
  %v1310 = vpop.permute.xlu0 %1309
  %1312 = vset.pattern.permute.xlu0 8
  %1313 = vperm.xlu0 %1312, %v542
  %v1314 = vpop.permute.xlu0 %1313
  %v1316 = vmul.f32 %v727, %v1306
  %v1317 = vmul.f32 %v728, %v1306
  %v1318 = vmul.f32 %v729, %v1306
  %v1319 = vmul.f32 %v730, %v1310
  %v1320 = vmul.f32 %v731, %v1310
  %v1321 = vmul.f32 %v732, %v1310
  %v1322 = vmul.f32 %v733, %v1314
  %v1323 = vmul.f32 %v734, %v1314
  %v1324 = vmul.f32 %v735, %v1314
  %v1325 = vmul.f32 %v736, %v1306
  %v1326 = vmul.f32 %v737, %v1306
  %v1327 = vmul.f32 %v738, %v1306
  %v1328 = vmul.f32 %v739, %v1310
  %v1329 = vmul.f32 %v740, %v1310
  %v1330 = vmul.f32 %v741, %v1310
  %v1331 = vmul.f32 %v742, %v1314
  %v1332 = vmul.f32 %v743, %v1314
  %v1333 = vmul.f32 %v744, %v1314
  %1352 = vrot.lane.b32.xlu0 %v1316, 96
  %v1353 = vpop.permute.xlu0 %1352
  %1354 = vrot.lane.b32.xlu0 %v1317, 96
  %v1355 = vpop.permute.xlu0 %1354
  %1356 = vrot.lane.b32.xlu0 %v1318, 96
  %v1357 = vpop.permute.xlu0 %1356
  %1358 = vrot.lane.b32.xlu0 %v1319, 96
  %v1359 = vpop.permute.xlu0 %1358
  %1360 = vrot.lane.b32.xlu0 %v1320, 96
  %v1361 = vpop.permute.xlu0 %1360
  %1362 = vrot.lane.b32.xlu0 %v1321, 96
  %v1363 = vpop.permute.xlu0 %1362
  %1364 = vrot.lane.b32.xlu0 %v1322, 96
  %v1365 = vpop.permute.xlu0 %1364
  %1366 = vrot.lane.b32.xlu0 %v1323, 96
  %v1367 = vpop.permute.xlu0 %1366
  %1368 = vrot.lane.b32.xlu0 %v1324, 96
  %v1369 = vpop.permute.xlu0 %1368
  %1370 = vrot.lane.b32.xlu0 %v1325, 96
  %v1371 = vpop.permute.xlu0 %1370
  %1372 = vrot.lane.b32.xlu0 %v1326, 96
  %v1373 = vpop.permute.xlu0 %1372
  %1374 = vrot.lane.b32.xlu0 %v1327, 96
  %v1375 = vpop.permute.xlu0 %1374
  %1376 = vrot.lane.b32.xlu0 %v1328, 96
  %v1377 = vpop.permute.xlu0 %1376
  %1378 = vrot.lane.b32.xlu0 %v1329, 96
  %v1379 = vpop.permute.xlu0 %1378
  %1380 = vrot.lane.b32.xlu0 %v1330, 96
  %v1381 = vpop.permute.xlu0 %1380
  %1382 = vrot.lane.b32.xlu0 %v1331, 96
  %v1383 = vpop.permute.xlu0 %1382
  %1384 = vrot.lane.b32.xlu0 %v1332, 96
  %v1385 = vpop.permute.xlu0 %1384
  %1386 = vrot.lane.b32.xlu0 %v1333, 96
  %v1387 = vpop.permute.xlu0 %1386
  %v1388 = vsel %vm829, %v1353, %v1355
  %v1389 = vsel %vm829, %v1355, %v1357
  %v1390 = vsel %vm829, %v1359, %v1361
  %v1391 = vsel %vm829, %v1361, %v1363
  %v1392 = vsel %vm829, %v1365, %v1367
  %v1393 = vsel %vm829, %v1367, %v1369
  %v1394 = vsel %vm829, %v1371, %v1373
  %v1395 = vsel %vm829, %v1373, %v1375
  %v1396 = vsel %vm829, %v1377, %v1379
  %v1397 = vsel %vm829, %v1379, %v1381
  %v1398 = vsel %vm829, %v1383, %v1385
  %v1399 = vsel %vm829, %v1385, %v1387
  %v1418 = vadd.f32 %v1286, %v1353
  %v1419 = vadd.f32 %v1287, %v1388
  %v1420 = vadd.f32 %v1288, %v1389
  %v1421 = vadd.f32 %v1289, %v1359
  %v1422 = vadd.f32 %v1290, %v1390
  %v1423 = vadd.f32 %v1291, %v1391
  %v1424 = vadd.f32 %v1292, %v1365
  %v1425 = vadd.f32 %v1293, %v1392
  %v1426 = vadd.f32 %v1294, %v1393
  %v1427 = vadd.f32 %v1295, %v1371
  %v1428 = vadd.f32 %v1296, %v1394
  %v1429 = vadd.f32 %v1297, %v1395
  %v1430 = vadd.f32 %v1298, %v1377
  %v1431 = vadd.f32 %v1299, %v1396
  %v1432 = vadd.f32 %v1300, %v1397
  %v1433 = vadd.f32 %v1301, %v1383
  %v1434 = vadd.f32 %v1302, %v1398
  %v1435 = vadd.f32 %v1303, %v1399
  %v1436 = vlaneseq
  %v1437 = vand.u32 %v1436, 127
  %v1438 = vadd.s32 %v1437, 128
  %vm1439 = vcmp.lt.s32.totalorder %v1437, 0
  %v1440 = vsub.s32 0, %v1437
  %v1441 = vsel %vm1439, %v1440, %v1437
  %v1442 = vshrl.u32 %v1441, 4
  %v1443 = vand.u32 %v1441, 15
  %v1444 = vsub.s32 0, %v1443
  %v1445 = vsel %vm1439, %v1444, %v1443
  %vm1446 = vcmp.lt.s32.totalorder %v1438, 0
  %v1447 = vsub.s32 0, %v1438
  %v1448 = vsel %vm1446, %v1447, %v1438
  %v1449 = vshrl.u32 %v1448, 4
  %v1450 = vand.u32 %v1448, 15
  %v1451 = vsub.s32 0, %v1450
  %v1452 = vsel %vm1446, %v1451, %v1450
  %vm1453 = vcmp.ne.s32.totalorder %v1445, 0
  %vm1454 = vcmp.ne.s32.totalorder %v1452, 0
  %vm1455 = vcmp.lt.s32.totalorder %v1445, 0
  %vm1456 = vcmp.lt.s32.totalorder %v1452, 0
  %vm1457 = vmand %vm1455, %vm1453
  %vm1458 = vmand %vm1456, %vm1454
  %v1459 = vadd.s32 %v1445, 16
  %v1460 = vadd.s32 %v1452, 16
  %v1461 = vsel %vm1457, %v1459, %v1445
  %v1462 = vsel %vm1458, %v1460, %v1452
  %vm1463 = vcmp.ge.s32.totalorder %v1461, 1
  %vm1464 = vcmp.ge.s32.totalorder %v1462, 1
  %v1465 = vsel %vm1463, 1, 0
  %v1466 = vsel %vm1464, 1, 0
  %vm1467 = vcmp.eq.s32.totalorder %v1465, 1
  %vm1468 = vcmp.eq.s32.totalorder %v1466, 1
  %1487 = vrot.lane.b32.xlu0 %v860, 17
  %v1488 = vpop.permute.xlu0 %1487
  %1489 = vrot.lane.b32.xlu0 %v861, 17
  %v1490 = vpop.permute.xlu0 %1489
  %1491 = vrot.lane.b32.xlu0 %v862, 17
  %v1492 = vpop.permute.xlu0 %1491
  %1493 = vrot.lane.b32.xlu0 %v863, 17
  %v1494 = vpop.permute.xlu0 %1493
  %1495 = vrot.lane.b32.xlu0 %v864, 17
  %v1496 = vpop.permute.xlu0 %1495
  %1497 = vrot.lane.b32.xlu0 %v865, 17
  %v1498 = vpop.permute.xlu0 %1497
  %1499 = vrot.lane.b32.xlu0 %v866, 17
  %v1500 = vpop.permute.xlu0 %1499
  %1501 = vrot.lane.b32.xlu0 %v867, 17
  %v1502 = vpop.permute.xlu0 %1501
  %1503 = vrot.lane.b32.xlu0 %v868, 17
  %v1504 = vpop.permute.xlu0 %1503
  %1505 = vrot.lane.b32.xlu0 %v869, 17
  %v1506 = vpop.permute.xlu0 %1505
  %1507 = vrot.lane.b32.xlu0 %v870, 17
  %v1508 = vpop.permute.xlu0 %1507
  %1509 = vrot.lane.b32.xlu0 %v871, 17
  %v1510 = vpop.permute.xlu0 %1509
  %1511 = vrot.lane.b32.xlu0 %v872, 17
  %v1512 = vpop.permute.xlu0 %1511
  %1513 = vrot.lane.b32.xlu0 %v873, 17
  %v1514 = vpop.permute.xlu0 %1513
  %1515 = vrot.lane.b32.xlu0 %v874, 17
  %v1516 = vpop.permute.xlu0 %1515
  %1517 = vrot.lane.b32.xlu0 %v875, 17
  %v1518 = vpop.permute.xlu0 %1517
  %1519 = vrot.lane.b32.xlu0 %v876, 17
  %v1520 = vpop.permute.xlu0 %1519
  %1521 = vrot.lane.b32.xlu0 %v877, 17
  %v1522 = vpop.permute.xlu0 %1521
  %vm1523 = vcmask 138240
  %v1524 = vsel %vm1523, %v1488, %v1490
  %v1525 = vsel %vm1523, %v1490, %v1492
  %v1526 = vsel %vm1523, %v1494, %v1496
  %v1527 = vsel %vm1523, %v1496, %v1498
  %v1528 = vsel %vm1523, %v1500, %v1502
  %v1529 = vsel %vm1523, %v1502, %v1504
  %v1530 = vsel %vm1523, %v1506, %v1508
  %v1531 = vsel %vm1523, %v1508, %v1510
  %v1532 = vsel %vm1523, %v1512, %v1514
  %v1533 = vsel %vm1523, %v1514, %v1516
  %v1534 = vsel %vm1523, %v1518, %v1520
  %v1535 = vsel %vm1523, %v1520, %v1522
  %v1548 = vsel %vm1467, %v1524, 0.0
  %v1549 = vsel %vm1468, %v1525, 0.0
  %v1550 = vsel %vm1467, %v1526, 0.0
  %v1551 = vsel %vm1468, %v1527, 0.0
  %v1552 = vsel %vm1467, %v1528, 0.0
  %v1553 = vsel %vm1468, %v1529, 0.0
  %v1554 = vsel %vm1467, %v1530, 0.0
  %v1555 = vsel %vm1468, %v1531, 0.0
  %v1556 = vsel %vm1467, %v1532, 0.0
  %v1557 = vsel %vm1468, %v1533, 0.0
  %v1558 = vsel %vm1467, %v1534, 0.0
  %v1559 = vsel %vm1468, %v1535, 0.0
  %1578 = vrot.lane.b32.xlu0 %v1124, 16
  %v1579 = vpop.permute.xlu0 %1578
  %1580 = vrot.lane.b32.xlu0 %v1125, 16
  %v1581 = vpop.permute.xlu0 %1580
  %1582 = vrot.lane.b32.xlu0 %v1126, 16
  %v1583 = vpop.permute.xlu0 %1582
  %1584 = vrot.lane.b32.xlu0 %v1127, 16
  %v1585 = vpop.permute.xlu0 %1584
  %1586 = vrot.lane.b32.xlu0 %v1128, 16
  %v1587 = vpop.permute.xlu0 %1586
  %1588 = vrot.lane.b32.xlu0 %v1129, 16
  %v1589 = vpop.permute.xlu0 %1588
  %1590 = vrot.lane.b32.xlu0 %v1130, 16
  %v1591 = vpop.permute.xlu0 %1590
  %1592 = vrot.lane.b32.xlu0 %v1131, 16
  %v1593 = vpop.permute.xlu0 %1592
  %1594 = vrot.lane.b32.xlu0 %v1132, 16
  %v1595 = vpop.permute.xlu0 %1594
  %1596 = vrot.lane.b32.xlu0 %v1133, 16
  %v1597 = vpop.permute.xlu0 %1596
  %1598 = vrot.lane.b32.xlu0 %v1134, 16
  %v1599 = vpop.permute.xlu0 %1598
  %1600 = vrot.lane.b32.xlu0 %v1135, 16
  %v1601 = vpop.permute.xlu0 %1600
  %1602 = vrot.lane.b32.xlu0 %v1136, 16
  %v1603 = vpop.permute.xlu0 %1602
  %1604 = vrot.lane.b32.xlu0 %v1137, 16
  %v1605 = vpop.permute.xlu0 %1604
  %1606 = vrot.lane.b32.xlu0 %v1138, 16
  %v1607 = vpop.permute.xlu0 %1606
  %1608 = vrot.lane.b32.xlu0 %v1139, 16
  %v1609 = vpop.permute.xlu0 %1608
  %1610 = vrot.lane.b32.xlu0 %v1140, 16
  %v1611 = vpop.permute.xlu0 %1610
  %1612 = vrot.lane.b32.xlu0 %v1141, 16
  %v1613 = vpop.permute.xlu0 %1612
  %vm1614 = vcmask 130048
  %v1615 = vsel %vm1614, %v1579, %v1581
  %v1616 = vsel %vm1614, %v1581, %v1583
  %v1617 = vsel %vm1614, %v1585, %v1587
  %v1618 = vsel %vm1614, %v1587, %v1589
  %v1619 = vsel %vm1614, %v1591, %v1593
  %v1620 = vsel %vm1614, %v1593, %v1595
  %v1621 = vsel %vm1614, %v1597, %v1599
  %v1622 = vsel %vm1614, %v1599, %v1601
  %v1623 = vsel %vm1614, %v1603, %v1605
  %v1624 = vsel %vm1614, %v1605, %v1607
  %v1625 = vsel %vm1614, %v1609, %v1611
  %v1626 = vsel %vm1614, %v1611, %v1613
  %v1639 = vadd.f32 %v1548, %v1615
  %v1640 = vadd.f32 %v1549, %v1616
  %v1641 = vadd.f32 %v1550, %v1617
  %v1642 = vadd.f32 %v1551, %v1618
  %v1643 = vadd.f32 %v1552, %v1619
  %v1644 = vadd.f32 %v1553, %v1620
  %v1645 = vadd.f32 %v1554, %v1621
  %v1646 = vadd.f32 %v1555, %v1622
  %v1647 = vadd.f32 %v1556, %v1623
  %v1648 = vadd.f32 %v1557, %v1624
  %v1649 = vadd.f32 %v1558, %v1625
  %v1650 = vadd.f32 %v1559, %v1626
  %vm1651 = vcmp.le.s32.totalorder %v1461, 14
  %vm1652 = vcmp.le.s32.totalorder %v1462, 14
  %v1653 = vsel %vm1651, 1, 0
  %v1654 = vsel %vm1652, 1, 0
  %vm1655 = vcmp.eq.s32.totalorder %v1653, 1
  %vm1656 = vcmp.eq.s32.totalorder %v1654, 1
  %1675 = vrot.lane.b32.xlu0 %v1418, 15
  %v1676 = vpop.permute.xlu0 %1675
  %1677 = vrot.lane.b32.xlu0 %v1419, 15
  %v1678 = vpop.permute.xlu0 %1677
  %1679 = vrot.lane.b32.xlu0 %v1420, 15
  %v1680 = vpop.permute.xlu0 %1679
  %1681 = vrot.lane.b32.xlu0 %v1421, 15
  %v1682 = vpop.permute.xlu0 %1681
  %1683 = vrot.lane.b32.xlu0 %v1422, 15
  %v1684 = vpop.permute.xlu0 %1683
  %1685 = vrot.lane.b32.xlu0 %v1423, 15
  %v1686 = vpop.permute.xlu0 %1685
  %1687 = vrot.lane.b32.xlu0 %v1424, 15
  %v1688 = vpop.permute.xlu0 %1687
  %1689 = vrot.lane.b32.xlu0 %v1425, 15
  %v1690 = vpop.permute.xlu0 %1689
  %1691 = vrot.lane.b32.xlu0 %v1426, 15
  %v1692 = vpop.permute.xlu0 %1691
  %1693 = vrot.lane.b32.xlu0 %v1427, 15
  %v1694 = vpop.permute.xlu0 %1693
  %1695 = vrot.lane.b32.xlu0 %v1428, 15
  %v1696 = vpop.permute.xlu0 %1695
  %1697 = vrot.lane.b32.xlu0 %v1429, 15
  %v1698 = vpop.permute.xlu0 %1697
  %1699 = vrot.lane.b32.xlu0 %v1430, 15
  %v1700 = vpop.permute.xlu0 %1699
  %1701 = vrot.lane.b32.xlu0 %v1431, 15
  %v1702 = vpop.permute.xlu0 %1701
  %1703 = vrot.lane.b32.xlu0 %v1432, 15
  %v1704 = vpop.permute.xlu0 %1703
  %1705 = vrot.lane.b32.xlu0 %v1433, 15
  %v1706 = vpop.permute.xlu0 %1705
  %1707 = vrot.lane.b32.xlu0 %v1434, 15
  %v1708 = vpop.permute.xlu0 %1707
  %1709 = vrot.lane.b32.xlu0 %v1435, 15
  %v1710 = vpop.permute.xlu0 %1709
  %vm1711 = vcmask 121856
  %v1712 = vsel %vm1711, %v1676, %v1678
  %v1713 = vsel %vm1711, %v1678, %v1680
  %v1714 = vsel %vm1711, %v1682, %v1684
  %v1715 = vsel %vm1711, %v1684, %v1686
  %v1716 = vsel %vm1711, %v1688, %v1690
  %v1717 = vsel %vm1711, %v1690, %v1692
  %v1718 = vsel %vm1711, %v1694, %v1696
  %v1719 = vsel %vm1711, %v1696, %v1698
  %v1720 = vsel %vm1711, %v1700, %v1702
  %v1721 = vsel %vm1711, %v1702, %v1704
  %v1722 = vsel %vm1711, %v1706, %v1708
  %v1723 = vsel %vm1711, %v1708, %v1710
  %v1736 = vsel %vm1655, %v1712, 0.0
  %v1737 = vsel %vm1656, %v1713, 0.0
  %v1738 = vsel %vm1655, %v1714, 0.0
  %v1739 = vsel %vm1656, %v1715, 0.0
  %v1740 = vsel %vm1655, %v1716, 0.0
  %v1741 = vsel %vm1656, %v1717, 0.0
  %v1742 = vsel %vm1655, %v1718, 0.0
  %v1743 = vsel %vm1656, %v1719, 0.0
  %v1744 = vsel %vm1655, %v1720, 0.0
  %v1745 = vsel %vm1656, %v1721, 0.0
  %v1746 = vsel %vm1655, %v1722, 0.0
  %v1747 = vsel %vm1656, %v1723, 0.0
  %v1748 = vadd.f32 %v1639, %v1736
  %v1749 = vadd.f32 %v1640, %v1737
  %v1750 = vadd.f32 %v1641, %v1738
  %v1751 = vadd.f32 %v1642, %v1739
  %v1752 = vadd.f32 %v1643, %v1740
  %v1753 = vadd.f32 %v1644, %v1741
  %v1754 = vadd.f32 %v1645, %v1742
  %v1755 = vadd.f32 %v1646, %v1743
  %v1756 = vadd.f32 %v1647, %v1744
  %v1757 = vadd.f32 %v1648, %v1745
  %v1758 = vadd.f32 %v1649, %v1746
  %v1759 = vadd.f32 %v1650, %v1747
  %v1760 = vld [vmem:[%s5] sm:$0xff]
  %v1761 = vld [vmem:[%s5 + $0x8] sm:$0xff]
  %v1762 = vld [vmem:[%s5 + $0x10] sm:$0xff]
  %v1763 = vld [vmem:[%s6] sm:$0xff]
  %v1764 = vld [vmem:[%s6 + $0x8] sm:$0xff]
  %v1765 = vld [vmem:[%s6 + $0x10] sm:$0xff]
  %v1766 = vadd.f32 %v1748, %v1749
  %1767 = vadd.xlane.f32.xlu0 %v1766
  %v1768 = vpop.xlane.xlu0 %1767
  %v1769 = vadd.f32 %v1750, %v1751
  %1770 = vadd.xlane.f32.xlu0 %v1769
  %v1771 = vpop.xlane.xlu0 %1770
  %v1772 = vadd.f32 %v1752, %v1753
  %1773 = vadd.xlane.f32.xlu0 %v1772
  %v1774 = vpop.xlane.xlu0 %1773
  %v1775 = vadd.f32 %v1754, %v1755
  %1776 = vadd.xlane.f32.xlu0 %v1775
  %v1777 = vpop.xlane.xlu0 %1776
  %v1778 = vadd.f32 %v1756, %v1757
  %1779 = vadd.xlane.f32.xlu0 %v1778
  %v1780 = vpop.xlane.xlu0 %1779
  %v1781 = vadd.f32 %v1758, %v1759
  %1782 = vadd.xlane.f32.xlu0 %v1781
  %v1783 = vpop.xlane.xlu0 %1782
  %v1784 = vadd.f32 %v1768, %v1777
  %v1785 = vadd.f32 %v1771, %v1780
  %v1786 = vadd.f32 %v1774, %v1783
  %v1787 = vmul.f32 %v1748, %v1748
  %v1788 = vmul.f32 %v1749, %v1749
  %v1789 = vmul.f32 %v1750, %v1750
  %v1790 = vmul.f32 %v1751, %v1751
  %v1791 = vmul.f32 %v1752, %v1752
  %v1792 = vmul.f32 %v1753, %v1753
  %v1793 = vmul.f32 %v1754, %v1754
  %v1794 = vmul.f32 %v1755, %v1755
  %v1795 = vmul.f32 %v1756, %v1756
  %v1796 = vmul.f32 %v1757, %v1757
  %v1797 = vmul.f32 %v1758, %v1758
  %v1798 = vmul.f32 %v1759, %v1759
  %v1799 = vadd.f32 %v1787, %v1788
  %1800 = vadd.xlane.f32.xlu0 %v1799
  %v1801 = vpop.xlane.xlu0 %1800
  %v1802 = vadd.f32 %v1789, %v1790
  %1803 = vadd.xlane.f32.xlu0 %v1802
  %v1804 = vpop.xlane.xlu0 %1803
  %v1805 = vadd.f32 %v1791, %v1792
  %1806 = vadd.xlane.f32.xlu0 %v1805
  %v1807 = vpop.xlane.xlu0 %1806
  %v1808 = vadd.f32 %v1793, %v1794
  %1809 = vadd.xlane.f32.xlu0 %v1808
  %v1810 = vpop.xlane.xlu0 %1809
  %v1811 = vadd.f32 %v1795, %v1796
  %1812 = vadd.xlane.f32.xlu0 %v1811
  %v1813 = vpop.xlane.xlu0 %1812
  %v1814 = vadd.f32 %v1797, %v1798
  %1815 = vadd.xlane.f32.xlu0 %v1814
  %v1816 = vpop.xlane.xlu0 %1815
  %v1817 = vadd.f32 %v1801, %v1810
  %v1818 = vadd.f32 %v1804, %v1813
  %v1819 = vadd.f32 %v1807, %v1816
  %v1820 = vmul.f32 %v1784, 0.001953125
  %v1821 = vmul.f32 %v1785, 0.001953125
  %v1822 = vmul.f32 %v1786, 0.001953125
  %v1823 = vmul.f32 %v1817, 0.001953125
  %v1824 = vmul.f32 %v1818, 0.001953125
  %v1825 = vmul.f32 %v1819, 0.001953125
  %v1826 = vmul.f32 %v1820, %v1820
  %v1827 = vmul.f32 %v1821, %v1821
  %v1828 = vmul.f32 %v1822, %v1822
  %v1829 = vsub.f32 %v1823, %v1826
  %v1830 = vsub.f32 %v1824, %v1827
  %v1831 = vsub.f32 %v1825, %v1828
  %v1832 = vsub.f32 %v1748, %v1820
  %v1833 = vsub.f32 %v1749, %v1820
  %v1834 = vsub.f32 %v1750, %v1821
  %v1835 = vsub.f32 %v1751, %v1821
  %v1836 = vsub.f32 %v1752, %v1822
  %v1837 = vsub.f32 %v1753, %v1822
  %v1838 = vsub.f32 %v1754, %v1820
  %v1839 = vsub.f32 %v1755, %v1820
  %v1840 = vsub.f32 %v1756, %v1821
  %v1841 = vsub.f32 %v1757, %v1821
  %v1842 = vsub.f32 %v1758, %v1822
  %v1843 = vsub.f32 %v1759, %v1822
  %v1844 = vadd.f32 %v1829, 1e-05
  %v1845 = vadd.f32 %v1830, 1e-05
  %v1846 = vadd.f32 %v1831, 1e-05
  %v1847 = vrsqrt.pop %v1844
  %v1848 = vrsqrt.pop %v1845
  %v1849 = vrsqrt.pop %v1846
  %v1850 = vmul.f32 %v1847, %v1760
  %v1851 = vmul.f32 %v1848, %v1761
  %v1852 = vmul.f32 %v1849, %v1762
  %1854 = vset.pattern.permute.xlu0 0
  %1855 = vperm.xlu0 %1854, %v1850
  %v1856 = vpop.permute.xlu0 %1855
  %1859 = vset.pattern.permute.xlu0 0
  %1860 = vperm.xlu0 %1859, %v1851
  %v1861 = vpop.permute.xlu0 %1860
  %1864 = vset.pattern.permute.xlu0 0
  %1865 = vperm.xlu0 %1864, %v1852
  %v1866 = vpop.permute.xlu0 %1865
  %v1868 = vmul.f32 %v1832, %v1856
  %v1869 = vmul.f32 %v1833, %v1856
  %v1870 = vmul.f32 %v1834, %v1861
  %v1871 = vmul.f32 %v1835, %v1861
  %v1872 = vmul.f32 %v1836, %v1866
  %v1873 = vmul.f32 %v1837, %v1866
  %v1874 = vmul.f32 %v1838, %v1856
  %v1875 = vmul.f32 %v1839, %v1856
  %v1876 = vmul.f32 %v1840, %v1861
  %v1877 = vmul.f32 %v1841, %v1861
  %v1878 = vmul.f32 %v1842, %v1866
  %v1879 = vmul.f32 %v1843, %v1866
  %1881 = vset.pattern.permute.xlu0 0
  %1882 = vperm.xlu0 %1881, %v1763
  %v1883 = vpop.permute.xlu0 %1882
  %1886 = vset.pattern.permute.xlu0 0
  %1887 = vperm.xlu0 %1886, %v1764
  %v1888 = vpop.permute.xlu0 %1887
  %1891 = vset.pattern.permute.xlu0 0
  %1892 = vperm.xlu0 %1891, %v1765
  %v1893 = vpop.permute.xlu0 %1892
  %v1895 = vadd.f32 %v1868, %v1883
  %v1896 = vadd.f32 %v1869, %v1883
  %v1897 = vadd.f32 %v1870, %v1888
  %v1898 = vadd.f32 %v1871, %v1888
  %v1899 = vadd.f32 %v1872, %v1893
  %v1900 = vadd.f32 %v1873, %v1893
  %v1901 = vadd.f32 %v1874, %v1883
  %v1902 = vadd.f32 %v1875, %v1883
  %v1903 = vadd.f32 %v1876, %v1888
  %v1904 = vadd.f32 %v1877, %v1888
  %v1905 = vadd.f32 %v1878, %v1893
  %v1906 = vadd.f32 %v1879, %v1893
  %v1907 = vmax.f32 %v1895, 0.0
  %v1908 = vmax.f32 %v1896, 0.0
  %v1909 = vmax.f32 %v1897, 0.0
  %v1910 = vmax.f32 %v1898, 0.0
  %v1911 = vmax.f32 %v1899, 0.0
  %v1912 = vmax.f32 %v1900, 0.0
  %v1913 = vmax.f32 %v1901, 0.0
  %v1914 = vmax.f32 %v1902, 0.0
  %v1915 = vmax.f32 %v1903, 0.0
  %v1916 = vmax.f32 %v1904, 0.0
  %v1917 = vmax.f32 %v1905, 0.0
  %v1918 = vmax.f32 %v1906, 0.0
  %v1919 = vmin.f32 %v1907, 6.0
  %v1920 = vmin.f32 %v1908, 6.0
  %v1921 = vmin.f32 %v1909, 6.0
  %v1922 = vmin.f32 %v1910, 6.0
  %v1923 = vmin.f32 %v1911, 6.0
  %v1924 = vmin.f32 %v1912, 6.0
  %v1925 = vmin.f32 %v1913, 6.0
  %v1926 = vmin.f32 %v1914, 6.0
  %v1927 = vmin.f32 %v1915, 6.0
  %v1928 = vmin.f32 %v1916, 6.0
  %v1929 = vmin.f32 %v1917, 6.0
  %v1930 = vmin.f32 %v1918, 6.0
  %v1931 = vadd.f32 %v1919, %v1920
  %1932 = vadd.xlane.f32.xlu0 %v1931
  %v1933 = vpop.xlane.xlu0 %1932
  %v1934 = vadd.f32 %v1921, %v1922
  %1935 = vadd.xlane.f32.xlu0 %v1934
  %v1936 = vpop.xlane.xlu0 %1935
  %v1937 = vadd.f32 %v1923, %v1924
  %1938 = vadd.xlane.f32.xlu0 %v1937
  %v1939 = vpop.xlane.xlu0 %1938
  %v1940 = vadd.f32 %v1925, %v1926
  %1941 = vadd.xlane.f32.xlu0 %v1940
  %v1942 = vpop.xlane.xlu0 %1941
  %v1943 = vadd.f32 %v1927, %v1928
  %1944 = vadd.xlane.f32.xlu0 %v1943
  %v1945 = vpop.xlane.xlu0 %1944
  %v1946 = vadd.f32 %v1929, %v1930
  %1947 = vadd.xlane.f32.xlu0 %v1946
  %v1948 = vpop.xlane.xlu0 %1947
  %v1949 = vmul.f32 %v1933, 0.00390625
  %v1950 = vmul.f32 %v1936, 0.00390625
  %v1951 = vmul.f32 %v1939, 0.00390625
  %v1952 = vmul.f32 %v1942, 0.00390625
  %v1953 = vmul.f32 %v1945, 0.00390625
  %v1954 = vmul.f32 %v1948, 0.00390625
  %v1955 = vld [vmem:[%s7] sm:$0xff]
  %v1956 = vld [vmem:[%s7 + $0x8] sm:$0xff]
  %v1957 = vld [vmem:[%s7 + $0x10] sm:$0xff]
  %v1958 = vmul.f32 %v1949, %v1955
  %v1959 = vmul.f32 %v1950, %v1956
  %v1960 = vmul.f32 %v1951, %v1957
  %v1961 = vmul.f32 %v1952, %v1955
  %v1962 = vmul.f32 %v1953, %v1956
  %v1963 = vmul.f32 %v1954, %v1957
  %vm1964 = vcmask 64512
  %v1965 = vsel %vm1964, %v1958, 0.0
  %v1966 = vsel %vm1964, %v1959, 0.0
  %v1967 = vadd.f32 %v1965, %v1966
  %v1968 = vsel %vm1964, %v1960, 0.0
  %v1969 = vadd.f32 %v1967, %v1968
  %v1970 = vrot.slane %v1969, 4
  %v1971 = vadd.f32 %v1969, %v1970
  %v1972 = vrot.slane %v1971, 2
  %v1973 = vadd.f32 %v1971, %v1972
  %v1974 = vrot.slane %v1973, 1
  %v1975 = vadd.f32 %v1973, %v1974
  %v1976 = vsel %vm1964, %v1961, 0.0
  %v1977 = vsel %vm1964, %v1962, 0.0
  %v1978 = vadd.f32 %v1976, %v1977
  %v1979 = vsel %vm1964, %v1963, 0.0
  %v1980 = vadd.f32 %v1978, %v1979
  %v1981 = vrot.slane %v1980, 4
  %v1982 = vadd.f32 %v1980, %v1981
  %v1983 = vrot.slane %v1982, 2
  %v1984 = vadd.f32 %v1982, %v1983
  %v1985 = vrot.slane %v1984, 1
  %v1986 = vadd.f32 %v1984, %v1985
  %v1987 = vld [vmem:[%s8] sm:$0x1]
  %v1988 = vadd.f32 %v1975, %v1987
  %v1989 = vadd.f32 %v1986, %v1987
  %v1990 = vmax.f32 %v1988, 0.0
  %v1991 = vmax.f32 %v1989, 0.0
  %v1992 = vld [vmem:[%s9] sm:$0xff]
  %v1993 = vld [vmem:[%s9 + $0x8] sm:$0xff]
  %v1994 = vld [vmem:[%s9 + $0x10] sm:$0xff]
  %v1995 = vlaneseq
  %v1996 = vshrl.u32 %v1995, 7
  %v1997 = vsub.s32 0, %v1996
  %v1998 = vrot.slane %v1990, %v1997
  %v1999 = vlaneseq
  %v2000 = vshrl.u32 %v1999, 7
  %v2001 = vsub.s32 0, %v2000
  %v2002 = vrot.slane %v1991, %v2001
  %v2003 = vmul.f32 %v1998, %v1992
  %v2004 = vmul.f32 %v1998, %v1993
  %v2005 = vmul.f32 %v1998, %v1994
  %v2006 = vmul.f32 %v2002, %v1992
  %v2007 = vmul.f32 %v2002, %v1993
  %v2008 = vmul.f32 %v2002, %v1994
  %v2009 = vsel %vm1964, %v2003, 0.0
  %2010 = vadd.xlane.f32.xlu0 %v2009
  %v2011 = vpop.xlane.xlu0 %2010
  %v2012 = vsel %vm1964, %v2004, 0.0
  %2013 = vadd.xlane.f32.xlu0 %v2012
  %v2014 = vpop.xlane.xlu0 %2013
  %v2015 = vsel %vm1964, %v2005, 0.0
  %2016 = vadd.xlane.f32.xlu0 %v2015
  %v2017 = vpop.xlane.xlu0 %2016
  %v2018 = vsel %vm1964, %v2006, 0.0
  %2019 = vadd.xlane.f32.xlu0 %v2018
  %v2020 = vpop.xlane.xlu0 %2019
  %v2021 = vsel %vm1964, %v2007, 0.0
  %2022 = vadd.xlane.f32.xlu0 %v2021
  %v2023 = vpop.xlane.xlu0 %2022
  %v2024 = vsel %vm1964, %v2008, 0.0
  %2025 = vadd.xlane.f32.xlu0 %v2024
  %v2026 = vpop.xlane.xlu0 %2025
  %v2027 = vld [vmem:[%s10] sm:$0xff]
  %v2028 = vld [vmem:[%s10 + $0x8] sm:$0xff]
  %v2029 = vld [vmem:[%s10 + $0x10] sm:$0xff]
  %v2030 = vadd.f32 %v2011, %v2027
  %v2031 = vadd.f32 %v2014, %v2028
  %v2032 = vadd.f32 %v2017, %v2029
  %v2033 = vadd.f32 %v2020, %v2027
  %v2034 = vadd.f32 %v2023, %v2028
  %v2035 = vadd.f32 %v2026, %v2029
  %v2036 = vxor.u32 %v2030, 2147483648
  %v2037 = vxor.u32 %v2031, 2147483648
  %v2038 = vxor.u32 %v2032, 2147483648
  %v2039 = vxor.u32 %v2033, 2147483648
  %v2040 = vxor.u32 %v2034, 2147483648
  %v2041 = vxor.u32 %v2035, 2147483648
  %v2042 = vmul.f32 %v2036, 1.442695
  %v2043 = vpow.pop %v2042
  %v2044 = vmul.f32 %v2037, 1.442695
  %v2045 = vpow.pop %v2044
  %v2046 = vmul.f32 %v2038, 1.442695
  %v2047 = vpow.pop %v2046
  %v2048 = vmul.f32 %v2039, 1.442695
  %v2049 = vpow.pop %v2048
  %v2050 = vmul.f32 %v2040, 1.442695
  %v2051 = vpow.pop %v2050
  %v2052 = vmul.f32 %v2041, 1.442695
  %v2053 = vpow.pop %v2052
  %v2054 = vadd.f32 %v2043, 1.0
  %v2055 = vadd.f32 %v2045, 1.0
  %v2056 = vadd.f32 %v2047, 1.0
  %v2057 = vadd.f32 %v2049, 1.0
  %v2058 = vadd.f32 %v2051, 1.0
  %v2059 = vadd.f32 %v2053, 1.0
  %v2060 = vrcp.pop %v2054
  %v2061 = vmul.f32 1.0, %v2060
  %v2062 = vrcp.pop %v2055
  %v2063 = vmul.f32 1.0, %v2062
  %v2064 = vrcp.pop %v2056
  %v2065 = vmul.f32 1.0, %v2064
  %v2066 = vrcp.pop %v2057
  %v2067 = vmul.f32 1.0, %v2066
  %v2068 = vrcp.pop %v2058
  %v2069 = vmul.f32 1.0, %v2068
  %v2070 = vrcp.pop %v2059
  %v2071 = vmul.f32 1.0, %v2070
  %2073 = vset.pattern.permute.xlu0 0
  %2074 = vperm.xlu0 %2073, %v2061
  %v2075 = vpop.permute.xlu0 %2074
  %2078 = vset.pattern.permute.xlu0 0
  %2079 = vperm.xlu0 %2078, %v2063
  %v2080 = vpop.permute.xlu0 %2079
  %2083 = vset.pattern.permute.xlu0 0
  %2084 = vperm.xlu0 %2083, %v2065
  %v2085 = vpop.permute.xlu0 %2084
  %2088 = vset.pattern.permute.xlu0 0
  %2089 = vperm.xlu0 %2088, %v2067
  %v2090 = vpop.permute.xlu0 %2089
  %2093 = vset.pattern.permute.xlu0 0
  %2094 = vperm.xlu0 %2093, %v2069
  %v2095 = vpop.permute.xlu0 %2094
  %2098 = vset.pattern.permute.xlu0 0
  %2099 = vperm.xlu0 %2098, %v2071
  %v2100 = vpop.permute.xlu0 %2099
  %v2102 = vmul.f32 %v1919, %v2075
  %v2103 = vmul.f32 %v1920, %v2075
  %v2104 = vmul.f32 %v1921, %v2080
  %v2105 = vmul.f32 %v1922, %v2080
  %v2106 = vmul.f32 %v1923, %v2085
  %v2107 = vmul.f32 %v1924, %v2085
  %v2108 = vmul.f32 %v1925, %v2090
  %v2109 = vmul.f32 %v1926, %v2090
  %v2110 = vmul.f32 %v1927, %v2095
  %v2111 = vmul.f32 %v1928, %v2095
  %v2112 = vmul.f32 %v1929, %v2100
  %v2113 = vmul.f32 %v1930, %v2100
  %v2114 = vld [vmem:[%s11] sm:$0xf]
  %v2115 = vlaneseq
  %v2116 = vshrl.u32 %v2115, 7
  %v2117 = vsub.s32 0, %v2116
  %v2118 = vrot.slane %v2102, %v2117
  %v2119 = vlaneseq
  %v2120 = vshrl.u32 %v2119, 7
  %v2121 = vsub.s32 0, %v2120
  %v2122 = vrot.slane %v2103, %v2121
  %v2123 = vlaneseq
  %v2124 = vshrl.u32 %v2123, 7
  %v2125 = vsub.s32 0, %v2124
  %v2126 = vrot.slane %v2108, %v2125
  %v2127 = vlaneseq
  %v2128 = vshrl.u32 %v2127, 7
  %v2129 = vsub.s32 0, %v2128
  %v2130 = vrot.slane %v2109, %v2129
  %2132 = vset.pattern.permute.xlu0 0
  %2133 = vperm.xlu0 %2132, %v2114
  %v2134 = vpop.permute.xlu0 %2133
  %v2136 = vmul.f32 %v2118, %v2134
  %v2137 = vmul.f32 %v2122, %v2134
  %v2138 = vmul.f32 %v2126, %v2134
  %v2139 = vmul.f32 %v2130, %v2134
  %v2140 = vadd.f32 %v2136, 0.0
  %v2141 = vadd.f32 %v2137, 0.0
  %v2142 = vadd.f32 %v2138, 0.0
  %v2143 = vadd.f32 %v2139, 0.0
  %v2144 = vlaneseq
  %v2145 = vshrl.u32 %v2144, 7
  %v2146 = vsub.s32 1, %v2145
  %v2147 = vrot.slane %v2102, %v2146
  %v2148 = vlaneseq
  %v2149 = vshrl.u32 %v2148, 7
  %v2150 = vsub.s32 1, %v2149
  %v2151 = vrot.slane %v2103, %v2150
  %v2152 = vlaneseq
  %v2153 = vshrl.u32 %v2152, 7
  %v2154 = vsub.s32 1, %v2153
  %v2155 = vrot.slane %v2108, %v2154
  %v2156 = vlaneseq
  %v2157 = vshrl.u32 %v2156, 7
  %v2158 = vsub.s32 1, %v2157
  %v2159 = vrot.slane %v2109, %v2158
  %2160 = vset.pattern.permute.xlu0 1
  %2161 = vperm.xlu0 %2160, %v2114
  %v2162 = vpop.permute.xlu0 %2161
  %v2164 = vmul.f32 %v2147, %v2162
  %v2165 = vmul.f32 %v2151, %v2162
  %v2166 = vmul.f32 %v2155, %v2162
  %v2167 = vmul.f32 %v2159, %v2162
  %v2168 = vadd.f32 %v2140, %v2164
  %v2169 = vadd.f32 %v2141, %v2165
  %v2170 = vadd.f32 %v2142, %v2166
  %v2171 = vadd.f32 %v2143, %v2167
  %v2172 = vlaneseq
  %v2173 = vshrl.u32 %v2172, 7
  %v2174 = vsub.s32 2, %v2173
  %v2175 = vrot.slane %v2102, %v2174
  %v2176 = vlaneseq
  %v2177 = vshrl.u32 %v2176, 7
  %v2178 = vsub.s32 2, %v2177
  %v2179 = vrot.slane %v2103, %v2178
  %v2180 = vlaneseq
  %v2181 = vshrl.u32 %v2180, 7
  %v2182 = vsub.s32 2, %v2181
  %v2183 = vrot.slane %v2108, %v2182
  %v2184 = vlaneseq
  %v2185 = vshrl.u32 %v2184, 7
  %v2186 = vsub.s32 2, %v2185
  %v2187 = vrot.slane %v2109, %v2186
  %2188 = vset.pattern.permute.xlu0 2
  %2189 = vperm.xlu0 %2188, %v2114
  %v2190 = vpop.permute.xlu0 %2189
  %v2192 = vmul.f32 %v2175, %v2190
  %v2193 = vmul.f32 %v2179, %v2190
  %v2194 = vmul.f32 %v2183, %v2190
  %v2195 = vmul.f32 %v2187, %v2190
  %v2196 = vadd.f32 %v2168, %v2192
  %v2197 = vadd.f32 %v2169, %v2193
  %v2198 = vadd.f32 %v2170, %v2194
  %v2199 = vadd.f32 %v2171, %v2195
  %v2200 = vlaneseq
  %v2201 = vshrl.u32 %v2200, 7
  %v2202 = vsub.s32 3, %v2201
  %v2203 = vrot.slane %v2102, %v2202
  %v2204 = vlaneseq
  %v2205 = vshrl.u32 %v2204, 7
  %v2206 = vsub.s32 3, %v2205
  %v2207 = vrot.slane %v2103, %v2206
  %v2208 = vlaneseq
  %v2209 = vshrl.u32 %v2208, 7
  %v2210 = vsub.s32 3, %v2209
  %v2211 = vrot.slane %v2108, %v2210
  %v2212 = vlaneseq
  %v2213 = vshrl.u32 %v2212, 7
  %v2214 = vsub.s32 3, %v2213
  %v2215 = vrot.slane %v2109, %v2214
  %2216 = vset.pattern.permute.xlu0 3
  %2217 = vperm.xlu0 %2216, %v2114
  %v2218 = vpop.permute.xlu0 %2217
  %v2220 = vmul.f32 %v2203, %v2218
  %v2221 = vmul.f32 %v2207, %v2218
  %v2222 = vmul.f32 %v2211, %v2218
  %v2223 = vmul.f32 %v2215, %v2218
  %v2224 = vadd.f32 %v2196, %v2220
  %v2225 = vadd.f32 %v2197, %v2221
  %v2226 = vadd.f32 %v2198, %v2222
  %v2227 = vadd.f32 %v2199, %v2223
  %v2228 = vlaneseq
  %v2229 = vshrl.u32 %v2228, 7
  %v2230 = vsub.s32 4, %v2229
  %v2231 = vrot.slane %v2102, %v2230
  %v2232 = vlaneseq
  %v2233 = vshrl.u32 %v2232, 7
  %v2234 = vsub.s32 4, %v2233
  %v2235 = vrot.slane %v2103, %v2234
  %v2236 = vlaneseq
  %v2237 = vshrl.u32 %v2236, 7
  %v2238 = vsub.s32 4, %v2237
  %v2239 = vrot.slane %v2108, %v2238
  %v2240 = vlaneseq
  %v2241 = vshrl.u32 %v2240, 7
  %v2242 = vsub.s32 4, %v2241
  %v2243 = vrot.slane %v2109, %v2242
  %2244 = vset.pattern.permute.xlu0 4
  %2245 = vperm.xlu0 %2244, %v2114
  %v2246 = vpop.permute.xlu0 %2245
  %v2248 = vmul.f32 %v2231, %v2246
  %v2249 = vmul.f32 %v2235, %v2246
  %v2250 = vmul.f32 %v2239, %v2246
  %v2251 = vmul.f32 %v2243, %v2246
  %v2252 = vadd.f32 %v2224, %v2248
  %v2253 = vadd.f32 %v2225, %v2249
  %v2254 = vadd.f32 %v2226, %v2250
  %v2255 = vadd.f32 %v2227, %v2251
  %v2256 = vlaneseq
  %v2257 = vshrl.u32 %v2256, 7
  %v2258 = vsub.s32 5, %v2257
  %v2259 = vrot.slane %v2102, %v2258
  %v2260 = vlaneseq
  %v2261 = vshrl.u32 %v2260, 7
  %v2262 = vsub.s32 5, %v2261
  %v2263 = vrot.slane %v2103, %v2262
  %v2264 = vlaneseq
  %v2265 = vshrl.u32 %v2264, 7
  %v2266 = vsub.s32 5, %v2265
  %v2267 = vrot.slane %v2108, %v2266
  %v2268 = vlaneseq
  %v2269 = vshrl.u32 %v2268, 7
  %v2270 = vsub.s32 5, %v2269
  %v2271 = vrot.slane %v2109, %v2270
  %2272 = vset.pattern.permute.xlu0 5
  %2273 = vperm.xlu0 %2272, %v2114
  %v2274 = vpop.permute.xlu0 %2273
  %v2276 = vmul.f32 %v2259, %v2274
  %v2277 = vmul.f32 %v2263, %v2274
  %v2278 = vmul.f32 %v2267, %v2274
  %v2279 = vmul.f32 %v2271, %v2274
  %v2280 = vadd.f32 %v2252, %v2276
  %v2281 = vadd.f32 %v2253, %v2277
  %v2282 = vadd.f32 %v2254, %v2278
  %v2283 = vadd.f32 %v2255, %v2279
  %v2284 = vlaneseq
  %v2285 = vshrl.u32 %v2284, 7
  %v2286 = vsub.s32 6, %v2285
  %v2287 = vrot.slane %v2102, %v2286
  %v2288 = vlaneseq
  %v2289 = vshrl.u32 %v2288, 7
  %v2290 = vsub.s32 6, %v2289
  %v2291 = vrot.slane %v2103, %v2290
  %v2292 = vlaneseq
  %v2293 = vshrl.u32 %v2292, 7
  %v2294 = vsub.s32 6, %v2293
  %v2295 = vrot.slane %v2108, %v2294
  %v2296 = vlaneseq
  %v2297 = vshrl.u32 %v2296, 7
  %v2298 = vsub.s32 6, %v2297
  %v2299 = vrot.slane %v2109, %v2298
  %2300 = vset.pattern.permute.xlu0 6
  %2301 = vperm.xlu0 %2300, %v2114
  %v2302 = vpop.permute.xlu0 %2301
  %v2304 = vmul.f32 %v2287, %v2302
  %v2305 = vmul.f32 %v2291, %v2302
  %v2306 = vmul.f32 %v2295, %v2302
  %v2307 = vmul.f32 %v2299, %v2302
  %v2308 = vadd.f32 %v2280, %v2304
  %v2309 = vadd.f32 %v2281, %v2305
  %v2310 = vadd.f32 %v2282, %v2306
  %v2311 = vadd.f32 %v2283, %v2307
  %v2312 = vlaneseq
  %v2313 = vshrl.u32 %v2312, 7
  %v2314 = vsub.s32 7, %v2313
  %v2315 = vrot.slane %v2102, %v2314
  %v2316 = vlaneseq
  %v2317 = vshrl.u32 %v2316, 7
  %v2318 = vsub.s32 7, %v2317
  %v2319 = vrot.slane %v2103, %v2318
  %v2320 = vlaneseq
  %v2321 = vshrl.u32 %v2320, 7
  %v2322 = vsub.s32 7, %v2321
  %v2323 = vrot.slane %v2108, %v2322
  %v2324 = vlaneseq
  %v2325 = vshrl.u32 %v2324, 7
  %v2326 = vsub.s32 7, %v2325
  %v2327 = vrot.slane %v2109, %v2326
  %2328 = vset.pattern.permute.xlu0 7
  %2329 = vperm.xlu0 %2328, %v2114
  %v2330 = vpop.permute.xlu0 %2329
  %v2332 = vmul.f32 %v2315, %v2330
  %v2333 = vmul.f32 %v2319, %v2330
  %v2334 = vmul.f32 %v2323, %v2330
  %v2335 = vmul.f32 %v2327, %v2330
  %v2336 = vadd.f32 %v2308, %v2332
  %v2337 = vadd.f32 %v2309, %v2333
  %v2338 = vadd.f32 %v2310, %v2334
  %v2339 = vadd.f32 %v2311, %v2335
  %v2340 = vlaneseq
  %v2341 = vshrl.u32 %v2340, 7
  %v2342 = vsub.s32 0, %v2341
  %v2343 = vrot.slane %v2104, %v2342
  %v2344 = vlaneseq
  %v2345 = vshrl.u32 %v2344, 7
  %v2346 = vsub.s32 0, %v2345
  %v2347 = vrot.slane %v2105, %v2346
  %v2348 = vlaneseq
  %v2349 = vshrl.u32 %v2348, 7
  %v2350 = vsub.s32 0, %v2349
  %v2351 = vrot.slane %v2110, %v2350
  %v2352 = vlaneseq
  %v2353 = vshrl.u32 %v2352, 7
  %v2354 = vsub.s32 0, %v2353
  %v2355 = vrot.slane %v2111, %v2354
  %2356 = vset.pattern.permute.xlu0 8
  %2357 = vperm.xlu0 %2356, %v2114
  %v2358 = vpop.permute.xlu0 %2357
  %v2360 = vmul.f32 %v2343, %v2358
  %v2361 = vmul.f32 %v2347, %v2358
  %v2362 = vmul.f32 %v2351, %v2358
  %v2363 = vmul.f32 %v2355, %v2358
  %v2364 = vadd.f32 %v2336, %v2360
  %v2365 = vadd.f32 %v2337, %v2361
  %v2366 = vadd.f32 %v2338, %v2362
  %v2367 = vadd.f32 %v2339, %v2363
  %v2368 = vlaneseq
  %v2369 = vshrl.u32 %v2368, 7
  %v2370 = vsub.s32 1, %v2369
  %v2371 = vrot.slane %v2104, %v2370
  %v2372 = vlaneseq
  %v2373 = vshrl.u32 %v2372, 7
  %v2374 = vsub.s32 1, %v2373
  %v2375 = vrot.slane %v2105, %v2374
  %v2376 = vlaneseq
  %v2377 = vshrl.u32 %v2376, 7
  %v2378 = vsub.s32 1, %v2377
  %v2379 = vrot.slane %v2110, %v2378
  %v2380 = vlaneseq
  %v2381 = vshrl.u32 %v2380, 7
  %v2382 = vsub.s32 1, %v2381
  %v2383 = vrot.slane %v2111, %v2382
  %2384 = vset.pattern.permute.xlu0 9
  %2385 = vperm.xlu0 %2384, %v2114
  %v2386 = vpop.permute.xlu0 %2385
  %v2388 = vmul.f32 %v2371, %v2386
  %v2389 = vmul.f32 %v2375, %v2386
  %v2390 = vmul.f32 %v2379, %v2386
  %v2391 = vmul.f32 %v2383, %v2386
  %v2392 = vadd.f32 %v2364, %v2388
  %v2393 = vadd.f32 %v2365, %v2389
  %v2394 = vadd.f32 %v2366, %v2390
  %v2395 = vadd.f32 %v2367, %v2391
  %v2396 = vlaneseq
  %v2397 = vshrl.u32 %v2396, 7
  %v2398 = vsub.s32 2, %v2397
  %v2399 = vrot.slane %v2104, %v2398
  %v2400 = vlaneseq
  %v2401 = vshrl.u32 %v2400, 7
  %v2402 = vsub.s32 2, %v2401
  %v2403 = vrot.slane %v2105, %v2402
  %v2404 = vlaneseq
  %v2405 = vshrl.u32 %v2404, 7
  %v2406 = vsub.s32 2, %v2405
  %v2407 = vrot.slane %v2110, %v2406
  %v2408 = vlaneseq
  %v2409 = vshrl.u32 %v2408, 7
  %v2410 = vsub.s32 2, %v2409
  %v2411 = vrot.slane %v2111, %v2410
  %2412 = vset.pattern.permute.xlu0 10
  %2413 = vperm.xlu0 %2412, %v2114
  %v2414 = vpop.permute.xlu0 %2413
  %v2416 = vmul.f32 %v2399, %v2414
  %v2417 = vmul.f32 %v2403, %v2414
  %v2418 = vmul.f32 %v2407, %v2414
  %v2419 = vmul.f32 %v2411, %v2414
  %v2420 = vadd.f32 %v2392, %v2416
  %v2421 = vadd.f32 %v2393, %v2417
  %v2422 = vadd.f32 %v2394, %v2418
  %v2423 = vadd.f32 %v2395, %v2419
  %v2424 = vlaneseq
  %v2425 = vshrl.u32 %v2424, 7
  %v2426 = vsub.s32 3, %v2425
  %v2427 = vrot.slane %v2104, %v2426
  %v2428 = vlaneseq
  %v2429 = vshrl.u32 %v2428, 7
  %v2430 = vsub.s32 3, %v2429
  %v2431 = vrot.slane %v2105, %v2430
  %v2432 = vlaneseq
  %v2433 = vshrl.u32 %v2432, 7
  %v2434 = vsub.s32 3, %v2433
  %v2435 = vrot.slane %v2110, %v2434
  %v2436 = vlaneseq
  %v2437 = vshrl.u32 %v2436, 7
  %v2438 = vsub.s32 3, %v2437
  %v2439 = vrot.slane %v2111, %v2438
  %2440 = vset.pattern.permute.xlu0 11
  %2441 = vperm.xlu0 %2440, %v2114
  %v2442 = vpop.permute.xlu0 %2441
  %v2444 = vmul.f32 %v2427, %v2442
  %v2445 = vmul.f32 %v2431, %v2442
  %v2446 = vmul.f32 %v2435, %v2442
  %v2447 = vmul.f32 %v2439, %v2442
  %v2448 = vadd.f32 %v2420, %v2444
  %v2449 = vadd.f32 %v2421, %v2445
  %v2450 = vadd.f32 %v2422, %v2446
  %v2451 = vadd.f32 %v2423, %v2447
  %v2452 = vlaneseq
  %v2453 = vshrl.u32 %v2452, 7
  %v2454 = vsub.s32 4, %v2453
  %v2455 = vrot.slane %v2104, %v2454
  %v2456 = vlaneseq
  %v2457 = vshrl.u32 %v2456, 7
  %v2458 = vsub.s32 4, %v2457
  %v2459 = vrot.slane %v2105, %v2458
  %v2460 = vlaneseq
  %v2461 = vshrl.u32 %v2460, 7
  %v2462 = vsub.s32 4, %v2461
  %v2463 = vrot.slane %v2110, %v2462
  %v2464 = vlaneseq
  %v2465 = vshrl.u32 %v2464, 7
  %v2466 = vsub.s32 4, %v2465
  %v2467 = vrot.slane %v2111, %v2466
  %2468 = vset.pattern.permute.xlu0 12
  %2469 = vperm.xlu0 %2468, %v2114
  %v2470 = vpop.permute.xlu0 %2469
  %v2472 = vmul.f32 %v2455, %v2470
  %v2473 = vmul.f32 %v2459, %v2470
  %v2474 = vmul.f32 %v2463, %v2470
  %v2475 = vmul.f32 %v2467, %v2470
  %v2476 = vadd.f32 %v2448, %v2472
  %v2477 = vadd.f32 %v2449, %v2473
  %v2478 = vadd.f32 %v2450, %v2474
  %v2479 = vadd.f32 %v2451, %v2475
  %v2480 = vlaneseq
  %v2481 = vshrl.u32 %v2480, 7
  %v2482 = vsub.s32 5, %v2481
  %v2483 = vrot.slane %v2104, %v2482
  %v2484 = vlaneseq
  %v2485 = vshrl.u32 %v2484, 7
  %v2486 = vsub.s32 5, %v2485
  %v2487 = vrot.slane %v2105, %v2486
  %v2488 = vlaneseq
  %v2489 = vshrl.u32 %v2488, 7
  %v2490 = vsub.s32 5, %v2489
  %v2491 = vrot.slane %v2110, %v2490
  %v2492 = vlaneseq
  %v2493 = vshrl.u32 %v2492, 7
  %v2494 = vsub.s32 5, %v2493
  %v2495 = vrot.slane %v2111, %v2494
  %2496 = vset.pattern.permute.xlu0 13
  %2497 = vperm.xlu0 %2496, %v2114
  %v2498 = vpop.permute.xlu0 %2497
  %v2500 = vmul.f32 %v2483, %v2498
  %v2501 = vmul.f32 %v2487, %v2498
  %v2502 = vmul.f32 %v2491, %v2498
  %v2503 = vmul.f32 %v2495, %v2498
  %v2504 = vadd.f32 %v2476, %v2500
  %v2505 = vadd.f32 %v2477, %v2501
  %v2506 = vadd.f32 %v2478, %v2502
  %v2507 = vadd.f32 %v2479, %v2503
  %v2508 = vlaneseq
  %v2509 = vshrl.u32 %v2508, 7
  %v2510 = vsub.s32 6, %v2509
  %v2511 = vrot.slane %v2104, %v2510
  %v2512 = vlaneseq
  %v2513 = vshrl.u32 %v2512, 7
  %v2514 = vsub.s32 6, %v2513
  %v2515 = vrot.slane %v2105, %v2514
  %v2516 = vlaneseq
  %v2517 = vshrl.u32 %v2516, 7
  %v2518 = vsub.s32 6, %v2517
  %v2519 = vrot.slane %v2110, %v2518
  %v2520 = vlaneseq
  %v2521 = vshrl.u32 %v2520, 7
  %v2522 = vsub.s32 6, %v2521
  %v2523 = vrot.slane %v2111, %v2522
  %2524 = vset.pattern.permute.xlu0 14
  %2525 = vperm.xlu0 %2524, %v2114
  %v2526 = vpop.permute.xlu0 %2525
  %v2528 = vmul.f32 %v2511, %v2526
  %v2529 = vmul.f32 %v2515, %v2526
  %v2530 = vmul.f32 %v2519, %v2526
  %v2531 = vmul.f32 %v2523, %v2526
  %v2532 = vadd.f32 %v2504, %v2528
  %v2533 = vadd.f32 %v2505, %v2529
  %v2534 = vadd.f32 %v2506, %v2530
  %v2535 = vadd.f32 %v2507, %v2531
  %v2536 = vlaneseq
  %v2537 = vshrl.u32 %v2536, 7
  %v2538 = vsub.s32 7, %v2537
  %v2539 = vrot.slane %v2104, %v2538
  %v2540 = vlaneseq
  %v2541 = vshrl.u32 %v2540, 7
  %v2542 = vsub.s32 7, %v2541
  %v2543 = vrot.slane %v2105, %v2542
  %v2544 = vlaneseq
  %v2545 = vshrl.u32 %v2544, 7
  %v2546 = vsub.s32 7, %v2545
  %v2547 = vrot.slane %v2110, %v2546
  %v2548 = vlaneseq
  %v2549 = vshrl.u32 %v2548, 7
  %v2550 = vsub.s32 7, %v2549
  %v2551 = vrot.slane %v2111, %v2550
  %2552 = vset.pattern.permute.xlu0 15
  %2553 = vperm.xlu0 %2552, %v2114
  %v2554 = vpop.permute.xlu0 %2553
  %v2556 = vmul.f32 %v2539, %v2554
  %v2557 = vmul.f32 %v2543, %v2554
  %v2558 = vmul.f32 %v2547, %v2554
  %v2559 = vmul.f32 %v2551, %v2554
  %v2560 = vadd.f32 %v2532, %v2556
  %v2561 = vadd.f32 %v2533, %v2557
  %v2562 = vadd.f32 %v2534, %v2558
  %v2563 = vadd.f32 %v2535, %v2559
  %v2564 = vlaneseq
  %v2565 = vshrl.u32 %v2564, 7
  %v2566 = vsub.s32 0, %v2565
  %v2567 = vrot.slane %v2106, %v2566
  %v2568 = vlaneseq
  %v2569 = vshrl.u32 %v2568, 7
  %v2570 = vsub.s32 0, %v2569
  %v2571 = vrot.slane %v2107, %v2570
  %v2572 = vlaneseq
  %v2573 = vshrl.u32 %v2572, 7
  %v2574 = vsub.s32 0, %v2573
  %v2575 = vrot.slane %v2112, %v2574
  %v2576 = vlaneseq
  %v2577 = vshrl.u32 %v2576, 7
  %v2578 = vsub.s32 0, %v2577
  %v2579 = vrot.slane %v2113, %v2578
  %2580 = vset.pattern.permute.xlu0 16
  %2581 = vperm.xlu0 %2580, %v2114
  %v2582 = vpop.permute.xlu0 %2581
  %v2584 = vmul.f32 %v2567, %v2582
  %v2585 = vmul.f32 %v2571, %v2582
  %v2586 = vmul.f32 %v2575, %v2582
  %v2587 = vmul.f32 %v2579, %v2582
  %v2588 = vadd.f32 %v2560, %v2584
  %v2589 = vadd.f32 %v2561, %v2585
  %v2590 = vadd.f32 %v2562, %v2586
  %v2591 = vadd.f32 %v2563, %v2587
  %v2592 = vlaneseq
  %v2593 = vshrl.u32 %v2592, 7
  %v2594 = vsub.s32 1, %v2593
  %v2595 = vrot.slane %v2106, %v2594
  %v2596 = vlaneseq
  %v2597 = vshrl.u32 %v2596, 7
  %v2598 = vsub.s32 1, %v2597
  %v2599 = vrot.slane %v2107, %v2598
  %v2600 = vlaneseq
  %v2601 = vshrl.u32 %v2600, 7
  %v2602 = vsub.s32 1, %v2601
  %v2603 = vrot.slane %v2112, %v2602
  %v2604 = vlaneseq
  %v2605 = vshrl.u32 %v2604, 7
  %v2606 = vsub.s32 1, %v2605
  %v2607 = vrot.slane %v2113, %v2606
  %2608 = vset.pattern.permute.xlu0 17
  %2609 = vperm.xlu0 %2608, %v2114
  %v2610 = vpop.permute.xlu0 %2609
  %v2612 = vmul.f32 %v2595, %v2610
  %v2613 = vmul.f32 %v2599, %v2610
  %v2614 = vmul.f32 %v2603, %v2610
  %v2615 = vmul.f32 %v2607, %v2610
  %v2616 = vadd.f32 %v2588, %v2612
  %v2617 = vadd.f32 %v2589, %v2613
  %v2618 = vadd.f32 %v2590, %v2614
  %v2619 = vadd.f32 %v2591, %v2615
  %v2620 = vlaneseq
  %v2621 = vshrl.u32 %v2620, 7
  %v2622 = vsub.s32 2, %v2621
  %v2623 = vrot.slane %v2106, %v2622
  %v2624 = vlaneseq
  %v2625 = vshrl.u32 %v2624, 7
  %v2626 = vsub.s32 2, %v2625
  %v2627 = vrot.slane %v2107, %v2626
  %v2628 = vlaneseq
  %v2629 = vshrl.u32 %v2628, 7
  %v2630 = vsub.s32 2, %v2629
  %v2631 = vrot.slane %v2112, %v2630
  %v2632 = vlaneseq
  %v2633 = vshrl.u32 %v2632, 7
  %v2634 = vsub.s32 2, %v2633
  %v2635 = vrot.slane %v2113, %v2634
  %2636 = vset.pattern.permute.xlu0 18
  %2637 = vperm.xlu0 %2636, %v2114
  %v2638 = vpop.permute.xlu0 %2637
  %v2640 = vmul.f32 %v2623, %v2638
  %v2641 = vmul.f32 %v2627, %v2638
  %v2642 = vmul.f32 %v2631, %v2638
  %v2643 = vmul.f32 %v2635, %v2638
  %v2644 = vadd.f32 %v2616, %v2640
  %v2645 = vadd.f32 %v2617, %v2641
  %v2646 = vadd.f32 %v2618, %v2642
  %v2647 = vadd.f32 %v2619, %v2643
  %v2648 = vlaneseq
  %v2649 = vshrl.u32 %v2648, 7
  %v2650 = vsub.s32 3, %v2649
  %v2651 = vrot.slane %v2106, %v2650
  %v2652 = vlaneseq
  %v2653 = vshrl.u32 %v2652, 7
  %v2654 = vsub.s32 3, %v2653
  %v2655 = vrot.slane %v2107, %v2654
  %v2656 = vlaneseq
  %v2657 = vshrl.u32 %v2656, 7
  %v2658 = vsub.s32 3, %v2657
  %v2659 = vrot.slane %v2112, %v2658
  %v2660 = vlaneseq
  %v2661 = vshrl.u32 %v2660, 7
  %v2662 = vsub.s32 3, %v2661
  %v2663 = vrot.slane %v2113, %v2662
  %2664 = vset.pattern.permute.xlu0 19
  %2665 = vperm.xlu0 %2664, %v2114
  %v2666 = vpop.permute.xlu0 %2665
  %v2668 = vmul.f32 %v2651, %v2666
  %v2669 = vmul.f32 %v2655, %v2666
  %v2670 = vmul.f32 %v2659, %v2666
  %v2671 = vmul.f32 %v2663, %v2666
  %v2672 = vadd.f32 %v2644, %v2668
  %v2673 = vadd.f32 %v2645, %v2669
  %v2674 = vadd.f32 %v2646, %v2670
  %v2675 = vadd.f32 %v2647, %v2671
  %v2676 = vlaneseq
  %v2677 = vshrl.u32 %v2676, 7
  %v2678 = vsub.s32 4, %v2677
  %v2679 = vrot.slane %v2106, %v2678
  %v2680 = vlaneseq
  %v2681 = vshrl.u32 %v2680, 7
  %v2682 = vsub.s32 4, %v2681
  %v2683 = vrot.slane %v2107, %v2682
  %v2684 = vlaneseq
  %v2685 = vshrl.u32 %v2684, 7
  %v2686 = vsub.s32 4, %v2685
  %v2687 = vrot.slane %v2112, %v2686
  %v2688 = vlaneseq
  %v2689 = vshrl.u32 %v2688, 7
  %v2690 = vsub.s32 4, %v2689
  %v2691 = vrot.slane %v2113, %v2690
  %2692 = vset.pattern.permute.xlu0 20
  %2693 = vperm.xlu0 %2692, %v2114
  %v2694 = vpop.permute.xlu0 %2693
  %v2696 = vmul.f32 %v2679, %v2694
  %v2697 = vmul.f32 %v2683, %v2694
  %v2698 = vmul.f32 %v2687, %v2694
  %v2699 = vmul.f32 %v2691, %v2694
  %v2700 = vadd.f32 %v2672, %v2696
  %v2701 = vadd.f32 %v2673, %v2697
  %v2702 = vadd.f32 %v2674, %v2698
  %v2703 = vadd.f32 %v2675, %v2699
  %v2704 = vlaneseq
  %v2705 = vshrl.u32 %v2704, 7
  %v2706 = vsub.s32 5, %v2705
  %v2707 = vrot.slane %v2106, %v2706
  %v2708 = vlaneseq
  %v2709 = vshrl.u32 %v2708, 7
  %v2710 = vsub.s32 5, %v2709
  %v2711 = vrot.slane %v2107, %v2710
  %v2712 = vlaneseq
  %v2713 = vshrl.u32 %v2712, 7
  %v2714 = vsub.s32 5, %v2713
  %v2715 = vrot.slane %v2112, %v2714
  %v2716 = vlaneseq
  %v2717 = vshrl.u32 %v2716, 7
  %v2718 = vsub.s32 5, %v2717
  %v2719 = vrot.slane %v2113, %v2718
  %2720 = vset.pattern.permute.xlu0 21
  %2721 = vperm.xlu0 %2720, %v2114
  %v2722 = vpop.permute.xlu0 %2721
  %v2724 = vmul.f32 %v2707, %v2722
  %v2725 = vmul.f32 %v2711, %v2722
  %v2726 = vmul.f32 %v2715, %v2722
  %v2727 = vmul.f32 %v2719, %v2722
  %v2728 = vadd.f32 %v2700, %v2724
  %v2729 = vadd.f32 %v2701, %v2725
  %v2730 = vadd.f32 %v2702, %v2726
  %v2731 = vadd.f32 %v2703, %v2727
  %v2732 = vlaneseq
  %v2733 = vshrl.u32 %v2732, 7
  %v2734 = vsub.s32 6, %v2733
  %v2735 = vrot.slane %v2106, %v2734
  %v2736 = vlaneseq
  %v2737 = vshrl.u32 %v2736, 7
  %v2738 = vsub.s32 6, %v2737
  %v2739 = vrot.slane %v2107, %v2738
  %v2740 = vlaneseq
  %v2741 = vshrl.u32 %v2740, 7
  %v2742 = vsub.s32 6, %v2741
  %v2743 = vrot.slane %v2112, %v2742
  %v2744 = vlaneseq
  %v2745 = vshrl.u32 %v2744, 7
  %v2746 = vsub.s32 6, %v2745
  %v2747 = vrot.slane %v2113, %v2746
  %2748 = vset.pattern.permute.xlu0 22
  %2749 = vperm.xlu0 %2748, %v2114
  %v2750 = vpop.permute.xlu0 %2749
  %v2752 = vmul.f32 %v2735, %v2750
  %v2753 = vmul.f32 %v2739, %v2750
  %v2754 = vmul.f32 %v2743, %v2750
  %v2755 = vmul.f32 %v2747, %v2750
  %v2756 = vadd.f32 %v2728, %v2752
  %v2757 = vadd.f32 %v2729, %v2753
  %v2758 = vadd.f32 %v2730, %v2754
  %v2759 = vadd.f32 %v2731, %v2755
  %v2760 = vlaneseq
  %v2761 = vshrl.u32 %v2760, 7
  %v2762 = vsub.s32 7, %v2761
  %v2763 = vrot.slane %v2106, %v2762
  %v2764 = vlaneseq
  %v2765 = vshrl.u32 %v2764, 7
  %v2766 = vsub.s32 7, %v2765
  %v2767 = vrot.slane %v2107, %v2766
  %v2768 = vlaneseq
  %v2769 = vshrl.u32 %v2768, 7
  %v2770 = vsub.s32 7, %v2769
  %v2771 = vrot.slane %v2112, %v2770
  %v2772 = vlaneseq
  %v2773 = vshrl.u32 %v2772, 7
  %v2774 = vsub.s32 7, %v2773
  %v2775 = vrot.slane %v2113, %v2774
  %2776 = vset.pattern.permute.xlu0 23
  %2777 = vperm.xlu0 %2776, %v2114
  %v2778 = vpop.permute.xlu0 %2777
  %v2780 = vmul.f32 %v2763, %v2778
  %v2781 = vmul.f32 %v2767, %v2778
  %v2782 = vmul.f32 %v2771, %v2778
  %v2783 = vmul.f32 %v2775, %v2778
  %v2784 = vadd.f32 %v2756, %v2780
  %v2785 = vadd.f32 %v2757, %v2781
  %v2786 = vadd.f32 %v2758, %v2782
  %v2787 = vadd.f32 %v2759, %v2783
  %v2788 = vld [vmem:[%s12] sm:$0xf]
  %v2789 = vld [vmem:[%s13] sm:$0xf]
  %vm2790 = vcmask 1043456
  %v2791 = vsel %vm2790, %v2784, 0.0
  %v2792 = vsel %vm2790, %v2785, 0.0
  %v2793 = vadd.f32 %v2791, %v2792
  %2794 = vadd.xlane.f32.xlu0 %v2793
  %v2795 = vpop.xlane.xlu0 %2794
  %v2796 = vsel %vm2790, %v2786, 0.0
  %v2797 = vsel %vm2790, %v2787, 0.0
  %v2798 = vadd.f32 %v2796, %v2797
  %2799 = vadd.xlane.f32.xlu0 %v2798
  %v2800 = vpop.xlane.xlu0 %2799
  %v2801 = vsel %vm2790, %v2795, 0.0
  %v2802 = vsel %vm2790, %v2800, 0.0
  %v2803 = vadd.f32 %v2801, %v2802
  %v2804 = vmul.f32 %v2784, %v2784
  %v2805 = vmul.f32 %v2785, %v2785
  %v2806 = vmul.f32 %v2786, %v2786
  %v2807 = vmul.f32 %v2787, %v2787
  %v2808 = vsel %vm2790, %v2804, 0.0
  %v2809 = vsel %vm2790, %v2805, 0.0
  %v2810 = vadd.f32 %v2808, %v2809
  %2811 = vadd.xlane.f32.xlu0 %v2810
  %v2812 = vpop.xlane.xlu0 %2811
  %v2813 = vsel %vm2790, %v2806, 0.0
  %v2814 = vsel %vm2790, %v2807, 0.0
  %v2815 = vadd.f32 %v2813, %v2814
  %2816 = vadd.xlane.f32.xlu0 %v2815
  %v2817 = vpop.xlane.xlu0 %2816
  %v2818 = vsel %vm2790, %v2812, 0.0
  %v2819 = vsel %vm2790, %v2817, 0.0
  %v2820 = vadd.f32 %v2818, %v2819
  %v2821 = vmul.f32 %v2803, 0.001953125
  %v2822 = vmul.f32 %v2820, 0.001953125
  %v2823 = vmul.f32 %v2821, %v2821
  %v2824 = vsub.f32 %v2822, %v2823
  %v2825 = vsub.f32 %v2784, %v2821
  %v2826 = vsub.f32 %v2785, %v2821
  %v2827 = vsub.f32 %v2786, %v2821
  %v2828 = vsub.f32 %v2787, %v2821
  %v2829 = vadd.f32 %v2824, 1e-05
  %v2830 = vrsqrt.pop %v2829
  %v2831 = vmul.f32 %v2830, %v2788
  %2833 = vset.pattern.permute.xlu0 0
  %2834 = vperm.xlu0 %2833, %v2831
  %v2835 = vpop.permute.xlu0 %2834
  %v2837 = vmul.f32 %v2825, %v2835
  %v2838 = vmul.f32 %v2826, %v2835
  %v2839 = vmul.f32 %v2827, %v2835
  %v2840 = vmul.f32 %v2828, %v2835
  %2842 = vset.pattern.permute.xlu0 0
  %2843 = vperm.xlu0 %2842, %v2789
  %v2844 = vpop.permute.xlu0 %2843
  %v2846 = vadd.f32 %v2837, %v2844
  %v2847 = vadd.f32 %v2838, %v2844
  %v2848 = vadd.f32 %v2839, %v2844
  %v2849 = vadd.f32 %v2840, %v2844
  %v2850 = vcombine.high %v47, %v47
  %v2851 = vcombine.high %v48, %v48
  %v2854 = vadd.f32 %v2846, %v47
  %v2855 = vadd.f32 %v2847, %v2850
  %v2856 = vadd.f32 %v2848, %v48
  %v2857 = vadd.f32 %v2849, %v2851
  %v2862 = vcombine.low %v2854, %v2855
  %v2863 = vcombine.low %v2856, %v2857
  %2866 = vst [vmem:[%s14] sm:$0xff] %v2862
  %2867 = vst [vmem:[%s14 + $0x8] sm:$0xff] %v2863
  // Predicated region
  $region58: #{mbconv_forward.1} parent=0 // pred_check
    _
  $region59: #{mbconv_forward.1} parent=0 // pred_check_branch
    %2869 = sbr.rel (0) target = $region61
  $region60: #{mbconv_forward.1} parent=0 // pred_region
    _
  $region61: #{mbconv_forward.1} parent=0 // pred_fallthru
    _
  // Predicated region
  $region62: #{mbconv_forward.1} parent=0 // pred_check
    _
  $region63: #{mbconv_forward.1} parent=0 // pred_check_branch
    %2871 = sbr.rel (0) target = $region65
  $region64: #{mbconv_forward.1} parent=0 // pred_region
    _
  $region65: #{mbconv_forward.1} parent=0 // pred_fallthru
    _

</llo_original>
